<compile_context>
chip_gen: v7x
topology: tpu7x:2x2x1
jax: 0.10.0
libtpu: 0.0.40
codegen_flags: <defaults>
</compile_context>

<pallas_src>
import functools

import numpy as np
import jax
import jax.numpy as jnp
from jax import lax
from jax.experimental import pallas as pl
from jax.experimental.pallas import tpu as pltpu


# ----------------------------------------------------------------------------
# Fused kernel: one grid step == Bt images.
# ----------------------------------------------------------------------------
def _pose_decoder_kernel(x_ref, wsq_ref, bsq_ref, w0_ref, b0_ref,
                         w1_ref, b1_ref, w2_ref, b2_ref, o_ref, *, H, W, Bt):
    C = wsq_ref.shape[1]                 # 256
    HW = H * W
    M = Bt * HW                          # folded-batch matmul M dimension

    # ---- squeeze (1x1 conv) + ReLU ------------------------------------------
    # x block is (Bt, Cin, HW) (free reshape of NCHW); transpose each small
    # (Cin, HW) tile in-kernel (XLU) instead of a wrapper-side HBM transpose.
    cols = [jnp.transpose(x_ref[b], (1, 0)) for b in range(Bt)]      # (HW, Cin) f32
    xt = (jnp.concatenate(cols, axis=0) if Bt > 1 else cols[0]).astype(jnp.bfloat16)
    h = jnp.dot(xt, wsq_ref[...], preferred_element_type=jnp.float32)  # (M, C)
    h = jnp.maximum(h + bsq_ref[...], 0.0)

    # Per-position row / column masks inside each image (shared by both convs).
    yc1 = lax.broadcasted_iota(jnp.int32, (H, W, C), 0).reshape(HW, C)
    xc1 = lax.broadcasted_iota(jnp.int32, (H, W, C), 1).reshape(HW, C)
    ycoord = jnp.concatenate([yc1] * Bt, axis=0) if Bt > 1 else yc1    # (M, C)
    xcoord = jnp.concatenate([xc1] * Bt, axis=0) if Bt > 1 else xc1
    mask_top = ycoord >= 1          # ky=0 tap reads row y-1 -> invalid at y == 0
    mask_bot = ycoord <= H - 2      # ky=2 tap reads row y+1 -> invalid at y == H-1
    mask_l = xcoord >= 1            # kx=0 tap reads col x-1 -> invalid at x == 0
    mask_r = xcoord <= W - 2        # kx=2 tap reads col x+1 -> invalid at x == W-1

    def conv3x3_relu(h_in, w_ref, b_ref):
        # h_in: (M, C) f32.  w_ref: (3C, 3C) bf16, rows (ky, cin), cols (kx, cout).
        # ky im2col patch via sublane rolls (XLU) + lane concat; the row masks
        # also stop cross-image bleed from the folded batch.
        up = jnp.where(mask_top, pltpu.roll(h_in, shift=W, axis=0), 0.0)
        dn = jnp.where(mask_bot, pltpu.roll(h_in, shift=M - W, axis=0), 0.0)
        pm = jnp.concatenate([up.astype(jnp.bfloat16),
                              h_in.astype(jnp.bfloat16),
                              dn.astype(jnp.bfloat16)], axis=-1)       # (M, 3C)
        # One MXU matmul covers all three kx taps (768-wide fused RHS).
        res = jnp.dot(pm, w_ref[...], preferred_element_type=jnp.float32)  # (M, 3C)
        p0 = res[:, 0:C]            # kx = 0  (dx = -1)
        p1 = res[:, C:2 * C]        # kx = 1  (dx =  0)
        p2 = res[:, 2 * C:3 * C]    # kx = 2  (dx = +1)
        acc = p1
        acc = acc + jnp.where(mask_l, pltpu.roll(p0, shift=1, axis=0), 0.0)
        acc = acc + jnp.where(mask_r, pltpu.roll(p2, shift=M - 1, axis=0), 0.0)
        return jnp.maximum(acc + b_ref[...], 0.0)                      # (M, C) f32

    h = conv3x3_relu(h, w0_ref, b0_ref)
    h = conv3x3_relu(h, w1_ref, b1_ref)

    # ---- pose_2 (1x1) fused with the spatial mean: reduce first, matmul second
    s = jnp.sum(h.reshape(Bt, HW, C), axis=1).astype(jnp.bfloat16)     # (Bt, C)
    y = jnp.dot(s, w2_ref[...], preferred_element_type=jnp.float32)    # (Bt, C6p)
    out = y * (1.0 / HW) + b2_ref[...]
    o_ref[...] = out.reshape(1, Bt, -1).astype(o_ref.dtype)            # lane-dense


def _pick_bt(batch, hw):
    # Fold the batch into M so each matmul has M = Bt*HW ~ 128-256 (fills the
    # 128/256-row MXU); Bt must divide the batch.
    for bt in (4, 2):
        if batch % bt == 0 and bt * hw <= 256:
            return bt
    return 1


@functools.partial(jax.jit, static_argnames=("c6",))
def _pose_decoder_forward(x_nchw, w_sq, b_sq, w0, b0, w1, b1, w2, b2, *, c6):
    B, Cin, H, W = x_nchw.shape
    C = w_sq.shape[1]
    C6p = w2.shape[1]
    HW = H * W
    Bt = _pick_bt(B, HW)
    nb = B // Bt

    x = x_nchw.reshape(B, Cin, HW)       # free reshape of NCHW -- no HBM transpose

    flops = (2 * B * HW * Cin * C                    # squeeze
             + 2 * 2 * B * HW * (3 * C) * (3 * C)    # two fused 3x3 convs
             + 2 * B * C * C6p)                      # pose_2
    bytes_accessed = (B * Cin * HW * 4
                      + (Cin * C + 2 * 9 * C * C + C * C6p) * 2
                      + (3 * C + C6p) * 4
                      + B * C6p * 4)

    out = pl.pallas_call(
        functools.partial(_pose_decoder_kernel, H=H, W=W, Bt=Bt),
        out_shape=jax.ShapeDtypeStruct((nb, Bt, C6p), jnp.float32),
        grid=(nb,),
        in_specs=[
            pl.BlockSpec((Bt, Cin, HW), lambda i: (i, 0, 0)),     # Bt images / step
            pl.BlockSpec((Cin, C), lambda i: (0, 0)),             # weights: constant
            pl.BlockSpec((1, C), lambda i: (0, 0)),               # index_map ->
            pl.BlockSpec((3 * C, 3 * C), lambda i: (0, 0)),       # VMEM-resident
            pl.BlockSpec((1, C), lambda i: (0, 0)),
            pl.BlockSpec((3 * C, 3 * C), lambda i: (0, 0)),
            pl.BlockSpec((1, C), lambda i: (0, 0)),
            pl.BlockSpec((C, C6p), lambda i: (0, 0)),
            pl.BlockSpec((1, C6p), lambda i: (0, 0)),
        ],
        out_specs=pl.BlockSpec((1, Bt, C6p), lambda i: (i, 0, 0)),
        compiler_params=pltpu.CompilerParams(
            dimension_semantics=("parallel",),
            vmem_limit_bytes=32 * 1024 * 1024),
        cost_estimate=pl.CostEstimate(flops=flops, transcendentals=0,
                                      bytes_accessed=bytes_accessed),
    )(x, w_sq, b_sq, w0, b0, w1, b1, w2, b2)
    return out.reshape(B, C6p)[:, :c6]


# ----------------------------------------------------------------------------
# PoseDecoder in JAX/Pallas
# ----------------------------------------------------------------------------
class PoseDecoderPallas:
    def __init__(self, num_ch_enc, num_input_features=1,
                 num_frames_to_predict_for=1, key=None):
        self.num_ch_enc = num_ch_enc
        self.num_input_features = num_input_features
        self.num_frames_to_predict_for = num_frames_to_predict_for
        k = jax.random.PRNGKey(0) if key is None else key
        keys = jax.random.split(k, 8)

        def uinit(kk, shape, fan_in):   # PyTorch-style U(-1/sqrt(fan_in), +..)
            bound = 1.0 / np.sqrt(fan_in)
            return jax.random.uniform(kk, shape, jnp.float32, -bound, bound)

        c_in = int(num_ch_enc[-1])
        C = 256
        c6 = 6 * num_frames_to_predict_for
        c6p = ((c6 + 127) // 128) * 128            # lane-dense padded output width
        self._c6 = c6

        # PyTorch OIHW parameters (f32, kept for the reference check).
        self.params = {
            'squeeze_w': uinit(keys[0], (C, c_in, 1, 1), c_in),
            'squeeze_b': uinit(keys[1], (C,), c_in),
            'pose0_w':  uinit(keys[2], (C, C, 3, 3), C * 9),
            'pose0_b':  uinit(keys[3], (C,), C * 9),
            'pose1_w':  uinit(keys[4], (C, C, 3, 3), C * 9),
            'pose1_b':  uinit(keys[5], (C,), C * 9),
            'pose2_w':  uinit(keys[6], (c6, C, 1, 1), C),
            'pose2_b':  uinit(keys[7], (c6,), C),
        }
        p = self.params

        # One-time weight layout transforms (hoisted out of the forward).
        def prep3x3_fused(w_oihw):
            # OIHW -> (kh, kw, I, O) -> rows (kh, I) x cols (kw, O): (3C, 3C) bf16.
            w = jnp.transpose(w_oihw, (2, 3, 1, 0))
            w = jnp.transpose(w, (0, 2, 1, 3)).reshape(3 * C, 3 * C)
            return w.astype(jnp.bfloat16)

        self._w_sq = jnp.transpose(p['squeeze_w'][:, :, 0, 0]).astype(jnp.bfloat16)
        self._b_sq = p['squeeze_b'].reshape(1, C)
        self._w0 = prep3x3_fused(p['pose0_w'])
        self._b0 = p['pose0_b'].reshape(1, C)
        self._w1 = prep3x3_fused(p['pose1_w'])
        self._b1 = p['pose1_b'].reshape(1, C)
        w2 = jnp.transpose(p['pose2_w'][:, :, 0, 0]).astype(jnp.bfloat16)   # (C, c6)
        self._w2 = jnp.zeros((C, c6p), jnp.bfloat16).at[:, :c6].set(w2)
        self._b2 = jnp.zeros((1, c6p), jnp.float32).at[0, :c6].set(p['pose2_b'])

    def __call__(self, input_features):
        last_features = input_features[-1]                 # NCHW, like PyTorch
        out = _pose_decoder_forward(last_features,
                                    self._w_sq, self._b_sq,
                                    self._w0, self._b0,
                                    self._w1, self._b1,
                                    self._w2, self._b2, c6=self._c6)
        out = out.reshape(-1, self.num_frames_to_predict_for, 1, 6)
        return {('axisangle', 0, 1): out}


# ----------------------------------------------------------------------------
# Pure-JAX f32 reference (PyTorch semantics: NCHW / OIHW)
# ----------------------------------------------------------------------------
def _ref_forward(params, feat_nchw, num_frames):
    def conv(x, w, b, pad):
        y = lax.conv_general_dilated(
            x, w, window_strides=(1, 1), padding=[(pad, pad), (pad, pad)],
            dimension_numbers=('NCHW', 'OIHW', 'NCHW'))
        return y + b.reshape(1, -1, 1, 1)

    x = jax.nn.relu(conv(feat_nchw, params['squeeze_w'], params['squeeze_b'], 0))
    x = jax.nn.relu(conv(x, params['pose0_w'], params['pose0_b'], 1))
    x = jax.nn.relu(conv(x, params['pose1_w'], params['pose1_b'], 1))
    x = conv(x, params['pose2_w'], params['pose2_b'], 0)
    x = x.mean(3).mean(2)
    return x.reshape(-1, num_frames, 1, 6)


if __name__ == "__main__":
    num_ch_enc = [16, 32, 64]          # encoder channels; last one feeds the decoder
    B, H, W = 2, 8, 8
    F = 2                              # num_frames_to_predict_for

    key = jax.random.PRNGKey(0)
    k_feat, k_params = jax.random.split(key)
    last_feature = jax.random.normal(k_feat, (B, num_ch_enc[-1], H, W), jnp.float32)

    decoder = PoseDecoderPallas(num_ch_enc, num_input_features=1,
                                num_frames_to_predict_for=F, key=k_params)

    out = decoder([last_feature])[('axisangle', 0, 1)]
    out = jax.block_until_ready(out)
    assert out.shape == (B, F, 1, 6), out.shape

    ref = jax.block_until_ready(_ref_forward(decoder.params, last_feature, F))
    # bf16 MXU with f32 accumulation vs. f32 reference.
    np.testing.assert_allclose(np.asarray(out), np.asarray(ref),
                               rtol=2e-2, atol=1e-2)

    print("KERNEL_OK")
</pallas_src>

<mosaic_0001>
module attributes {stable_mosaic.version = 11 : i64} {
  func.func @_pose_decoder_kernel(%arg0: i32, %arg1: memref<2x64x64xf32, #tpu.memory_space<vmem>>, %arg2: memref<64x256xbf16, #tpu.memory_space<vmem>>, %arg3: memref<1x256xf32, #tpu.memory_space<vmem>>, %arg4: memref<768x768xbf16, #tpu.memory_space<vmem>>, %arg5: memref<1x256xf32, #tpu.memory_space<vmem>>, %arg6: memref<768x768xbf16, #tpu.memory_space<vmem>>, %arg7: memref<1x256xf32, #tpu.memory_space<vmem>>, %arg8: memref<256x128xbf16, #tpu.memory_space<vmem>>, %arg9: memref<1x128xf32, #tpu.memory_space<vmem>>, %arg10: memref<1x2x128xf32, #tpu.memory_space<vmem>>) attributes {dimension_semantics = [#tpu.dimension_semantics<parallel>], iteration_bounds = array<i64: 1>, scalar_prefetch = 0 : i64, scratch_operands = 0 : i64, tpu.core_type = #tpu.core_type<tc>, window_params = [{transform_indices = @transform_0, window_bounds = array<i64: 2, 64, 64>}, {pipeline_mode = #tpu.pipeline_mode<synchronous>, transform_indices = @transform_1, window_bounds = array<i64: 64, 256>}, {pipeline_mode = #tpu.pipeline_mode<synchronous>, transform_indices = @transform_2, window_bounds = array<i64: 1, 256>}, {pipeline_mode = #tpu.pipeline_mode<synchronous>, transform_indices = @transform_3, window_bounds = array<i64: 768, 768>}, {pipeline_mode = #tpu.pipeline_mode<synchronous>, transform_indices = @transform_4, window_bounds = array<i64: 1, 256>}, {pipeline_mode = #tpu.pipeline_mode<synchronous>, transform_indices = @transform_5, window_bounds = array<i64: 768, 768>}, {pipeline_mode = #tpu.pipeline_mode<synchronous>, transform_indices = @transform_6, window_bounds = array<i64: 1, 256>}, {pipeline_mode = #tpu.pipeline_mode<synchronous>, transform_indices = @transform_7, window_bounds = array<i64: 256, 128>}, {pipeline_mode = #tpu.pipeline_mode<synchronous>, transform_indices = @transform_8, window_bounds = array<i64: 1, 128>}, {transform_indices = @transform_9, window_bounds = array<i64: 1, 2, 128>}]} {
    %c0 = arith.constant 0 : index
    %c0_0 = arith.constant 0 : index
    %c0_1 = arith.constant 0 : index
    %0 = vector.load %arg1[%c0, %c0_0, %c0_1] : memref<2x64x64xf32, #tpu.memory_space<vmem>>, vector<1x64x64xf32>
    %1 = vector.shape_cast %0 : vector<1x64x64xf32> to vector<64x64xf32>
    %2 = tpu.transpose %1, [1, 0] : vector<64x64xf32> -> vector<64x64xf32>
    %c1 = arith.constant 1 : index
    %c0_2 = arith.constant 0 : index
    %c0_3 = arith.constant 0 : index
    %3 = vector.load %arg1[%c1, %c0_2, %c0_3] : memref<2x64x64xf32, #tpu.memory_space<vmem>>, vector<1x64x64xf32>
    %4 = vector.shape_cast %3 : vector<1x64x64xf32> to vector<64x64xf32>
    %5 = tpu.transpose %4, [1, 0] : vector<64x64xf32> -> vector<64x64xf32>
    %6 = tpu.concatenate %2, %5 in 0 : vector<64x64xf32>, vector<64x64xf32> -> vector<128x64xf32>
    %7 = arith.truncf %6 : vector<128x64xf32> to vector<128x64xbf16>
    %c0_4 = arith.constant 0 : index
    %c0_5 = arith.constant 0 : index
    %8 = vector.load %arg2[%c0_4, %c0_5] : memref<64x256xbf16, #tpu.memory_space<vmem>>, vector<64x256xbf16>
    %cst = arith.constant dense<0.000000e+00> : vector<128x256xf32>
    %9 = tpu.matmul %7, %8, %cst {dimension_numbers = #tpu.dot_dimension_numbers<[1], [0], [0], [1], [0, 0, 1, 1], [], []>} : vector<128x64xbf16>, vector<64x256xbf16>, vector<128x256xf32> -> vector<128x256xf32>
    %c0_6 = arith.constant 0 : index
    %c0_7 = arith.constant 0 : index
    %10 = vector.load %arg3[%c0_6, %c0_7] : memref<1x256xf32, #tpu.memory_space<vmem>>, vector<1x256xf32>
    %11 = vector.broadcast %10 : vector<1x256xf32> to vector<128x256xf32>
    %12 = arith.addf %9, %11 : vector<128x256xf32>
    %cst_8 = arith.constant 0.000000e+00 : f32
    %13 = vector.broadcast %cst_8 : f32 to vector<128x256xf32>
    %14 = arith.maximumf %12, %13 : vector<128x256xf32>
    %15 = tpu.iota {dimensions = array<i32: 0>} : vector<8x8x256xi32>
    %16 = vector.shape_cast %15 : vector<8x8x256xi32> to vector<64x256xi32>
    %17 = tpu.iota {dimensions = array<i32: 1>} : vector<8x8x256xi32>
    %18 = vector.shape_cast %17 : vector<8x8x256xi32> to vector<64x256xi32>
    %19 = tpu.concatenate %16, %16 in 0 : vector<64x256xi32>, vector<64x256xi32> -> vector<128x256xi32>
    %20 = tpu.concatenate %18, %18 in 0 : vector<64x256xi32>, vector<64x256xi32> -> vector<128x256xi32>
    %c1_i32 = arith.constant 1 : i32
    %21 = vector.broadcast %c1_i32 : i32 to vector<128x256xi32>
    %22 = arith.cmpi sge, %19, %21 : vector<128x256xi32>
    %c6_i32 = arith.constant 6 : i32
    %23 = vector.broadcast %c6_i32 : i32 to vector<128x256xi32>
    %24 = arith.cmpi sle, %19, %23 : vector<128x256xi32>
    %c1_i32_9 = arith.constant 1 : i32
    %25 = vector.broadcast %c1_i32_9 : i32 to vector<128x256xi32>
    %26 = arith.cmpi sge, %20, %25 : vector<128x256xi32>
    %c6_i32_10 = arith.constant 6 : i32
    %27 = vector.broadcast %c6_i32_10 : i32 to vector<128x256xi32>
    %28 = arith.cmpi sle, %20, %27 : vector<128x256xi32>
    %c8_i32 = arith.constant 8 : i32
    %29 = tpu.dynamic_rotate %14 by %c8_i32 dim 0 : vector<128x256xf32>, i32 -> vector<128x256xf32>
    %cst_11 = arith.constant 0.000000e+00 : f32
    %30 = vector.broadcast %cst_11 : f32 to vector<128x256xf32>
    %31 = arith.select %22, %29, %30 : vector<128x256xi1>, vector<128x256xf32>
    %c120_i32 = arith.constant 120 : i32
    %32 = tpu.dynamic_rotate %14 by %c120_i32 dim 0 : vector<128x256xf32>, i32 -> vector<128x256xf32>
    %cst_12 = arith.constant 0.000000e+00 : f32
    %33 = vector.broadcast %cst_12 : f32 to vector<128x256xf32>
    %34 = arith.select %24, %32, %33 : vector<128x256xi1>, vector<128x256xf32>
    %35 = arith.truncf %31 : vector<128x256xf32> to vector<128x256xbf16>
    %36 = arith.truncf %14 : vector<128x256xf32> to vector<128x256xbf16>
    %37 = arith.truncf %34 : vector<128x256xf32> to vector<128x256xbf16>
    %38 = tpu.concatenate %35, %36, %37 in 1 : vector<128x256xbf16>, vector<128x256xbf16>, vector<128x256xbf16> -> vector<128x768xbf16>
    %c0_13 = arith.constant 0 : index
    %c0_14 = arith.constant 0 : index
    %39 = vector.load %arg4[%c0_13, %c0_14] : memref<768x768xbf16, #tpu.memory_space<vmem>>, vector<768x768xbf16>
    %cst_15 = arith.constant dense<0.000000e+00> : vector<128x768xf32>
    %40 = tpu.matmul %38, %39, %cst_15 {dimension_numbers = #tpu.dot_dimension_numbers<[1], [0], [0], [1], [0, 0, 1, 1], [], []>} : vector<128x768xbf16>, vector<768x768xbf16>, vector<128x768xf32> -> vector<128x768xf32>
    %41 = vector.extract_strided_slice %40 {offsets = [0, 0], sizes = [128, 256], strides = [1, 1]} : vector<128x768xf32> to vector<128x256xf32>
    %42 = vector.extract_strided_slice %40 {offsets = [0, 256], sizes = [128, 256], strides = [1, 1]} : vector<128x768xf32> to vector<128x256xf32>
    %43 = vector.extract_strided_slice %40 {offsets = [0, 512], sizes = [128, 256], strides = [1, 1]} : vector<128x768xf32> to vector<128x256xf32>
    %c1_i32_16 = arith.constant 1 : i32
    %44 = tpu.dynamic_rotate %41 by %c1_i32_16 dim 0 : vector<128x256xf32>, i32 -> vector<128x256xf32>
    %cst_17 = arith.constant 0.000000e+00 : f32
    %45 = vector.broadcast %cst_17 : f32 to vector<128x256xf32>
    %46 = arith.select %26, %44, %45 : vector<128x256xi1>, vector<128x256xf32>
    %47 = arith.addf %42, %46 : vector<128x256xf32>
    %c127_i32 = arith.constant 127 : i32
    %48 = tpu.dynamic_rotate %43 by %c127_i32 dim 0 : vector<128x256xf32>, i32 -> vector<128x256xf32>
    %cst_18 = arith.constant 0.000000e+00 : f32
    %49 = vector.broadcast %cst_18 : f32 to vector<128x256xf32>
    %50 = arith.select %28, %48, %49 : vector<128x256xi1>, vector<128x256xf32>
    %51 = arith.addf %47, %50 : vector<128x256xf32>
    %c0_19 = arith.constant 0 : index
    %c0_20 = arith.constant 0 : index
    %52 = vector.load %arg5[%c0_19, %c0_20] : memref<1x256xf32, #tpu.memory_space<vmem>>, vector<1x256xf32>
    %53 = vector.broadcast %52 : vector<1x256xf32> to vector<128x256xf32>
    %54 = arith.addf %51, %53 : vector<128x256xf32>
    %cst_21 = arith.constant 0.000000e+00 : f32
    %55 = vector.broadcast %cst_21 : f32 to vector<128x256xf32>
    %56 = arith.maximumf %54, %55 : vector<128x256xf32>
    %c8_i32_22 = arith.constant 8 : i32
    %57 = tpu.dynamic_rotate %56 by %c8_i32_22 dim 0 : vector<128x256xf32>, i32 -> vector<128x256xf32>
    %cst_23 = arith.constant 0.000000e+00 : f32
    %58 = vector.broadcast %cst_23 : f32 to vector<128x256xf32>
    %59 = arith.select %22, %57, %58 : vector<128x256xi1>, vector<128x256xf32>
    %c120_i32_24 = arith.constant 120 : i32
    %60 = tpu.dynamic_rotate %56 by %c120_i32_24 dim 0 : vector<128x256xf32>, i32 -> vector<128x256xf32>
    %cst_25 = arith.constant 0.000000e+00 : f32
    %61 = vector.broadcast %cst_25 : f32 to vector<128x256xf32>
    %62 = arith.select %24, %60, %61 : vector<128x256xi1>, vector<128x256xf32>
    %63 = arith.truncf %59 : vector<128x256xf32> to vector<128x256xbf16>
    %64 = arith.truncf %56 : vector<128x256xf32> to vector<128x256xbf16>
    %65 = arith.truncf %62 : vector<128x256xf32> to vector<128x256xbf16>
    %66 = tpu.concatenate %63, %64, %65 in 1 : vector<128x256xbf16>, vector<128x256xbf16>, vector<128x256xbf16> -> vector<128x768xbf16>
    %c0_26 = arith.constant 0 : index
    %c0_27 = arith.constant 0 : index
    %67 = vector.load %arg6[%c0_26, %c0_27] : memref<768x768xbf16, #tpu.memory_space<vmem>>, vector<768x768xbf16>
    %cst_28 = arith.constant dense<0.000000e+00> : vector<128x768xf32>
    %68 = tpu.matmul %66, %67, %cst_28 {dimension_numbers = #tpu.dot_dimension_numbers<[1], [0], [0], [1], [0, 0, 1, 1], [], []>} : vector<128x768xbf16>, vector<768x768xbf16>, vector<128x768xf32> -> vector<128x768xf32>
    %69 = vector.extract_strided_slice %68 {offsets = [0, 0], sizes = [128, 256], strides = [1, 1]} : vector<128x768xf32> to vector<128x256xf32>
    %70 = vector.extract_strided_slice %68 {offsets = [0, 256], sizes = [128, 256], strides = [1, 1]} : vector<128x768xf32> to vector<128x256xf32>
    %71 = vector.extract_strided_slice %68 {offsets = [0, 512], sizes = [128, 256], strides = [1, 1]} : vector<128x768xf32> to vector<128x256xf32>
    %c1_i32_29 = arith.constant 1 : i32
    %72 = tpu.dynamic_rotate %69 by %c1_i32_29 dim 0 : vector<128x256xf32>, i32 -> vector<128x256xf32>
    %cst_30 = arith.constant 0.000000e+00 : f32
    %73 = vector.broadcast %cst_30 : f32 to vector<128x256xf32>
    %74 = arith.select %26, %72, %73 : vector<128x256xi1>, vector<128x256xf32>
    %75 = arith.addf %70, %74 : vector<128x256xf32>
    %c127_i32_31 = arith.constant 127 : i32
    %76 = tpu.dynamic_rotate %71 by %c127_i32_31 dim 0 : vector<128x256xf32>, i32 -> vector<128x256xf32>
    %cst_32 = arith.constant 0.000000e+00 : f32
    %77 = vector.broadcast %cst_32 : f32 to vector<128x256xf32>
    %78 = arith.select %28, %76, %77 : vector<128x256xi1>, vector<128x256xf32>
    %79 = arith.addf %75, %78 : vector<128x256xf32>
    %c0_33 = arith.constant 0 : index
    %c0_34 = arith.constant 0 : index
    %80 = vector.load %arg7[%c0_33, %c0_34] : memref<1x256xf32, #tpu.memory_space<vmem>>, vector<1x256xf32>
    %81 = vector.broadcast %80 : vector<1x256xf32> to vector<128x256xf32>
    %82 = arith.addf %79, %81 : vector<128x256xf32>
    %cst_35 = arith.constant 0.000000e+00 : f32
    %83 = vector.broadcast %cst_35 : f32 to vector<128x256xf32>
    %84 = arith.maximumf %82, %83 : vector<128x256xf32>
    %85 = vector.shape_cast %84 : vector<128x256xf32> to vector<2x64x256xf32>
    %cst_36 = arith.constant dense<0.000000e+00> : vector<2x256xf32>
    %86 = vector.multi_reduction <add>, %85, %cst_36 [1] : vector<2x64x256xf32> to vector<2x256xf32>
    %87 = arith.truncf %86 : vector<2x256xf32> to vector<2x256xbf16>
    %c0_37 = arith.constant 0 : index
    %c0_38 = arith.constant 0 : index
    %88 = vector.load %arg8[%c0_37, %c0_38] : memref<256x128xbf16, #tpu.memory_space<vmem>>, vector<256x128xbf16>
    %cst_39 = arith.constant dense<0.000000e+00> : vector<2x128xf32>
    %89 = tpu.matmul %87, %88, %cst_39 {dimension_numbers = #tpu.dot_dimension_numbers<[1], [0], [0], [1], [0, 0, 1, 1], [], []>} : vector<2x256xbf16>, vector<256x128xbf16>, vector<2x128xf32> -> vector<2x128xf32>
    %cst_40 = arith.constant 1.562500e-02 : f32
    %90 = vector.broadcast %cst_40 : f32 to vector<2x128xf32>
    %91 = arith.mulf %89, %90 : vector<2x128xf32>
    %c0_41 = arith.constant 0 : index
    %c0_42 = arith.constant 0 : index
    %92 = vector.load %arg9[%c0_41, %c0_42] : memref<1x128xf32, #tpu.memory_space<vmem>>, vector<1x128xf32>
    %93 = vector.broadcast %92 : vector<1x128xf32> to vector<2x128xf32>
    %94 = arith.addf %91, %93 : vector<2x128xf32>
    %95 = vector.shape_cast %94 : vector<2x128xf32> to vector<1x2x128xf32>
    %c0_43 = arith.constant 0 : index
    %c0_44 = arith.constant 0 : index
    %c0_45 = arith.constant 0 : index
    %96 = vector.load %arg10[%c0_43, %c0_44, %c0_45] : memref<1x2x128xf32, #tpu.memory_space<vmem>>, vector<1x2x128xf32>
    tpu.vector_store %arg10[%c0_43, %c0_44, %c0_45], %95 {strides = array<i32>} : memref<1x2x128xf32, #tpu.memory_space<vmem>>, vector<1x2x128xf32>,
    return
  }
  func.func @transform_0(%arg0: i32) -> (i32, i32, i32) {
    %c0_i32 = arith.constant 0 : i32
    %c0_i32_0 = arith.constant 0 : i32
    %c0_i32_1 = arith.constant 0 : i32
    return %arg0, %c0_i32, %c0_i32_0 : i32, i32, i32
  }
  func.func @transform_1(%arg0: i32) -> (i32, i32) {
    %c0_i32 = arith.constant 0 : i32
    %c0_i32_0 = arith.constant 0 : i32
    %c0_i32_1 = arith.constant 0 : i32
    return %c0_i32, %c0_i32_0 : i32, i32
  }
  func.func @transform_2(%arg0: i32) -> (i32, i32) {
    %c0_i32 = arith.constant 0 : i32
    %c0_i32_0 = arith.constant 0 : i32
    %c0_i32_1 = arith.constant 0 : i32
    return %c0_i32, %c0_i32_0 : i32, i32
  }
  func.func @transform_3(%arg0: i32) -> (i32, i32) {
    %c0_i32 = arith.constant 0 : i32
    %c0_i32_0 = arith.constant 0 : i32
    %c0_i32_1 = arith.constant 0 : i32
    return %c0_i32, %c0_i32_0 : i32, i32
  }
  func.func @transform_4(%arg0: i32) -> (i32, i32) {
    %c0_i32 = arith.constant 0 : i32
    %c0_i32_0 = arith.constant 0 : i32
    %c0_i32_1 = arith.constant 0 : i32
    return %c0_i32, %c0_i32_0 : i32, i32
  }
  func.func @transform_5(%arg0: i32) -> (i32, i32) {
    %c0_i32 = arith.constant 0 : i32
    %c0_i32_0 = arith.constant 0 : i32
    %c0_i32_1 = arith.constant 0 : i32
    return %c0_i32, %c0_i32_0 : i32, i32
  }
  func.func @transform_6(%arg0: i32) -> (i32, i32) {
    %c0_i32 = arith.constant 0 : i32
    %c0_i32_0 = arith.constant 0 : i32
    %c0_i32_1 = arith.constant 0 : i32
    return %c0_i32, %c0_i32_0 : i32, i32
  }
  func.func @transform_7(%arg0: i32) -> (i32, i32) {
    %c0_i32 = arith.constant 0 : i32
    %c0_i32_0 = arith.constant 0 : i32
    %c0_i32_1 = arith.constant 0 : i32
    return %c0_i32, %c0_i32_0 : i32, i32
  }
  func.func @transform_8(%arg0: i32) -> (i32, i32) {
    %c0_i32 = arith.constant 0 : i32
    %c0_i32_0 = arith.constant 0 : i32
    %c0_i32_1 = arith.constant 0 : i32
    return %c0_i32, %c0_i32_0 : i32, i32
  }
  func.func @transform_9(%arg0: i32) -> (i32, i32, i32) {
    %c0_i32 = arith.constant 0 : i32
    %c0_i32_0 = arith.constant 0 : i32
    %c0_i32_1 = arith.constant 0 : i32
    return %arg0, %c0_i32, %c0_i32_0 : i32, i32, i32
  }
}

</mosaic_0001>

<llo_original>
// kernel: _pose_decoder_forward.1
$region0: #{_pose_decoder_forward.1}
  #allocation0 [shape = 'u32[]', space=smem, size = 0x4, offset = 0x4, fixed_abs, tag = 'smem constant byte address 0x4 - core index']
  #allocation1 [shape = 'u32[144,128]{1,0:T(1,128)}', space=vmem, size = 0x12000, scoped, tag = 'internal scratch']
  %s0 = inlined_call_operand.vmem [shape: f32[2,64,64], index: 0, kind: input, shape index: {}]
  %s1 = inlined_call_operand.hbm [shape: bf16[64,256], index: 1, kind: input, shape index: {}]
  %s2 = inlined_call_operand.hbm [shape: f32[1,256], index: 2, kind: input, shape index: {}]
  %s3 = inlined_call_operand.hbm [shape: bf16[768,768], index: 3, kind: input, shape index: {}]
  %s4 = inlined_call_operand.hbm [shape: f32[1,256], index: 4, kind: input, shape index: {}]
  %s5 = inlined_call_operand.hbm [shape: bf16[768,768], index: 5, kind: input, shape index: {}]
  %s6 = inlined_call_operand.hbm [shape: f32[1,256], index: 6, kind: input, shape index: {}]
  %s7 = inlined_call_operand.hbm [shape: bf16[256,128], index: 7, kind: input, shape index: {}]
  %s8 = inlined_call_operand.hbm [shape: f32[1,128], index: 8, kind: input, shape index: {}]
  %s9 = inlined_call_operand.hbm [shape: f32[1,2,128], index: 9, kind: output, shape index: {}]
  %s10 = sld [smem:[#allocation0]]
  $region78: #{_pose_decoder_forward.1} parent=0
    _
  %s12 = ssub.s32 1, %s10
  %s13 = scalar_select 0, %s12, %s10
  $region1: #{_pose_decoder_forward.1} parent=0
    #allocation2 [shape = 'u8[32768]{0}', space=vmem, size = 0x8000, scoped, tag = 'input window, operand 1, single buffered']
    #allocation3 [shape = 's32[1]{0}', space=sflag, size = 0x4, scoped, tag = 'scoped memory for _pose_decoder_forward.1']
    #allocation4 [shape = 's32[1]{0}', space=sflag, size = 0x4, scoped, tag = 'scoped memory for _pose_decoder_forward.1']
    #allocation5 [shape = 'u8[1024]{0}', space=vmem, size = 0x400, scoped, tag = 'input window, operand 2, single buffered']
    #allocation6 [shape = 's32[1]{0}', space=sflag, size = 0x4, scoped, tag = 'scoped memory for _pose_decoder_forward.1']
    #allocation7 [shape = 'u8[1179648]{0}', space=vmem, size = 0x120000, scoped, tag = 'input window, operand 3, single buffered']
    #allocation8 [shape = 'u8[1024]{0}', space=vmem, size = 0x400, scoped, tag = 'input window, operand 4, single buffered']
    #allocation9 [shape = 's32[1]{0}', space=sflag, size = 0x4, scoped, tag = 'scoped memory for _pose_decoder_forward.1']
    #allocation10 [shape = 'u8[1179648]{0}', space=vmem, size = 0x120000, scoped, tag = 'input window, operand 5, single buffered']
    #allocation11 [shape = 'u8[1024]{0}', space=vmem, size = 0x400, scoped, tag = 'input window, operand 6, single buffered']
    #allocation12 [shape = 's32[1]{0}', space=sflag, size = 0x4, scoped, tag = 'scoped memory for _pose_decoder_forward.1']
    #allocation13 [shape = 'u8[65536]{0}', space=vmem, size = 0x10000, scoped, tag = 'input window, operand 7, single buffered']
    #allocation14 [shape = 'u8[512]{0}', space=vmem, size = 0x400, scoped, tag = 'input window, operand 8, single buffered']
    #allocation15 [shape = 's32[1]{0}', space=sflag, size = 0x4, scoped, tag = 'scoped memory for _pose_decoder_forward.1']
    #allocation16 [shape = 'u8[1024]{0}', space=vmem, size = 0x400, scoped, tag = 'output window, operand 0, single buffered']
    %14 = vsyncpa [#allocation3], 0
    %15 = vsyncpa [#allocation6], 0
    %16 = vsyncpa [#allocation9], 0
    %17 = vsyncpa [#allocation12], 0
    %18 = vsyncpa [#allocation15], 0
    %19 = vsyncpa [#allocation4], 0
    // Predicated region
    $region2: #{_pose_decoder_forward.1} parent=1 // pred_check
      _
    $region3: #{_pose_decoder_forward.1} parent=1 // pred_check_branch
      %21 = sbr.rel (0) target = $region5
    $region4: #{_pose_decoder_forward.1} parent=1 // pred_region
      _
    $region5: #{_pose_decoder_forward.1} parent=1 // pred_fallthru
      _
    // Predicated region
    $region6: #{_pose_decoder_forward.1} parent=1 // pred_check
      _
    $region7: #{_pose_decoder_forward.1} parent=1 // pred_check_branch
      %23 = sbr.rel (0) target = $region9
    $region8: #{_pose_decoder_forward.1} parent=1 // pred_region
      %s25 = ssub.s32 1024, 1024
      %26 = vsyncadd [#allocation3], %s25
      %s27 = sshll.u32 [#allocation2], 4
      %s28 = int_to_ptr.vmem [resolvable:$true] %s27
      %33 = dma.hbm_to_vmem [thread:$0]  %s1, 1024, %s28, [#allocation3], 128, 128, 8
    $region9: #{_pose_decoder_forward.1} parent=1 // pred_fallthru
      _
    // Predicated region
    $region10: #{_pose_decoder_forward.1} parent=1 // pred_check
      _
    $region11: #{_pose_decoder_forward.1} parent=1 // pred_check_branch
      %35 = sbr.rel (0) target = $region13
    $region12: #{_pose_decoder_forward.1} parent=1 // pred_region
      %s37 = ssub.s32 32, 32
      %38 = vsyncadd [#allocation6], %s37
      %s40 = sshll.u32 [#allocation5], 4
      %s41 = int_to_ptr.vmem [resolvable:$true] %s40
      %43 = dma.hbm_to_vmem [thread:$0]  %s2, 32, %s41, [#allocation6]
    $region13: #{_pose_decoder_forward.1} parent=1 // pred_fallthru
      _
    // Predicated region
    $region14: #{_pose_decoder_forward.1} parent=1 // pred_check
      _
    $region15: #{_pose_decoder_forward.1} parent=1 // pred_check_branch
      %45 = sbr.rel (0) target = $region17
    $region16: #{_pose_decoder_forward.1} parent=1 // pred_region
      %s47 = ssub.s32 36864, 36864
      %48 = vsyncadd [#allocation6], %s47
      %s49 = sshll.u32 [#allocation7], 4
      %s50 = int_to_ptr.vmem [resolvable:$true] %s49
      %55 = dma.hbm_to_vmem [thread:$0]  %s3, 36864, %s50, [#allocation6], 384, 384, 24
    $region17: #{_pose_decoder_forward.1} parent=1 // pred_fallthru
      _
    // Predicated region
    $region18: #{_pose_decoder_forward.1} parent=1 // pred_check
      _
    $region19: #{_pose_decoder_forward.1} parent=1 // pred_check_branch
      %57 = sbr.rel (0) target = $region21
    $region20: #{_pose_decoder_forward.1} parent=1 // pred_region
      %s59 = ssub.s32 32, 32
      %60 = vsyncadd [#allocation9], %s59
      %s62 = sshll.u32 [#allocation8], 4
      %s63 = int_to_ptr.vmem [resolvable:$true] %s62
      %65 = dma.hbm_to_vmem [thread:$0]  %s4, 32, %s63, [#allocation9]
    $region21: #{_pose_decoder_forward.1} parent=1 // pred_fallthru
      _
    // Predicated region
    $region22: #{_pose_decoder_forward.1} parent=1 // pred_check
      _
    $region23: #{_pose_decoder_forward.1} parent=1 // pred_check_branch
      %67 = sbr.rel (0) target = $region25
    $region24: #{_pose_decoder_forward.1} parent=1 // pred_region
      %s69 = ssub.s32 36864, 36864
      %70 = vsyncadd [#allocation9], %s69
      %s71 = sshll.u32 [#allocation10], 4
      %s72 = int_to_ptr.vmem [resolvable:$true] %s71
      %77 = dma.hbm_to_vmem [thread:$0]  %s5, 36864, %s72, [#allocation9], 384, 384, 24
    $region25: #{_pose_decoder_forward.1} parent=1 // pred_fallthru
      _
    // Predicated region
    $region26: #{_pose_decoder_forward.1} parent=1 // pred_check
      _
    $region27: #{_pose_decoder_forward.1} parent=1 // pred_check_branch
      %79 = sbr.rel (0) target = $region29
    $region28: #{_pose_decoder_forward.1} parent=1 // pred_region
      %s81 = ssub.s32 32, 32
      %82 = vsyncadd [#allocation12], %s81
      %s84 = sshll.u32 [#allocation11], 4
      %s85 = int_to_ptr.vmem [resolvable:$true] %s84
      %87 = dma.hbm_to_vmem [thread:$0]  %s6, 32, %s85, [#allocation12]
    $region29: #{_pose_decoder_forward.1} parent=1 // pred_fallthru
      _
    // Predicated region
    $region30: #{_pose_decoder_forward.1} parent=1 // pred_check
      _
    $region31: #{_pose_decoder_forward.1} parent=1 // pred_check_branch
      %89 = sbr.rel (0) target = $region33
    $region32: #{_pose_decoder_forward.1} parent=1 // pred_region
      %s91 = ssub.s32 2048, 2048
      %92 = vsyncadd [#allocation12], %s91
      %s93 = sshll.u32 [#allocation13], 4
      %s94 = int_to_ptr.vmem [resolvable:$true] %s93
      %99 = dma.hbm_to_vmem [thread:$0]  %s7, 2048, %s94, [#allocation12], 64, 64, 4
    $region33: #{_pose_decoder_forward.1} parent=1 // pred_fallthru
      _
    // Predicated region
    $region34: #{_pose_decoder_forward.1} parent=1 // pred_check
      _
    $region35: #{_pose_decoder_forward.1} parent=1 // pred_check_branch
      %101 = sbr.rel (0) target = $region37
    $region36: #{_pose_decoder_forward.1} parent=1 // pred_region
      %s103 = ssub.s32 16, 16
      %104 = vsyncadd [#allocation15], %s103
      %s106 = sshll.u32 [#allocation14], 4
      %s107 = int_to_ptr.vmem [resolvable:$true] %s106
      %109 = dma.hbm_to_vmem [thread:$0]  %s8, 16, %s107, [#allocation15]
    $region37: #{_pose_decoder_forward.1} parent=1 // pred_fallthru
      _
    // Predicated region
    $region38: #{_pose_decoder_forward.1} parent=1 // pred_check
      _
    $region39: #{_pose_decoder_forward.1} parent=1 // pred_check_branch
      %111 = sbr.rel (0) target = $region41
    $region40: #{_pose_decoder_forward.1} parent=1 // pred_region
      %112 = dma.done [#allocation3], 1024
    $region41: #{_pose_decoder_forward.1} parent=1 // pred_fallthru
      _
    // Predicated region
    $region42: #{_pose_decoder_forward.1} parent=1 // pred_check
      _
    $region43: #{_pose_decoder_forward.1} parent=1 // pred_check_branch
      %114 = sbr.rel (0) target = $region45
    $region44: #{_pose_decoder_forward.1} parent=1 // pred_region
      %115 = dma.done [#allocation6], 32
    $region45: #{_pose_decoder_forward.1} parent=1 // pred_fallthru
      _
    // Predicated region
    $region46: #{_pose_decoder_forward.1} parent=1 // pred_check
      _
    $region47: #{_pose_decoder_forward.1} parent=1 // pred_check_branch
      %117 = sbr.rel (0) target = $region49
    $region48: #{_pose_decoder_forward.1} parent=1 // pred_region
      %118 = dma.done [#allocation6], 36864
    $region49: #{_pose_decoder_forward.1} parent=1 // pred_fallthru
      _
    // Predicated region
    $region50: #{_pose_decoder_forward.1} parent=1 // pred_check
      _
    $region51: #{_pose_decoder_forward.1} parent=1 // pred_check_branch
      %120 = sbr.rel (0) target = $region53
    $region52: #{_pose_decoder_forward.1} parent=1 // pred_region
      %121 = dma.done [#allocation9], 32
    $region53: #{_pose_decoder_forward.1} parent=1 // pred_fallthru
      _
    // Predicated region
    $region54: #{_pose_decoder_forward.1} parent=1 // pred_check
      _
    $region55: #{_pose_decoder_forward.1} parent=1 // pred_check_branch
      %123 = sbr.rel (0) target = $region57
    $region56: #{_pose_decoder_forward.1} parent=1 // pred_region
      %124 = dma.done [#allocation9], 36864
    $region57: #{_pose_decoder_forward.1} parent=1 // pred_fallthru
      _
    // Predicated region
    $region58: #{_pose_decoder_forward.1} parent=1 // pred_check
      _
    $region59: #{_pose_decoder_forward.1} parent=1 // pred_check_branch
      %126 = sbr.rel (0) target = $region61
    $region60: #{_pose_decoder_forward.1} parent=1 // pred_region
      %127 = dma.done [#allocation12], 32
    $region61: #{_pose_decoder_forward.1} parent=1 // pred_fallthru
      _
    // Predicated region
    $region62: #{_pose_decoder_forward.1} parent=1 // pred_check
      _
    $region63: #{_pose_decoder_forward.1} parent=1 // pred_check_branch
      %129 = sbr.rel (0) target = $region65
    $region64: #{_pose_decoder_forward.1} parent=1 // pred_region
      %130 = dma.done [#allocation12], 2048
    $region65: #{_pose_decoder_forward.1} parent=1 // pred_fallthru
      _
    // Predicated region
    $region66: #{_pose_decoder_forward.1} parent=1 // pred_check
      _
    $region67: #{_pose_decoder_forward.1} parent=1 // pred_check_branch
      %132 = sbr.rel (0) target = $region69
    $region68: #{_pose_decoder_forward.1} parent=1 // pred_region
      %133 = dma.done [#allocation15], 16
    $region69: #{_pose_decoder_forward.1} parent=1 // pred_fallthru
      _
    %v135 = vld [vmem:[%s0] sm:$0xff]
    %v136 = vld [vmem:[%s0 + $0x8] sm:$0xff]
    %v137 = vld [vmem:[%s0 + $0x10] sm:$0xff]
    %v138 = vld [vmem:[%s0 + $0x18] sm:$0xff]
    %v139 = vld [vmem:[%s0 + $0x20] sm:$0xff]
    %v140 = vld [vmem:[%s0 + $0x28] sm:$0xff]
    %v141 = vld [vmem:[%s0 + $0x30] sm:$0xff]
    %v142 = vld [vmem:[%s0 + $0x38] sm:$0xff]
    %143 = vxpose.xlu0.b32.start [1/16] %v135, 128
    %144 = vxpose.xlu0.b32.cont [2/16] %v136, 128
    %145 = vxpose.xlu0.b32.cont [3/16] %v137, 128
    %146 = vxpose.xlu0.b32.cont [4/16] %v138, 128
    %147 = vxpose.xlu0.b32.cont [5/16] %v139, 128
    %148 = vxpose.xlu0.b32.cont [6/16] %v140, 128
    %149 = vxpose.xlu0.b32.cont [7/16] %v141, 128
    %150 = vxpose.xlu0.b32.cont [8/16] %v142, 128
    %151 = vxpose.xlu0.b32.cont [9/16] 0.0, 128
    %152 = vxpose.xlu0.b32.cont [10/16] 0.0, 128
    %153 = vxpose.xlu0.b32.cont [11/16] 0.0, 128
    %154 = vxpose.xlu0.b32.cont [12/16] 0.0, 128
    %155 = vxpose.xlu0.b32.cont [13/16] 0.0, 128
    %156 = vxpose.xlu0.b32.cont [14/16] 0.0, 128
    %157 = vxpose.xlu0.b32.cont [15/16] 0.0, 128
    %158 = vxpose.xlu0.b32.end [16/16] 0.0, 128
    %v159 = vpop.trf.xlu0
    %v160 = vpop.trf.xlu0
    %v161 = vpop.trf.xlu0
    %v162 = vpop.trf.xlu0
    %v163 = vpop.trf.xlu0
    %v164 = vpop.trf.xlu0
    %v165 = vpop.trf.xlu0
    %v166 = vpop.trf.xlu0
    %v167 = vpop.trf.xlu0
    %v168 = vpop.trf.xlu0
    %v169 = vpop.trf.xlu0
    %v170 = vpop.trf.xlu0
    %v171 = vpop.trf.xlu0
    %v172 = vpop.trf.xlu0
    %v173 = vpop.trf.xlu0
    %v174 = vpop.trf.xlu0
    %s175 = scalar_lea.vmem %s0, 64
    %v176 = vld [vmem:[%s175] sm:$0xff]
    %v177 = vld [vmem:[%s175 + $0x8] sm:$0xff]
    %v178 = vld [vmem:[%s175 + $0x10] sm:$0xff]
    %v179 = vld [vmem:[%s175 + $0x18] sm:$0xff]
    %v180 = vld [vmem:[%s175 + $0x20] sm:$0xff]
    %v181 = vld [vmem:[%s175 + $0x28] sm:$0xff]
    %v182 = vld [vmem:[%s175 + $0x30] sm:$0xff]
    %v183 = vld [vmem:[%s175 + $0x38] sm:$0xff]
    %184 = vxpose.xlu0.b32.start [1/16] %v176, 128
    %185 = vxpose.xlu0.b32.cont [2/16] %v177, 128
    %186 = vxpose.xlu0.b32.cont [3/16] %v178, 128
    %187 = vxpose.xlu0.b32.cont [4/16] %v179, 128
    %188 = vxpose.xlu0.b32.cont [5/16] %v180, 128
    %189 = vxpose.xlu0.b32.cont [6/16] %v181, 128
    %190 = vxpose.xlu0.b32.cont [7/16] %v182, 128
    %191 = vxpose.xlu0.b32.cont [8/16] %v183, 128
    %192 = vxpose.xlu0.b32.cont [9/16] 0.0, 128
    %193 = vxpose.xlu0.b32.cont [10/16] 0.0, 128
    %194 = vxpose.xlu0.b32.cont [11/16] 0.0, 128
    %195 = vxpose.xlu0.b32.cont [12/16] 0.0, 128
    %196 = vxpose.xlu0.b32.cont [13/16] 0.0, 128
    %197 = vxpose.xlu0.b32.cont [14/16] 0.0, 128
    %198 = vxpose.xlu0.b32.cont [15/16] 0.0, 128
    %199 = vxpose.xlu0.b32.end [16/16] 0.0, 128
    %v200 = vpop.trf.xlu0
    %v201 = vpop.trf.xlu0
    %v202 = vpop.trf.xlu0
    %v203 = vpop.trf.xlu0
    %v204 = vpop.trf.xlu0
    %v205 = vpop.trf.xlu0
    %v206 = vpop.trf.xlu0
    %v207 = vpop.trf.xlu0
    %v208 = vpop.trf.xlu0
    %v209 = vpop.trf.xlu0
    %v210 = vpop.trf.xlu0
    %v211 = vpop.trf.xlu0
    %v212 = vpop.trf.xlu0
    %v213 = vpop.trf.xlu0
    %v214 = vpop.trf.xlu0
    %v215 = vpop.trf.xlu0
    %v216 = vpack.c.bf16 %v160, %v159
    %v217 = vpack.c.bf16 %v162, %v161
    %v218 = vpack.c.bf16 %v164, %v163
    %v219 = vpack.c.bf16 %v166, %v165
    %v220 = vpack.c.bf16 %v201, %v200
    %v221 = vpack.c.bf16 %v203, %v202
    %v222 = vpack.c.bf16 %v205, %v204
    %v223 = vpack.c.bf16 %v207, %v206
    %v224 = vld [vmem:[#allocation2] sm:$0xff]
    %v225 = vld [vmem:[#allocation2 + $0x8] sm:$0xff]
    %v226 = vld [vmem:[#allocation2 + $0x10] sm:$0xff]
    %v227 = vld [vmem:[#allocation2 + $0x18] sm:$0xff]
    %v228 = vld [vmem:[#allocation2 + $0x20] sm:$0xff]
    %v229 = vld [vmem:[#allocation2 + $0x28] sm:$0xff]
    %v230 = vld [vmem:[#allocation2 + $0x30] sm:$0xff]
    %v231 = vld [vmem:[#allocation2 + $0x38] sm:$0xff]
    %v232 = vld [vmem:[#allocation5] sm:$0x3]
    %v234 = vlaneseq
    %v235 = vshrl.u32 %v234, 7
    %v236 = vsub.s32 0, %v235
    %v237 = vrot.slane %v232, %v236
    %v238 = vlaneseq
    %v239 = vshrl.u32 %v238, 7
    %v240 = vsub.s32 1, %v239
    %v241 = vrot.slane %v232, %v240
    %v252 = vunpack.c.l.b16 %v224
    %v253 = vunpack.c.h.b16 %v224
    %v254 = vunpack.c.l.b16 %v225
    %v255 = vunpack.c.h.b16 %v225
    %v256 = vunpack.c.l.b16 %v226
    %v257 = vunpack.c.h.b16 %v226
    %v258 = vunpack.c.l.b16 %v227
    %v259 = vunpack.c.h.b16 %v227
    %v260 = vunpack.c.l.b16 %v228
    %v261 = vunpack.c.h.b16 %v228
    %v262 = vunpack.c.l.b16 %v229
    %v263 = vunpack.c.h.b16 %v229
    %v264 = vunpack.c.l.b16 %v230
    %v265 = vunpack.c.h.b16 %v230
    %v266 = vunpack.c.l.b16 %v231
    %v267 = vunpack.c.h.b16 %v231
    %v268 = vpack.c.b16 %v254, %v252
    %v269 = vpack.c.b16 %v255, %v253
    %v270 = vpack.c.b16 %v258, %v256
    %v271 = vpack.c.b16 %v259, %v257
    %v272 = vpack.c.b16 %v262, %v260
    %v273 = vpack.c.b16 %v263, %v261
    %v274 = vpack.c.b16 %v266, %v264
    %v275 = vpack.c.b16 %v267, %v265
    %vm284 = vcmask 523264
    %v286 = vsel %vm284, %v216, 0
    %v289 = vsel %vm284, %v217, 0
    %v292 = vsel %vm284, %v218, 0
    %v295 = vsel %vm284, %v219, 0
    %v298 = vsel %vm284, %v220, 0
    %v301 = vsel %vm284, %v221, 0
    %v304 = vsel %vm284, %v222, 0
    %v307 = vsel %vm284, %v223, 0
    %309 = vmatprep.subr.bf16.mxu0 %v269
    %310 = vmatpush1.bf16.msra.mxu0 %v268
    %311 = vmatprep.subr.bf16.mxu0 %v271
    %312 = vmatpush1.bf16.msra.mxu0 %v270
    %313 = vmatprep.subr.bf16.mxu0 %v273
    %314 = vmatpush1.bf16.msra.mxu0 %v272
    %315 = vmatprep.subr.bf16.mxu0 %v275
    %316 = vmatpush1.bf16.msra.mxu0 %v274
    %317 = vmatprep.subr.bf16.mxu0 0
    %318 = vmatpush1.bf16.msra.mxu0 0
    %319 = vmatprep.subr.bf16.mxu0 0
    %320 = vmatpush1.bf16.msra.mxu0 0
    %321 = vmatprep.subr.bf16.mxu0 0
    %322 = vmatpush1.bf16.msra.mxu0 0
    %323 = vmatprep.subr.bf16.mxu0 0
    %324 = vmatpush1.bf16.msra.mxu0 0
    %325 = vmatprep.subr.bf16.mxu0 0
    %326 = vmatpush1.bf16.msra.mxu0 0
    %327 = vmatprep.subr.bf16.mxu0 0
    %328 = vmatpush1.bf16.msra.mxu0 0
    %329 = vmatprep.subr.bf16.mxu0 0
    %330 = vmatpush1.bf16.msra.mxu0 0
    %331 = vmatprep.subr.bf16.mxu0 0
    %332 = vmatpush1.bf16.msra.mxu0 0
    %333 = vmatprep.subr.bf16.mxu0 0
    %334 = vmatpush1.bf16.msra.mxu0 0
    %335 = vmatprep.subr.bf16.mxu0 0
    %336 = vmatpush1.bf16.msra.mxu0 0
    %337 = vmatprep.subr.bf16.mxu0 0
    %338 = vmatpush1.bf16.msra.mxu0 0
    %339 = vmatprep.subr.bf16.mxu0 0
    %340 = vmatpush1.bf16.msra.mxu0 0
    %341 = vmatprep.mubr.bf16.mxu0 0
    %342 = vmatmul.mubr.bf16.gmra.mrb[0].mxu0 %v286
    %v343 = vpop.f32.mrb[0].mxu0
    %v344 = vadd.f32 %v237, %v343
    %v345 = vpop.f32.mrb[0].mxu0
    %v346 = vadd.f32 %v241, %v345
    %v347 = vpop.f32.mrb[0].mxu0
    %v348 = vadd.f32 %v237, %v347
    %v349 = vpop.f32.mrb[0].mxu0
    %v350 = vadd.f32 %v241, %v349
    %351 = vmatprep.mubr.bf16.mxu0 0
    %352 = vmatmul.mubr.bf16.gmra.mrb[0].mxu0 %v289
    %v353 = vpop.f32.mrb[0].mxu0
    %v354 = vadd.f32 %v237, %v353
    %v355 = vpop.f32.mrb[0].mxu0
    %v356 = vadd.f32 %v241, %v355
    %v357 = vpop.f32.mrb[0].mxu0
    %v358 = vadd.f32 %v237, %v357
    %v359 = vpop.f32.mrb[0].mxu0
    %v360 = vadd.f32 %v241, %v359
    %361 = vmatprep.mubr.bf16.mxu0 0
    %362 = vmatmul.mubr.bf16.gmra.mrb[0].mxu0 %v292
    %v363 = vpop.f32.mrb[0].mxu0
    %v364 = vadd.f32 %v237, %v363
    %v365 = vpop.f32.mrb[0].mxu0
    %v366 = vadd.f32 %v241, %v365
    %v367 = vpop.f32.mrb[0].mxu0
    %v368 = vadd.f32 %v237, %v367
    %v369 = vpop.f32.mrb[0].mxu0
    %v370 = vadd.f32 %v241, %v369
    %371 = vmatprep.mubr.bf16.mxu0 0
    %372 = vmatmul.mubr.bf16.gmra.mrb[0].mxu0 %v295
    %v373 = vpop.f32.mrb[0].mxu0
    %v374 = vadd.f32 %v237, %v373
    %v375 = vpop.f32.mrb[0].mxu0
    %v376 = vadd.f32 %v241, %v375
    %v377 = vpop.f32.mrb[0].mxu0
    %v378 = vadd.f32 %v237, %v377
    %v379 = vpop.f32.mrb[0].mxu0
    %v380 = vadd.f32 %v241, %v379
    %381 = vmatprep.mubr.bf16.mxu0 0
    %382 = vmatmul.mubr.bf16.gmra.mrb[0].mxu0 %v298
    %v383 = vpop.f32.mrb[0].mxu0
    %v384 = vadd.f32 %v237, %v383
    %v385 = vpop.f32.mrb[0].mxu0
    %v386 = vadd.f32 %v241, %v385
    %v387 = vpop.f32.mrb[0].mxu0
    %v388 = vadd.f32 %v237, %v387
    %v389 = vpop.f32.mrb[0].mxu0
    %v390 = vadd.f32 %v241, %v389
    %391 = vmatprep.mubr.bf16.mxu0 0
    %392 = vmatmul.mubr.bf16.gmra.mrb[0].mxu0 %v301
    %v393 = vpop.f32.mrb[0].mxu0
    %v394 = vadd.f32 %v237, %v393
    %v395 = vpop.f32.mrb[0].mxu0
    %v396 = vadd.f32 %v241, %v395
    %v397 = vpop.f32.mrb[0].mxu0
    %v398 = vadd.f32 %v237, %v397
    %v399 = vpop.f32.mrb[0].mxu0
    %v400 = vadd.f32 %v241, %v399
    %401 = vmatprep.mubr.bf16.mxu0 0
    %402 = vmatmul.mubr.bf16.gmra.mrb[0].mxu0 %v304
    %v403 = vpop.f32.mrb[0].mxu0
    %v404 = vadd.f32 %v237, %v403
    %v405 = vpop.f32.mrb[0].mxu0
    %v406 = vadd.f32 %v241, %v405
    %v407 = vpop.f32.mrb[0].mxu0
    %v408 = vadd.f32 %v237, %v407
    %v409 = vpop.f32.mrb[0].mxu0
    %v410 = vadd.f32 %v241, %v409
    %411 = vmatprep.mubr.bf16.mxu0 0
    %412 = vmatmul.mubr.bf16.gmra.mrb[0].mxu0 %v307
    %v413 = vpop.f32.mrb[0].mxu0
    %v414 = vadd.f32 %v237, %v413
    %v415 = vpop.f32.mrb[0].mxu0
    %v416 = vadd.f32 %v241, %v415
    %v417 = vpop.f32.mrb[0].mxu0
    %v418 = vadd.f32 %v237, %v417
    %v419 = vpop.f32.mrb[0].mxu0
    %v420 = vadd.f32 %v241, %v419
    %421 = vdwg.mxu0
    %v422 = vmax.f32 %v344, 0.0
    %v423 = vmax.f32 %v346, 0.0
    %v424 = vmax.f32 %v348, 0.0
    %v425 = vmax.f32 %v350, 0.0
    %v426 = vmax.f32 %v354, 0.0
    %v427 = vmax.f32 %v356, 0.0
    %v428 = vmax.f32 %v358, 0.0
    %v429 = vmax.f32 %v360, 0.0
    %v430 = vmax.f32 %v364, 0.0
    %v431 = vmax.f32 %v366, 0.0
    %v432 = vmax.f32 %v368, 0.0
    %v433 = vmax.f32 %v370, 0.0
    %v434 = vmax.f32 %v374, 0.0
    %v435 = vmax.f32 %v376, 0.0
    %v436 = vmax.f32 %v378, 0.0
    %v437 = vmax.f32 %v380, 0.0
    %v438 = vmax.f32 %v384, 0.0
    %v439 = vmax.f32 %v386, 0.0
    %v440 = vmax.f32 %v388, 0.0
    %v441 = vmax.f32 %v390, 0.0
    %v442 = vmax.f32 %v394, 0.0
    %v443 = vmax.f32 %v396, 0.0
    %v444 = vmax.f32 %v398, 0.0
    %v445 = vmax.f32 %v400, 0.0
    %v446 = vmax.f32 %v404, 0.0
    %v447 = vmax.f32 %v406, 0.0
    %v448 = vmax.f32 %v408, 0.0
    %v449 = vmax.f32 %v410, 0.0
    %v450 = vmax.f32 %v414, 0.0
    %v451 = vmax.f32 %v416, 0.0
    %v452 = vmax.f32 %v418, 0.0
    %v453 = vmax.f32 %v420, 0.0
    %v454 = vlaneseq
    %v455 = vshrl.u32 %v454, 7
    %vm456 = vcmp.ge.s32.totalorder %v455, 1
    %vm457 = vcmp.le.s32.totalorder %v455, 6
    %v458 = vpack.c.bf16 %v422, 0.0
    %v459 = vpack.c.bf16 %v423, 0.0
    %v460 = vpack.c.bf16 %v426, %v424
    %v461 = vpack.c.bf16 %v427, %v425
    %v462 = vpack.c.bf16 %v430, %v428
    %v463 = vpack.c.bf16 %v431, %v429
    %v464 = vpack.c.bf16 %v434, %v432
    %v465 = vpack.c.bf16 %v435, %v433
    %v466 = vpack.c.bf16 %v438, 0.0
    %v467 = vpack.c.bf16 %v439, 0.0
    %v468 = vpack.c.bf16 %v442, %v440
    %v469 = vpack.c.bf16 %v443, %v441
    %v470 = vpack.c.bf16 %v446, %v444
    %v471 = vpack.c.bf16 %v447, %v445
    %v472 = vpack.c.bf16 %v450, %v448
    %v473 = vpack.c.bf16 %v451, %v449
    %v474 = vpack.c.bf16 %v424, %v422
    %v475 = vpack.c.bf16 %v425, %v423
    %v476 = vpack.c.bf16 %v428, %v426
    %v477 = vpack.c.bf16 %v429, %v427
    %v478 = vpack.c.bf16 %v432, %v430
    %v479 = vpack.c.bf16 %v433, %v431
    %v480 = vpack.c.bf16 %v436, %v434
    %v481 = vpack.c.bf16 %v437, %v435
    %v482 = vpack.c.bf16 %v440, %v438
    %v483 = vpack.c.bf16 %v441, %v439
    %v484 = vpack.c.bf16 %v444, %v442
    %v485 = vpack.c.bf16 %v445, %v443
    %v486 = vpack.c.bf16 %v448, %v446
    %v487 = vpack.c.bf16 %v449, %v447
    %v488 = vpack.c.bf16 %v452, %v450
    %v489 = vpack.c.bf16 %v453, %v451
    %v490 = vpack.c.bf16 0.0, %v436
    %v491 = vpack.c.bf16 0.0, %v437
    %v492 = vpack.c.bf16 0.0, %v452
    %v493 = vpack.c.bf16 0.0, %v453
    %v494 = vld [vmem:[#allocation7] sm:$0xff]
    %v495 = vld [vmem:[#allocation7 + $0x8] sm:$0xff]
    %v496 = vld [vmem:[#allocation7 + $0x10] sm:$0xff]
    %v497 = vld [vmem:[#allocation7 + $0x18] sm:$0xff]
    %v498 = vld [vmem:[#allocation7 + $0x20] sm:$0xff]
    %v499 = vld [vmem:[#allocation7 + $0x28] sm:$0xff]
    %v500 = vld [vmem:[#allocation7 + $0x30] sm:$0xff]
    %v501 = vld [vmem:[#allocation7 + $0x38] sm:$0xff]
    %v502 = vld [vmem:[#allocation7 + $0x40] sm:$0xff]
    %v503 = vld [vmem:[#allocation7 + $0x48] sm:$0xff]
    %v504 = vld [vmem:[#allocation7 + $0x50] sm:$0xff]
    %v505 = vld [vmem:[#allocation7 + $0x58] sm:$0xff]
    %v506 = vld [vmem:[#allocation7 + $0x60] sm:$0xff]
    %v507 = vld [vmem:[#allocation7 + $0x68] sm:$0xff]
    %v508 = vld [vmem:[#allocation7 + $0x70] sm:$0xff]
    %v509 = vld [vmem:[#allocation7 + $0x78] sm:$0xff]
    %v510 = vld [vmem:[#allocation7 + $0x80] sm:$0xff]
    %v511 = vld [vmem:[#allocation7 + $0x88] sm:$0xff]
    %v512 = vld [vmem:[#allocation7 + $0x90] sm:$0xff]
    %v513 = vld [vmem:[#allocation7 + $0x98] sm:$0xff]
    %v514 = vld [vmem:[#allocation7 + $0xa0] sm:$0xff]
    %v515 = vld [vmem:[#allocation7 + $0xa8] sm:$0xff]
    %v516 = vld [vmem:[#allocation7 + $0xb0] sm:$0xff]
    %v517 = vld [vmem:[#allocation7 + $0xb8] sm:$0xff]
    %v518 = vld [vmem:[#allocation7 + $0xc0] sm:$0xff]
    %v519 = vld [vmem:[#allocation7 + $0xc8] sm:$0xff]
    %v520 = vld [vmem:[#allocation7 + $0xd0] sm:$0xff]
    %v521 = vld [vmem:[#allocation7 + $0xd8] sm:$0xff]
    %v522 = vld [vmem:[#allocation7 + $0xe0] sm:$0xff]
    %v523 = vld [vmem:[#allocation7 + $0xe8] sm:$0xff]
    %v524 = vld [vmem:[#allocation7 + $0xf0] sm:$0xff]
    %v525 = vld [vmem:[#allocation7 + $0xf8] sm:$0xff]
    %v526 = vld [vmem:[#allocation7 + $0x100] sm:$0xff]
    %v527 = vld [vmem:[#allocation7 + $0x108] sm:$0xff]
    %v528 = vld [vmem:[#allocation7 + $0x110] sm:$0xff]
    %v529 = vld [vmem:[#allocation7 + $0x118] sm:$0xff]
    %v530 = vld [vmem:[#allocation7 + $0x120] sm:$0xff]
    %v531 = vld [vmem:[#allocation7 + $0x128] sm:$0xff]
    %v532 = vld [vmem:[#allocation7 + $0x130] sm:$0xff]
    %v533 = vld [vmem:[#allocation7 + $0x138] sm:$0xff]
    %v534 = vld [vmem:[#allocation7 + $0x140] sm:$0xff]
    %v535 = vld [vmem:[#allocation7 + $0x148] sm:$0xff]
    %v536 = vld [vmem:[#allocation7 + $0x150] sm:$0xff]
    %v537 = vld [vmem:[#allocation7 + $0x158] sm:$0xff]
    %v538 = vld [vmem:[#allocation7 + $0x160] sm:$0xff]
    %v539 = vld [vmem:[#allocation7 + $0x168] sm:$0xff]
    %v540 = vld [vmem:[#allocation7 + $0x170] sm:$0xff]
    %v541 = vld [vmem:[#allocation7 + $0x178] sm:$0xff]
    %v542 = vld [vmem:[#allocation7 + $0x180] sm:$0xff]
    %v543 = vld [vmem:[#allocation7 + $0x188] sm:$0xff]
    %v544 = vld [vmem:[#allocation7 + $0x190] sm:$0xff]
    %v545 = vld [vmem:[#allocation7 + $0x198] sm:$0xff]
    %v546 = vld [vmem:[#allocation7 + $0x1a0] sm:$0xff]
    %v547 = vld [vmem:[#allocation7 + $0x1a8] sm:$0xff]
    %v548 = vld [vmem:[#allocation7 + $0x1b0] sm:$0xff]
    %v549 = vld [vmem:[#allocation7 + $0x1b8] sm:$0xff]
    %v550 = vld [vmem:[#allocation7 + $0x1c0] sm:$0xff]
    %v551 = vld [vmem:[#allocation7 + $0x1c8] sm:$0xff]
    %v552 = vld [vmem:[#allocation7 + $0x1d0] sm:$0xff]
    %v553 = vld [vmem:[#allocation7 + $0x1d8] sm:$0xff]
    %v554 = vld [vmem:[#allocation7 + $0x1e0] sm:$0xff]
    %v555 = vld [vmem:[#allocation7 + $0x1e8] sm:$0xff]
    %v556 = vld [vmem:[#allocation7 + $0x1f0] sm:$0xff]
    %v557 = vld [vmem:[#allocation7 + $0x1f8] sm:$0xff]
    %v558 = vld [vmem:[#allocation7 + $0x200] sm:$0xff]
    %v559 = vld [vmem:[#allocation7 + $0x208] sm:$0xff]
    %v560 = vld [vmem:[#allocation7 + $0x210] sm:$0xff]
    %v561 = vld [vmem:[#allocation7 + $0x218] sm:$0xff]
    %v562 = vld [vmem:[#allocation7 + $0x220] sm:$0xff]
    %v563 = vld [vmem:[#allocation7 + $0x228] sm:$0xff]
    %v564 = vld [vmem:[#allocation7 + $0x230] sm:$0xff]
    %v565 = vld [vmem:[#allocation7 + $0x238] sm:$0xff]
    %v566 = vld [vmem:[#allocation7 + $0x240] sm:$0xff]
    %v567 = vld [vmem:[#allocation7 + $0x248] sm:$0xff]
    %v568 = vld [vmem:[#allocation7 + $0x250] sm:$0xff]
    %v569 = vld [vmem:[#allocation7 + $0x258] sm:$0xff]
    %v570 = vld [vmem:[#allocation7 + $0x260] sm:$0xff]
    %v571 = vld [vmem:[#allocation7 + $0x268] sm:$0xff]
    %v572 = vld [vmem:[#allocation7 + $0x270] sm:$0xff]
    %v573 = vld [vmem:[#allocation7 + $0x278] sm:$0xff]
    %v574 = vld [vmem:[#allocation7 + $0x280] sm:$0xff]
    %v575 = vld [vmem:[#allocation7 + $0x288] sm:$0xff]
    %v576 = vld [vmem:[#allocation7 + $0x290] sm:$0xff]
    %v577 = vld [vmem:[#allocation7 + $0x298] sm:$0xff]
    %v578 = vld [vmem:[#allocation7 + $0x2a0] sm:$0xff]
    %v579 = vld [vmem:[#allocation7 + $0x2a8] sm:$0xff]
    %v580 = vld [vmem:[#allocation7 + $0x2b0] sm:$0xff]
    %v581 = vld [vmem:[#allocation7 + $0x2b8] sm:$0xff]
    %v582 = vld [vmem:[#allocation7 + $0x2c0] sm:$0xff]
    %v583 = vld [vmem:[#allocation7 + $0x2c8] sm:$0xff]
    %v584 = vld [vmem:[#allocation7 + $0x2d0] sm:$0xff]
    %v585 = vld [vmem:[#allocation7 + $0x2d8] sm:$0xff]
    %v586 = vld [vmem:[#allocation7 + $0x2e0] sm:$0xff]
    %v587 = vld [vmem:[#allocation7 + $0x2e8] sm:$0xff]
    %v588 = vld [vmem:[#allocation7 + $0x2f0] sm:$0xff]
    %v589 = vld [vmem:[#allocation7 + $0x2f8] sm:$0xff]
    %v590 = vld [vmem:[#allocation7 + $0x300] sm:$0xff]
    %v591 = vld [vmem:[#allocation7 + $0x308] sm:$0xff]
    %v592 = vld [vmem:[#allocation7 + $0x310] sm:$0xff]
    %v593 = vld [vmem:[#allocation7 + $0x318] sm:$0xff]
    %v594 = vld [vmem:[#allocation7 + $0x320] sm:$0xff]
    %v595 = vld [vmem:[#allocation7 + $0x328] sm:$0xff]
    %v596 = vld [vmem:[#allocation7 + $0x330] sm:$0xff]
    %v597 = vld [vmem:[#allocation7 + $0x338] sm:$0xff]
    %v598 = vld [vmem:[#allocation7 + $0x340] sm:$0xff]
    %v599 = vld [vmem:[#allocation7 + $0x348] sm:$0xff]
    %v600 = vld [vmem:[#allocation7 + $0x350] sm:$0xff]
    %v601 = vld [vmem:[#allocation7 + $0x358] sm:$0xff]
    %v602 = vld [vmem:[#allocation7 + $0x360] sm:$0xff]
    %v603 = vld [vmem:[#allocation7 + $0x368] sm:$0xff]
    %v604 = vld [vmem:[#allocation7 + $0x370] sm:$0xff]
    %v605 = vld [vmem:[#allocation7 + $0x378] sm:$0xff]
    %v606 = vld [vmem:[#allocation7 + $0x380] sm:$0xff]
    %v607 = vld [vmem:[#allocation7 + $0x388] sm:$0xff]
    %v608 = vld [vmem:[#allocation7 + $0x390] sm:$0xff]
    %v609 = vld [vmem:[#allocation7 + $0x398] sm:$0xff]
    %v610 = vld [vmem:[#allocation7 + $0x3a0] sm:$0xff]
    %v611 = vld [vmem:[#allocation7 + $0x3a8] sm:$0xff]
    %v612 = vld [vmem:[#allocation7 + $0x3b0] sm:$0xff]
    %v613 = vld [vmem:[#allocation7 + $0x3b8] sm:$0xff]
    %v614 = vld [vmem:[#allocation7 + $0x3c0] sm:$0xff]
    %v615 = vld [vmem:[#allocation7 + $0x3c8] sm:$0xff]
    %v616 = vld [vmem:[#allocation7 + $0x3d0] sm:$0xff]
    %v617 = vld [vmem:[#allocation7 + $0x3d8] sm:$0xff]
    %v618 = vld [vmem:[#allocation7 + $0x3e0] sm:$0xff]
    %v619 = vld [vmem:[#allocation7 + $0x3e8] sm:$0xff]
    %v620 = vld [vmem:[#allocation7 + $0x3f0] sm:$0xff]
    %v621 = vld [vmem:[#allocation7 + $0x3f8] sm:$0xff]
    %v622 = vld [vmem:[#allocation7 + $0x400] sm:$0xff]
    %v623 = vld [vmem:[#allocation7 + $0x408] sm:$0xff]
    %v624 = vld [vmem:[#allocation7 + $0x410] sm:$0xff]
    %v625 = vld [vmem:[#allocation7 + $0x418] sm:$0xff]
    %v626 = vld [vmem:[#allocation7 + $0x420] sm:$0xff]
    %v627 = vld [vmem:[#allocation7 + $0x428] sm:$0xff]
    %v628 = vld [vmem:[#allocation7 + $0x430] sm:$0xff]
    %v629 = vld [vmem:[#allocation7 + $0x438] sm:$0xff]
    %v630 = vld [vmem:[#allocation7 + $0x440] sm:$0xff]
    %v631 = vld [vmem:[#allocation7 + $0x448] sm:$0xff]
    %v632 = vld [vmem:[#allocation7 + $0x450] sm:$0xff]
    %v633 = vld [vmem:[#allocation7 + $0x458] sm:$0xff]
    %v634 = vld [vmem:[#allocation7 + $0x460] sm:$0xff]
    %v635 = vld [vmem:[#allocation7 + $0x468] sm:$0xff]
    %v636 = vld [vmem:[#allocation7 + $0x470] sm:$0xff]
    %v637 = vld [vmem:[#allocation7 + $0x478] sm:$0xff]
    %v638 = vld [vmem:[#allocation7 + $0x480] sm:$0xff]
    %v639 = vld [vmem:[#allocation7 + $0x488] sm:$0xff]
    %v640 = vld [vmem:[#allocation7 + $0x490] sm:$0xff]
    %v641 = vld [vmem:[#allocation7 + $0x498] sm:$0xff]
    %v642 = vld [vmem:[#allocation7 + $0x4a0] sm:$0xff]
    %v643 = vld [vmem:[#allocation7 + $0x4a8] sm:$0xff]
    %v644 = vld [vmem:[#allocation7 + $0x4b0] sm:$0xff]
    %v645 = vld [vmem:[#allocation7 + $0x4b8] sm:$0xff]
    %v646 = vld [vmem:[#allocation7 + $0x4c0] sm:$0xff]
    %v647 = vld [vmem:[#allocation7 + $0x4c8] sm:$0xff]
    %v648 = vld [vmem:[#allocation7 + $0x4d0] sm:$0xff]
    %v649 = vld [vmem:[#allocation7 + $0x4d8] sm:$0xff]
    %v650 = vld [vmem:[#allocation7 + $0x4e0] sm:$0xff]
    %v651 = vld [vmem:[#allocation7 + $0x4e8] sm:$0xff]
    %v652 = vld [vmem:[#allocation7 + $0x4f0] sm:$0xff]
    %v653 = vld [vmem:[#allocation7 + $0x4f8] sm:$0xff]
    %v654 = vld [vmem:[#allocation7 + $0x500] sm:$0xff]
    %v655 = vld [vmem:[#allocation7 + $0x508] sm:$0xff]
    %v656 = vld [vmem:[#allocation7 + $0x510] sm:$0xff]
    %v657 = vld [vmem:[#allocation7 + $0x518] sm:$0xff]
    %v658 = vld [vmem:[#allocation7 + $0x520] sm:$0xff]
    %v659 = vld [vmem:[#allocation7 + $0x528] sm:$0xff]
    %v660 = vld [vmem:[#allocation7 + $0x530] sm:$0xff]
    %v661 = vld [vmem:[#allocation7 + $0x538] sm:$0xff]
    %v662 = vld [vmem:[#allocation7 + $0x540] sm:$0xff]
    %v663 = vld [vmem:[#allocation7 + $0x548] sm:$0xff]
    %v664 = vld [vmem:[#allocation7 + $0x550] sm:$0xff]
    %v665 = vld [vmem:[#allocation7 + $0x558] sm:$0xff]
    %v666 = vld [vmem:[#allocation7 + $0x560] sm:$0xff]
    %v667 = vld [vmem:[#allocation7 + $0x568] sm:$0xff]
    %v668 = vld [vmem:[#allocation7 + $0x570] sm:$0xff]
    %v669 = vld [vmem:[#allocation7 + $0x578] sm:$0xff]
    %v670 = vld [vmem:[#allocation7 + $0x580] sm:$0xff]
    %v671 = vld [vmem:[#allocation7 + $0x588] sm:$0xff]
    %v672 = vld [vmem:[#allocation7 + $0x590] sm:$0xff]
    %v673 = vld [vmem:[#allocation7 + $0x598] sm:$0xff]
    %v674 = vld [vmem:[#allocation7 + $0x5a0] sm:$0xff]
    %v675 = vld [vmem:[#allocation7 + $0x5a8] sm:$0xff]
    %v676 = vld [vmem:[#allocation7 + $0x5b0] sm:$0xff]
    %v677 = vld [vmem:[#allocation7 + $0x5b8] sm:$0xff]
    %v678 = vld [vmem:[#allocation7 + $0x5c0] sm:$0xff]
    %v679 = vld [vmem:[#allocation7 + $0x5c8] sm:$0xff]
    %v680 = vld [vmem:[#allocation7 + $0x5d0] sm:$0xff]
    %v681 = vld [vmem:[#allocation7 + $0x5d8] sm:$0xff]
    %v682 = vld [vmem:[#allocation7 + $0x5e0] sm:$0xff]
    %v683 = vld [vmem:[#allocation7 + $0x5e8] sm:$0xff]
    %v684 = vld [vmem:[#allocation7 + $0x5f0] sm:$0xff]
    %v685 = vld [vmem:[#allocation7 + $0x5f8] sm:$0xff]
    %v686 = vld [vmem:[#allocation7 + $0x600] sm:$0xff]
    %v687 = vld [vmem:[#allocation7 + $0x608] sm:$0xff]
    %v688 = vld [vmem:[#allocation7 + $0x610] sm:$0xff]
    %v689 = vld [vmem:[#allocation7 + $0x618] sm:$0xff]
    %v690 = vld [vmem:[#allocation7 + $0x620] sm:$0xff]
    %v691 = vld [vmem:[#allocation7 + $0x628] sm:$0xff]
    %v692 = vld [vmem:[#allocation7 + $0x630] sm:$0xff]
    %v693 = vld [vmem:[#allocation7 + $0x638] sm:$0xff]
    %v694 = vld [vmem:[#allocation7 + $0x640] sm:$0xff]
    %v695 = vld [vmem:[#allocation7 + $0x648] sm:$0xff]
    %v696 = vld [vmem:[#allocation7 + $0x650] sm:$0xff]
    %v697 = vld [vmem:[#allocation7 + $0x658] sm:$0xff]
    %v698 = vld [vmem:[#allocation7 + $0x660] sm:$0xff]
    %v699 = vld [vmem:[#allocation7 + $0x668] sm:$0xff]
    %v700 = vld [vmem:[#allocation7 + $0x670] sm:$0xff]
    %v701 = vld [vmem:[#allocation7 + $0x678] sm:$0xff]
    %v702 = vld [vmem:[#allocation7 + $0x680] sm:$0xff]
    %v703 = vld [vmem:[#allocation7 + $0x688] sm:$0xff]
    %v704 = vld [vmem:[#allocation7 + $0x690] sm:$0xff]
    %v705 = vld [vmem:[#allocation7 + $0x698] sm:$0xff]
    %v706 = vld [vmem:[#allocation7 + $0x6a0] sm:$0xff]
    %v707 = vld [vmem:[#allocation7 + $0x6a8] sm:$0xff]
    %v708 = vld [vmem:[#allocation7 + $0x6b0] sm:$0xff]
    %v709 = vld [vmem:[#allocation7 + $0x6b8] sm:$0xff]
    %v710 = vld [vmem:[#allocation7 + $0x6c0] sm:$0xff]
    %v711 = vld [vmem:[#allocation7 + $0x6c8] sm:$0xff]
    %v712 = vld [vmem:[#allocation7 + $0x6d0] sm:$0xff]
    %v713 = vld [vmem:[#allocation7 + $0x6d8] sm:$0xff]
    %v714 = vld [vmem:[#allocation7 + $0x6e0] sm:$0xff]
    %v715 = vld [vmem:[#allocation7 + $0x6e8] sm:$0xff]
    %v716 = vld [vmem:[#allocation7 + $0x6f0] sm:$0xff]
    %v717 = vld [vmem:[#allocation7 + $0x6f8] sm:$0xff]
    %v718 = vld [vmem:[#allocation7 + $0x700] sm:$0xff]
    %v719 = vld [vmem:[#allocation7 + $0x708] sm:$0xff]
    %v720 = vld [vmem:[#allocation7 + $0x710] sm:$0xff]
    %v721 = vld [vmem:[#allocation7 + $0x718] sm:$0xff]
    %v722 = vld [vmem:[#allocation7 + $0x720] sm:$0xff]
    %v723 = vld [vmem:[#allocation7 + $0x728] sm:$0xff]
    %v724 = vld [vmem:[#allocation7 + $0x730] sm:$0xff]
    %v725 = vld [vmem:[#allocation7 + $0x738] sm:$0xff]
    %v726 = vld [vmem:[#allocation7 + $0x740] sm:$0xff]
    %v727 = vld [vmem:[#allocation7 + $0x748] sm:$0xff]
    %v728 = vld [vmem:[#allocation7 + $0x750] sm:$0xff]
    %v729 = vld [vmem:[#allocation7 + $0x758] sm:$0xff]
    %v730 = vld [vmem:[#allocation7 + $0x760] sm:$0xff]
    %v731 = vld [vmem:[#allocation7 + $0x768] sm:$0xff]
    %v732 = vld [vmem:[#allocation7 + $0x770] sm:$0xff]
    %v733 = vld [vmem:[#allocation7 + $0x778] sm:$0xff]
    %v734 = vld [vmem:[#allocation7 + $0x780] sm:$0xff]
    %v735 = vld [vmem:[#allocation7 + $0x788] sm:$0xff]
    %v736 = vld [vmem:[#allocation7 + $0x790] sm:$0xff]
    %v737 = vld [vmem:[#allocation7 + $0x798] sm:$0xff]
    %v738 = vld [vmem:[#allocation7 + $0x7a0] sm:$0xff]
    %v739 = vld [vmem:[#allocation7 + $0x7a8] sm:$0xff]
    %v740 = vld [vmem:[#allocation7 + $0x7b0] sm:$0xff]
    %v741 = vld [vmem:[#allocation7 + $0x7b8] sm:$0xff]
    %v742 = vld [vmem:[#allocation7 + $0x7c0] sm:$0xff]
    %v743 = vld [vmem:[#allocation7 + $0x7c8] sm:$0xff]
    %v744 = vld [vmem:[#allocation7 + $0x7d0] sm:$0xff]
    %v745 = vld [vmem:[#allocation7 + $0x7d8] sm:$0xff]
    %v746 = vld [vmem:[#allocation7 + $0x7e0] sm:$0xff]
    %v747 = vld [vmem:[#allocation7 + $0x7e8] sm:$0xff]
    %v748 = vld [vmem:[#allocation7 + $0x7f0] sm:$0xff]
    %v749 = vld [vmem:[#allocation7 + $0x7f8] sm:$0xff]
    %v750 = vld [vmem:[#allocation7 + $0x800] sm:$0xff]
    %v751 = vld [vmem:[#allocation7 + $0x808] sm:$0xff]
    %v752 = vld [vmem:[#allocation7 + $0x810] sm:$0xff]
    %v753 = vld [vmem:[#allocation7 + $0x818] sm:$0xff]
    %v754 = vld [vmem:[#allocation7 + $0x820] sm:$0xff]
    %v755 = vld [vmem:[#allocation7 + $0x828] sm:$0xff]
    %v756 = vld [vmem:[#allocation7 + $0x830] sm:$0xff]
    %v757 = vld [vmem:[#allocation7 + $0x838] sm:$0xff]
    %v758 = vld [vmem:[#allocation7 + $0x840] sm:$0xff]
    %v759 = vld [vmem:[#allocation7 + $0x848] sm:$0xff]
    %v760 = vld [vmem:[#allocation7 + $0x850] sm:$0xff]
    %v761 = vld [vmem:[#allocation7 + $0x858] sm:$0xff]
    %v762 = vld [vmem:[#allocation7 + $0x860] sm:$0xff]
    %v763 = vld [vmem:[#allocation7 + $0x868] sm:$0xff]
    %v764 = vld [vmem:[#allocation7 + $0x870] sm:$0xff]
    %v765 = vld [vmem:[#allocation7 + $0x878] sm:$0xff]
    %v766 = vld [vmem:[#allocation7 + $0x880] sm:$0xff]
    %v767 = vld [vmem:[#allocation7 + $0x888] sm:$0xff]
    %v768 = vld [vmem:[#allocation7 + $0x890] sm:$0xff]
    %v769 = vld [vmem:[#allocation7 + $0x898] sm:$0xff]
    %v770 = vld [vmem:[#allocation7 + $0x8a0] sm:$0xff]
    %v771 = vld [vmem:[#allocation7 + $0x8a8] sm:$0xff]
    %v772 = vld [vmem:[#allocation7 + $0x8b0] sm:$0xff]
    %v773 = vld [vmem:[#allocation7 + $0x8b8] sm:$0xff]
    %v774 = vld [vmem:[#allocation7 + $0x8c0] sm:$0xff]
    %v775 = vld [vmem:[#allocation7 + $0x8c8] sm:$0xff]
    %v776 = vld [vmem:[#allocation7 + $0x8d0] sm:$0xff]
    %v777 = vld [vmem:[#allocation7 + $0x8d8] sm:$0xff]
    %v778 = vld [vmem:[#allocation7 + $0x8e0] sm:$0xff]
    %v779 = vld [vmem:[#allocation7 + $0x8e8] sm:$0xff]
    %v780 = vld [vmem:[#allocation7 + $0x8f0] sm:$0xff]
    %v781 = vld [vmem:[#allocation7 + $0x8f8] sm:$0xff]
    %v1070 = vunpack.c.l.b16 %v494
    %v1071 = vunpack.c.h.b16 %v494
    %v1072 = vunpack.c.l.b16 %v495
    %v1073 = vunpack.c.h.b16 %v495
    %v1074 = vunpack.c.l.b16 %v496
    %v1075 = vunpack.c.h.b16 %v496
    %v1076 = vunpack.c.l.b16 %v497
    %v1077 = vunpack.c.h.b16 %v497
    %v1078 = vunpack.c.l.b16 %v498
    %v1079 = vunpack.c.h.b16 %v498
    %v1080 = vunpack.c.l.b16 %v499
    %v1081 = vunpack.c.h.b16 %v499
    %v1082 = vunpack.c.l.b16 %v500
    %v1083 = vunpack.c.h.b16 %v500
    %v1084 = vunpack.c.l.b16 %v501
    %v1085 = vunpack.c.h.b16 %v501
    %v1086 = vunpack.c.l.b16 %v502
    %v1087 = vunpack.c.h.b16 %v502
    %v1088 = vunpack.c.l.b16 %v503
    %v1089 = vunpack.c.h.b16 %v503
    %v1090 = vunpack.c.l.b16 %v504
    %v1091 = vunpack.c.h.b16 %v504
    %v1092 = vunpack.c.l.b16 %v505
    %v1093 = vunpack.c.h.b16 %v505
    %v1094 = vunpack.c.l.b16 %v506
    %v1095 = vunpack.c.h.b16 %v506
    %v1096 = vunpack.c.l.b16 %v507
    %v1097 = vunpack.c.h.b16 %v507
    %v1098 = vunpack.c.l.b16 %v508
    %v1099 = vunpack.c.h.b16 %v508
    %v1100 = vunpack.c.l.b16 %v509
    %v1101 = vunpack.c.h.b16 %v509
    %v1102 = vunpack.c.l.b16 %v510
    %v1103 = vunpack.c.h.b16 %v510
    %v1104 = vunpack.c.l.b16 %v511
    %v1105 = vunpack.c.h.b16 %v511
    %v1106 = vunpack.c.l.b16 %v512
    %v1107 = vunpack.c.h.b16 %v512
    %v1108 = vunpack.c.l.b16 %v513
    %v1109 = vunpack.c.h.b16 %v513
    %v1110 = vunpack.c.l.b16 %v514
    %v1111 = vunpack.c.h.b16 %v514
    %v1112 = vunpack.c.l.b16 %v515
    %v1113 = vunpack.c.h.b16 %v515
    %v1114 = vunpack.c.l.b16 %v516
    %v1115 = vunpack.c.h.b16 %v516
    %v1116 = vunpack.c.l.b16 %v517
    %v1117 = vunpack.c.h.b16 %v517
    %v1118 = vunpack.c.l.b16 %v518
    %v1119 = vunpack.c.h.b16 %v518
    %v1120 = vunpack.c.l.b16 %v519
    %v1121 = vunpack.c.h.b16 %v519
    %v1122 = vunpack.c.l.b16 %v520
    %v1123 = vunpack.c.h.b16 %v520
    %v1124 = vunpack.c.l.b16 %v521
    %v1125 = vunpack.c.h.b16 %v521
    %v1126 = vunpack.c.l.b16 %v522
    %v1127 = vunpack.c.h.b16 %v522
    %v1128 = vunpack.c.l.b16 %v523
    %v1129 = vunpack.c.h.b16 %v523
    %v1130 = vunpack.c.l.b16 %v524
    %v1131 = vunpack.c.h.b16 %v524
    %v1132 = vunpack.c.l.b16 %v525
    %v1133 = vunpack.c.h.b16 %v525
    %v1134 = vunpack.c.l.b16 %v526
    %v1135 = vunpack.c.h.b16 %v526
    %v1136 = vunpack.c.l.b16 %v527
    %v1137 = vunpack.c.h.b16 %v527
    %v1138 = vunpack.c.l.b16 %v528
    %v1139 = vunpack.c.h.b16 %v528
    %v1140 = vunpack.c.l.b16 %v529
    %v1141 = vunpack.c.h.b16 %v529
    %v1142 = vunpack.c.l.b16 %v530
    %v1143 = vunpack.c.h.b16 %v530
    %v1144 = vunpack.c.l.b16 %v531
    %v1145 = vunpack.c.h.b16 %v531
    %v1146 = vunpack.c.l.b16 %v532
    %v1147 = vunpack.c.h.b16 %v532
    %v1148 = vunpack.c.l.b16 %v533
    %v1149 = vunpack.c.h.b16 %v533
    %v1150 = vunpack.c.l.b16 %v534
    %v1151 = vunpack.c.h.b16 %v534
    %v1152 = vunpack.c.l.b16 %v535
    %v1153 = vunpack.c.h.b16 %v535
    %v1154 = vunpack.c.l.b16 %v536
    %v1155 = vunpack.c.h.b16 %v536
    %v1156 = vunpack.c.l.b16 %v537
    %v1157 = vunpack.c.h.b16 %v537
    %v1158 = vunpack.c.l.b16 %v538
    %v1159 = vunpack.c.h.b16 %v538
    %v1160 = vunpack.c.l.b16 %v539
    %v1161 = vunpack.c.h.b16 %v539
    %v1162 = vunpack.c.l.b16 %v540
    %v1163 = vunpack.c.h.b16 %v540
    %v1164 = vunpack.c.l.b16 %v541
    %v1165 = vunpack.c.h.b16 %v541
    %v1166 = vunpack.c.l.b16 %v542
    %v1167 = vunpack.c.h.b16 %v542
    %v1168 = vunpack.c.l.b16 %v543
    %v1169 = vunpack.c.h.b16 %v543
    %v1170 = vunpack.c.l.b16 %v544
    %v1171 = vunpack.c.h.b16 %v544
    %v1172 = vunpack.c.l.b16 %v545
    %v1173 = vunpack.c.h.b16 %v545
    %v1174 = vunpack.c.l.b16 %v546
    %v1175 = vunpack.c.h.b16 %v546
    %v1176 = vunpack.c.l.b16 %v547
    %v1177 = vunpack.c.h.b16 %v547
    %v1178 = vunpack.c.l.b16 %v548
    %v1179 = vunpack.c.h.b16 %v548
    %v1180 = vunpack.c.l.b16 %v549
    %v1181 = vunpack.c.h.b16 %v549
    %v1182 = vunpack.c.l.b16 %v550
    %v1183 = vunpack.c.h.b16 %v550
    %v1184 = vunpack.c.l.b16 %v551
    %v1185 = vunpack.c.h.b16 %v551
    %v1186 = vunpack.c.l.b16 %v552
    %v1187 = vunpack.c.h.b16 %v552
    %v1188 = vunpack.c.l.b16 %v553
    %v1189 = vunpack.c.h.b16 %v553
    %v1190 = vunpack.c.l.b16 %v554
    %v1191 = vunpack.c.h.b16 %v554
    %v1192 = vunpack.c.l.b16 %v555
    %v1193 = vunpack.c.h.b16 %v555
    %v1194 = vunpack.c.l.b16 %v556
    %v1195 = vunpack.c.h.b16 %v556
    %v1196 = vunpack.c.l.b16 %v557
    %v1197 = vunpack.c.h.b16 %v557
    %v1198 = vunpack.c.l.b16 %v558
    %v1199 = vunpack.c.h.b16 %v558
    %v1200 = vunpack.c.l.b16 %v559
    %v1201 = vunpack.c.h.b16 %v559
    %v1202 = vunpack.c.l.b16 %v560
    %v1203 = vunpack.c.h.b16 %v560
    %v1204 = vunpack.c.l.b16 %v561
    %v1205 = vunpack.c.h.b16 %v561
    %v1206 = vunpack.c.l.b16 %v562
    %v1207 = vunpack.c.h.b16 %v562
    %v1208 = vunpack.c.l.b16 %v563
    %v1209 = vunpack.c.h.b16 %v563
    %v1210 = vunpack.c.l.b16 %v564
    %v1211 = vunpack.c.h.b16 %v564
    %v1212 = vunpack.c.l.b16 %v565
    %v1213 = vunpack.c.h.b16 %v565
    %v1214 = vunpack.c.l.b16 %v566
    %v1215 = vunpack.c.h.b16 %v566
    %v1216 = vunpack.c.l.b16 %v567
    %v1217 = vunpack.c.h.b16 %v567
    %v1218 = vunpack.c.l.b16 %v568
    %v1219 = vunpack.c.h.b16 %v568
    %v1220 = vunpack.c.l.b16 %v569
    %v1221 = vunpack.c.h.b16 %v569
    %v1222 = vunpack.c.l.b16 %v570
    %v1223 = vunpack.c.h.b16 %v570
    %v1224 = vunpack.c.l.b16 %v571
    %v1225 = vunpack.c.h.b16 %v571
    %v1226 = vunpack.c.l.b16 %v572
    %v1227 = vunpack.c.h.b16 %v572
    %v1228 = vunpack.c.l.b16 %v573
    %v1229 = vunpack.c.h.b16 %v573
    %v1230 = vunpack.c.l.b16 %v574
    %v1231 = vunpack.c.h.b16 %v574
    %v1232 = vunpack.c.l.b16 %v575
    %v1233 = vunpack.c.h.b16 %v575
    %v1234 = vunpack.c.l.b16 %v576
    %v1235 = vunpack.c.h.b16 %v576
    %v1236 = vunpack.c.l.b16 %v577
    %v1237 = vunpack.c.h.b16 %v577
    %v1238 = vunpack.c.l.b16 %v578
    %v1239 = vunpack.c.h.b16 %v578
    %v1240 = vunpack.c.l.b16 %v579
    %v1241 = vunpack.c.h.b16 %v579
    %v1242 = vunpack.c.l.b16 %v580
    %v1243 = vunpack.c.h.b16 %v580
    %v1244 = vunpack.c.l.b16 %v581
    %v1245 = vunpack.c.h.b16 %v581
    %v1246 = vunpack.c.l.b16 %v582
    %v1247 = vunpack.c.h.b16 %v582
    %v1248 = vunpack.c.l.b16 %v583
    %v1249 = vunpack.c.h.b16 %v583
    %v1250 = vunpack.c.l.b16 %v584
    %v1251 = vunpack.c.h.b16 %v584
    %v1252 = vunpack.c.l.b16 %v585
    %v1253 = vunpack.c.h.b16 %v585
    %v1254 = vunpack.c.l.b16 %v586
    %v1255 = vunpack.c.h.b16 %v586
    %v1256 = vunpack.c.l.b16 %v587
    %v1257 = vunpack.c.h.b16 %v587
    %v1258 = vunpack.c.l.b16 %v588
    %v1259 = vunpack.c.h.b16 %v588
    %v1260 = vunpack.c.l.b16 %v589
    %v1261 = vunpack.c.h.b16 %v589
    %v1262 = vunpack.c.l.b16 %v590
    %v1263 = vunpack.c.h.b16 %v590
    %v1264 = vunpack.c.l.b16 %v591
    %v1265 = vunpack.c.h.b16 %v591
    %v1266 = vunpack.c.l.b16 %v592
    %v1267 = vunpack.c.h.b16 %v592
    %v1268 = vunpack.c.l.b16 %v593
    %v1269 = vunpack.c.h.b16 %v593
    %v1270 = vunpack.c.l.b16 %v594
    %v1271 = vunpack.c.h.b16 %v594
    %v1272 = vunpack.c.l.b16 %v595
    %v1273 = vunpack.c.h.b16 %v595
    %v1274 = vunpack.c.l.b16 %v596
    %v1275 = vunpack.c.h.b16 %v596
    %v1276 = vunpack.c.l.b16 %v597
    %v1277 = vunpack.c.h.b16 %v597
    %v1278 = vunpack.c.l.b16 %v598
    %v1279 = vunpack.c.h.b16 %v598
    %v1280 = vunpack.c.l.b16 %v599
    %v1281 = vunpack.c.h.b16 %v599
    %v1282 = vunpack.c.l.b16 %v600
    %v1283 = vunpack.c.h.b16 %v600
    %v1284 = vunpack.c.l.b16 %v601
    %v1285 = vunpack.c.h.b16 %v601
    %v1286 = vunpack.c.l.b16 %v602
    %v1287 = vunpack.c.h.b16 %v602
    %v1288 = vunpack.c.l.b16 %v603
    %v1289 = vunpack.c.h.b16 %v603
    %v1290 = vunpack.c.l.b16 %v604
    %v1291 = vunpack.c.h.b16 %v604
    %v1292 = vunpack.c.l.b16 %v605
    %v1293 = vunpack.c.h.b16 %v605
    %v1294 = vunpack.c.l.b16 %v606
    %v1295 = vunpack.c.h.b16 %v606
    %v1296 = vunpack.c.l.b16 %v607
    %v1297 = vunpack.c.h.b16 %v607
    %v1298 = vunpack.c.l.b16 %v608
    %v1299 = vunpack.c.h.b16 %v608
    %v1300 = vunpack.c.l.b16 %v609
    %v1301 = vunpack.c.h.b16 %v609
    %v1302 = vunpack.c.l.b16 %v610
    %v1303 = vunpack.c.h.b16 %v610
    %v1304 = vunpack.c.l.b16 %v611
    %v1305 = vunpack.c.h.b16 %v611
    %v1306 = vunpack.c.l.b16 %v612
    %v1307 = vunpack.c.h.b16 %v612
    %v1308 = vunpack.c.l.b16 %v613
    %v1309 = vunpack.c.h.b16 %v613
    %v1310 = vunpack.c.l.b16 %v614
    %v1311 = vunpack.c.h.b16 %v614
    %v1312 = vunpack.c.l.b16 %v615
    %v1313 = vunpack.c.h.b16 %v615
    %v1314 = vunpack.c.l.b16 %v616
    %v1315 = vunpack.c.h.b16 %v616
    %v1316 = vunpack.c.l.b16 %v617
    %v1317 = vunpack.c.h.b16 %v617
    %v1318 = vunpack.c.l.b16 %v618
    %v1319 = vunpack.c.h.b16 %v618
    %v1320 = vunpack.c.l.b16 %v619
    %v1321 = vunpack.c.h.b16 %v619
    %v1322 = vunpack.c.l.b16 %v620
    %v1323 = vunpack.c.h.b16 %v620
    %v1324 = vunpack.c.l.b16 %v621
    %v1325 = vunpack.c.h.b16 %v621
    %v1326 = vunpack.c.l.b16 %v622
    %v1327 = vunpack.c.h.b16 %v622
    %v1328 = vunpack.c.l.b16 %v623
    %v1329 = vunpack.c.h.b16 %v623
    %v1330 = vunpack.c.l.b16 %v624
    %v1331 = vunpack.c.h.b16 %v624
    %v1332 = vunpack.c.l.b16 %v625
    %v1333 = vunpack.c.h.b16 %v625
    %v1334 = vunpack.c.l.b16 %v626
    %v1335 = vunpack.c.h.b16 %v626
    %v1336 = vunpack.c.l.b16 %v627
    %v1337 = vunpack.c.h.b16 %v627
    %v1338 = vunpack.c.l.b16 %v628
    %v1339 = vunpack.c.h.b16 %v628
    %v1340 = vunpack.c.l.b16 %v629
    %v1341 = vunpack.c.h.b16 %v629
    %v1342 = vunpack.c.l.b16 %v630
    %v1343 = vunpack.c.h.b16 %v630
    %v1344 = vunpack.c.l.b16 %v631
    %v1345 = vunpack.c.h.b16 %v631
    %v1346 = vunpack.c.l.b16 %v632
    %v1347 = vunpack.c.h.b16 %v632
    %v1348 = vunpack.c.l.b16 %v633
    %v1349 = vunpack.c.h.b16 %v633
    %v1350 = vunpack.c.l.b16 %v634
    %v1351 = vunpack.c.h.b16 %v634
    %v1352 = vunpack.c.l.b16 %v635
    %v1353 = vunpack.c.h.b16 %v635
    %v1354 = vunpack.c.l.b16 %v636
    %v1355 = vunpack.c.h.b16 %v636
    %v1356 = vunpack.c.l.b16 %v637
    %v1357 = vunpack.c.h.b16 %v637
    %v1358 = vunpack.c.l.b16 %v638
    %v1359 = vunpack.c.h.b16 %v638
    %v1360 = vunpack.c.l.b16 %v639
    %v1361 = vunpack.c.h.b16 %v639
    %v1362 = vunpack.c.l.b16 %v640
    %v1363 = vunpack.c.h.b16 %v640
    %v1364 = vunpack.c.l.b16 %v641
    %v1365 = vunpack.c.h.b16 %v641
    %v1366 = vunpack.c.l.b16 %v642
    %v1367 = vunpack.c.h.b16 %v642
    %v1368 = vunpack.c.l.b16 %v643
    %v1369 = vunpack.c.h.b16 %v643
    %v1370 = vunpack.c.l.b16 %v644
    %v1371 = vunpack.c.h.b16 %v644
    %v1372 = vunpack.c.l.b16 %v645
    %v1373 = vunpack.c.h.b16 %v645
    %v1374 = vunpack.c.l.b16 %v646
    %v1375 = vunpack.c.h.b16 %v646
    %v1376 = vunpack.c.l.b16 %v647
    %v1377 = vunpack.c.h.b16 %v647
    %v1378 = vunpack.c.l.b16 %v648
    %v1379 = vunpack.c.h.b16 %v648
    %v1380 = vunpack.c.l.b16 %v649
    %v1381 = vunpack.c.h.b16 %v649
    %v1382 = vunpack.c.l.b16 %v650
    %v1383 = vunpack.c.h.b16 %v650
    %v1384 = vunpack.c.l.b16 %v651
    %v1385 = vunpack.c.h.b16 %v651
    %v1386 = vunpack.c.l.b16 %v652
    %v1387 = vunpack.c.h.b16 %v652
    %v1388 = vunpack.c.l.b16 %v653
    %v1389 = vunpack.c.h.b16 %v653
    %v1390 = vunpack.c.l.b16 %v654
    %v1391 = vunpack.c.h.b16 %v654
    %v1392 = vunpack.c.l.b16 %v655
    %v1393 = vunpack.c.h.b16 %v655
    %v1394 = vunpack.c.l.b16 %v656
    %v1395 = vunpack.c.h.b16 %v656
    %v1396 = vunpack.c.l.b16 %v657
    %v1397 = vunpack.c.h.b16 %v657
    %v1398 = vunpack.c.l.b16 %v658
    %v1399 = vunpack.c.h.b16 %v658
    %v1400 = vunpack.c.l.b16 %v659
    %v1401 = vunpack.c.h.b16 %v659
    %v1402 = vunpack.c.l.b16 %v660
    %v1403 = vunpack.c.h.b16 %v660
    %v1404 = vunpack.c.l.b16 %v661
    %v1405 = vunpack.c.h.b16 %v661
    %v1406 = vunpack.c.l.b16 %v662
    %v1407 = vunpack.c.h.b16 %v662
    %v1408 = vunpack.c.l.b16 %v663
    %v1409 = vunpack.c.h.b16 %v663
    %v1410 = vunpack.c.l.b16 %v664
    %v1411 = vunpack.c.h.b16 %v664
    %v1412 = vunpack.c.l.b16 %v665
    %v1413 = vunpack.c.h.b16 %v665
    %v1414 = vunpack.c.l.b16 %v666
    %v1415 = vunpack.c.h.b16 %v666
    %v1416 = vunpack.c.l.b16 %v667
    %v1417 = vunpack.c.h.b16 %v667
    %v1418 = vunpack.c.l.b16 %v668
    %v1419 = vunpack.c.h.b16 %v668
    %v1420 = vunpack.c.l.b16 %v669
    %v1421 = vunpack.c.h.b16 %v669
    %v1422 = vunpack.c.l.b16 %v670
    %v1423 = vunpack.c.h.b16 %v670
    %v1424 = vunpack.c.l.b16 %v671
    %v1425 = vunpack.c.h.b16 %v671
    %v1426 = vunpack.c.l.b16 %v672
    %v1427 = vunpack.c.h.b16 %v672
    %v1428 = vunpack.c.l.b16 %v673
    %v1429 = vunpack.c.h.b16 %v673
    %v1430 = vunpack.c.l.b16 %v674
    %v1431 = vunpack.c.h.b16 %v674
    %v1432 = vunpack.c.l.b16 %v675
    %v1433 = vunpack.c.h.b16 %v675
    %v1434 = vunpack.c.l.b16 %v676
    %v1435 = vunpack.c.h.b16 %v676
    %v1436 = vunpack.c.l.b16 %v677
    %v1437 = vunpack.c.h.b16 %v677
    %v1438 = vunpack.c.l.b16 %v678
    %v1439 = vunpack.c.h.b16 %v678
    %v1440 = vunpack.c.l.b16 %v679
    %v1441 = vunpack.c.h.b16 %v679
    %v1442 = vunpack.c.l.b16 %v680
    %v1443 = vunpack.c.h.b16 %v680
    %v1444 = vunpack.c.l.b16 %v681
    %v1445 = vunpack.c.h.b16 %v681
    %v1446 = vunpack.c.l.b16 %v682
    %v1447 = vunpack.c.h.b16 %v682
    %v1448 = vunpack.c.l.b16 %v683
    %v1449 = vunpack.c.h.b16 %v683
    %v1450 = vunpack.c.l.b16 %v684
    %v1451 = vunpack.c.h.b16 %v684
    %v1452 = vunpack.c.l.b16 %v685
    %v1453 = vunpack.c.h.b16 %v685
    %v1454 = vunpack.c.l.b16 %v686
    %v1455 = vunpack.c.h.b16 %v686
    %v1456 = vunpack.c.l.b16 %v687
    %v1457 = vunpack.c.h.b16 %v687
    %v1458 = vunpack.c.l.b16 %v688
    %v1459 = vunpack.c.h.b16 %v688
    %v1460 = vunpack.c.l.b16 %v689
    %v1461 = vunpack.c.h.b16 %v689
    %v1462 = vunpack.c.l.b16 %v690
    %v1463 = vunpack.c.h.b16 %v690
    %v1464 = vunpack.c.l.b16 %v691
    %v1465 = vunpack.c.h.b16 %v691
    %v1466 = vunpack.c.l.b16 %v692
    %v1467 = vunpack.c.h.b16 %v692
    %v1468 = vunpack.c.l.b16 %v693
    %v1469 = vunpack.c.h.b16 %v693
    %v1470 = vunpack.c.l.b16 %v694
    %v1471 = vunpack.c.h.b16 %v694
    %v1472 = vunpack.c.l.b16 %v695
    %v1473 = vunpack.c.h.b16 %v695
    %v1474 = vunpack.c.l.b16 %v696
    %v1475 = vunpack.c.h.b16 %v696
    %v1476 = vunpack.c.l.b16 %v697
    %v1477 = vunpack.c.h.b16 %v697
    %v1478 = vunpack.c.l.b16 %v698
    %v1479 = vunpack.c.h.b16 %v698
    %v1480 = vunpack.c.l.b16 %v699
    %v1481 = vunpack.c.h.b16 %v699
    %v1482 = vunpack.c.l.b16 %v700
    %v1483 = vunpack.c.h.b16 %v700
    %v1484 = vunpack.c.l.b16 %v701
    %v1485 = vunpack.c.h.b16 %v701
    %v1486 = vunpack.c.l.b16 %v702
    %v1487 = vunpack.c.h.b16 %v702
    %v1488 = vunpack.c.l.b16 %v703
    %v1489 = vunpack.c.h.b16 %v703
    %v1490 = vunpack.c.l.b16 %v704
    %v1491 = vunpack.c.h.b16 %v704
    %v1492 = vunpack.c.l.b16 %v705
    %v1493 = vunpack.c.h.b16 %v705
    %v1494 = vunpack.c.l.b16 %v706
    %v1495 = vunpack.c.h.b16 %v706
    %v1496 = vunpack.c.l.b16 %v707
    %v1497 = vunpack.c.h.b16 %v707
    %v1498 = vunpack.c.l.b16 %v708
    %v1499 = vunpack.c.h.b16 %v708
    %v1500 = vunpack.c.l.b16 %v709
    %v1501 = vunpack.c.h.b16 %v709
    %v1502 = vunpack.c.l.b16 %v710
    %v1503 = vunpack.c.h.b16 %v710
    %v1504 = vunpack.c.l.b16 %v711
    %v1505 = vunpack.c.h.b16 %v711
    %v1506 = vunpack.c.l.b16 %v712
    %v1507 = vunpack.c.h.b16 %v712
    %v1508 = vunpack.c.l.b16 %v713
    %v1509 = vunpack.c.h.b16 %v713
    %v1510 = vunpack.c.l.b16 %v714
    %v1511 = vunpack.c.h.b16 %v714
    %v1512 = vunpack.c.l.b16 %v715
    %v1513 = vunpack.c.h.b16 %v715
    %v1514 = vunpack.c.l.b16 %v716
    %v1515 = vunpack.c.h.b16 %v716
    %v1516 = vunpack.c.l.b16 %v717
    %v1517 = vunpack.c.h.b16 %v717
    %v1518 = vunpack.c.l.b16 %v718
    %v1519 = vunpack.c.h.b16 %v718
    %v1520 = vunpack.c.l.b16 %v719
    %v1521 = vunpack.c.h.b16 %v719
    %v1522 = vunpack.c.l.b16 %v720
    %v1523 = vunpack.c.h.b16 %v720
    %v1524 = vunpack.c.l.b16 %v721
    %v1525 = vunpack.c.h.b16 %v721
    %v1526 = vunpack.c.l.b16 %v722
    %v1527 = vunpack.c.h.b16 %v722
    %v1528 = vunpack.c.l.b16 %v723
    %v1529 = vunpack.c.h.b16 %v723
    %v1530 = vunpack.c.l.b16 %v724
    %v1531 = vunpack.c.h.b16 %v724
    %v1532 = vunpack.c.l.b16 %v725
    %v1533 = vunpack.c.h.b16 %v725
    %v1534 = vunpack.c.l.b16 %v726
    %v1535 = vunpack.c.h.b16 %v726
    %v1536 = vunpack.c.l.b16 %v727
    %v1537 = vunpack.c.h.b16 %v727
    %v1538 = vunpack.c.l.b16 %v728
    %v1539 = vunpack.c.h.b16 %v728
    %v1540 = vunpack.c.l.b16 %v729
    %v1541 = vunpack.c.h.b16 %v729
    %v1542 = vunpack.c.l.b16 %v730
    %v1543 = vunpack.c.h.b16 %v730
    %v1544 = vunpack.c.l.b16 %v731
    %v1545 = vunpack.c.h.b16 %v731
    %v1546 = vunpack.c.l.b16 %v732
    %v1547 = vunpack.c.h.b16 %v732
    %v1548 = vunpack.c.l.b16 %v733
    %v1549 = vunpack.c.h.b16 %v733
    %v1550 = vunpack.c.l.b16 %v734
    %v1551 = vunpack.c.h.b16 %v734
    %v1552 = vunpack.c.l.b16 %v735
    %v1553 = vunpack.c.h.b16 %v735
    %v1554 = vunpack.c.l.b16 %v736
    %v1555 = vunpack.c.h.b16 %v736
    %v1556 = vunpack.c.l.b16 %v737
    %v1557 = vunpack.c.h.b16 %v737
    %v1558 = vunpack.c.l.b16 %v738
    %v1559 = vunpack.c.h.b16 %v738
    %v1560 = vunpack.c.l.b16 %v739
    %v1561 = vunpack.c.h.b16 %v739
    %v1562 = vunpack.c.l.b16 %v740
    %v1563 = vunpack.c.h.b16 %v740
    %v1564 = vunpack.c.l.b16 %v741
    %v1565 = vunpack.c.h.b16 %v741
    %v1566 = vunpack.c.l.b16 %v742
    %v1567 = vunpack.c.h.b16 %v742
    %v1568 = vunpack.c.l.b16 %v743
    %v1569 = vunpack.c.h.b16 %v743
    %v1570 = vunpack.c.l.b16 %v744
    %v1571 = vunpack.c.h.b16 %v744
    %v1572 = vunpack.c.l.b16 %v745
    %v1573 = vunpack.c.h.b16 %v745
    %v1574 = vunpack.c.l.b16 %v746
    %v1575 = vunpack.c.h.b16 %v746
    %v1576 = vunpack.c.l.b16 %v747
    %v1577 = vunpack.c.h.b16 %v747
    %v1578 = vunpack.c.l.b16 %v748
    %v1579 = vunpack.c.h.b16 %v748
    %v1580 = vunpack.c.l.b16 %v749
    %v1581 = vunpack.c.h.b16 %v749
    %v1582 = vunpack.c.l.b16 %v750
    %v1583 = vunpack.c.h.b16 %v750
    %v1584 = vunpack.c.l.b16 %v751
    %v1585 = vunpack.c.h.b16 %v751
    %v1586 = vunpack.c.l.b16 %v752
    %v1587 = vunpack.c.h.b16 %v752
    %v1588 = vunpack.c.l.b16 %v753
    %v1589 = vunpack.c.h.b16 %v753
    %v1590 = vunpack.c.l.b16 %v754
    %v1591 = vunpack.c.h.b16 %v754
    %v1592 = vunpack.c.l.b16 %v755
    %v1593 = vunpack.c.h.b16 %v755
    %v1594 = vunpack.c.l.b16 %v756
    %v1595 = vunpack.c.h.b16 %v756
    %v1596 = vunpack.c.l.b16 %v757
    %v1597 = vunpack.c.h.b16 %v757
    %v1598 = vunpack.c.l.b16 %v758
    %v1599 = vunpack.c.h.b16 %v758
    %v1600 = vunpack.c.l.b16 %v759
    %v1601 = vunpack.c.h.b16 %v759
    %v1602 = vunpack.c.l.b16 %v760
    %v1603 = vunpack.c.h.b16 %v760
    %v1604 = vunpack.c.l.b16 %v761
    %v1605 = vunpack.c.h.b16 %v761
    %v1606 = vunpack.c.l.b16 %v762
    %v1607 = vunpack.c.h.b16 %v762
    %v1608 = vunpack.c.l.b16 %v763
    %v1609 = vunpack.c.h.b16 %v763
    %v1610 = vunpack.c.l.b16 %v764
    %v1611 = vunpack.c.h.b16 %v764
    %v1612 = vunpack.c.l.b16 %v765
    %v1613 = vunpack.c.h.b16 %v765
    %v1614 = vunpack.c.l.b16 %v766
    %v1615 = vunpack.c.h.b16 %v766
    %v1616 = vunpack.c.l.b16 %v767
    %v1617 = vunpack.c.h.b16 %v767
    %v1618 = vunpack.c.l.b16 %v768
    %v1619 = vunpack.c.h.b16 %v768
    %v1620 = vunpack.c.l.b16 %v769
    %v1621 = vunpack.c.h.b16 %v769
    %v1622 = vunpack.c.l.b16 %v770
    %v1623 = vunpack.c.h.b16 %v770
    %v1624 = vunpack.c.l.b16 %v771
    %v1625 = vunpack.c.h.b16 %v771
    %v1626 = vunpack.c.l.b16 %v772
    %v1627 = vunpack.c.h.b16 %v772
    %v1628 = vunpack.c.l.b16 %v773
    %v1629 = vunpack.c.h.b16 %v773
    %v1630 = vunpack.c.l.b16 %v774
    %v1631 = vunpack.c.h.b16 %v774
    %v1632 = vunpack.c.l.b16 %v775
    %v1633 = vunpack.c.h.b16 %v775
    %v1634 = vunpack.c.l.b16 %v776
    %v1635 = vunpack.c.h.b16 %v776
    %v1636 = vunpack.c.l.b16 %v777
    %v1637 = vunpack.c.h.b16 %v777
    %v1638 = vunpack.c.l.b16 %v778
    %v1639 = vunpack.c.h.b16 %v778
    %v1640 = vunpack.c.l.b16 %v779
    %v1641 = vunpack.c.h.b16 %v779
    %v1642 = vunpack.c.l.b16 %v780
    %v1643 = vunpack.c.h.b16 %v780
    %v1644 = vunpack.c.l.b16 %v781
    %v1645 = vunpack.c.h.b16 %v781
    %v1646 = vpack.c.b16 %v1076, %v1070
    %v1647 = vpack.c.b16 %v1077, %v1071
    %v1648 = vpack.c.b16 %v1078, %v1072
    %v1649 = vpack.c.b16 %v1079, %v1073
    %v1650 = vpack.c.b16 %v1080, %v1074
    %v1651 = vpack.c.b16 %v1081, %v1075
    %v1652 = vpack.c.b16 %v1088, %v1082
    %v1653 = vpack.c.b16 %v1089, %v1083
    %v1654 = vpack.c.b16 %v1090, %v1084
    %v1655 = vpack.c.b16 %v1091, %v1085
    %v1656 = vpack.c.b16 %v1092, %v1086
    %v1657 = vpack.c.b16 %v1093, %v1087
    %v1658 = vpack.c.b16 %v1100, %v1094
    %v1659 = vpack.c.b16 %v1101, %v1095
    %v1660 = vpack.c.b16 %v1102, %v1096
    %v1661 = vpack.c.b16 %v1103, %v1097
    %v1662 = vpack.c.b16 %v1104, %v1098
    %v1663 = vpack.c.b16 %v1105, %v1099
    %v1664 = vpack.c.b16 %v1112, %v1106
    %v1665 = vpack.c.b16 %v1113, %v1107
    %v1666 = vpack.c.b16 %v1114, %v1108
    %v1667 = vpack.c.b16 %v1115, %v1109
    %v1668 = vpack.c.b16 %v1116, %v1110
    %v1669 = vpack.c.b16 %v1117, %v1111
    %v1670 = vpack.c.b16 %v1124, %v1118
    %v1671 = vpack.c.b16 %v1125, %v1119
    %v1672 = vpack.c.b16 %v1126, %v1120
    %v1673 = vpack.c.b16 %v1127, %v1121
    %v1674 = vpack.c.b16 %v1128, %v1122
    %v1675 = vpack.c.b16 %v1129, %v1123
    %v1676 = vpack.c.b16 %v1136, %v1130
    %v1677 = vpack.c.b16 %v1137, %v1131
    %v1678 = vpack.c.b16 %v1138, %v1132
    %v1679 = vpack.c.b16 %v1139, %v1133
    %v1680 = vpack.c.b16 %v1140, %v1134
    %v1681 = vpack.c.b16 %v1141, %v1135
    %v1682 = vpack.c.b16 %v1148, %v1142
    %v1683 = vpack.c.b16 %v1149, %v1143
    %v1684 = vpack.c.b16 %v1150, %v1144
    %v1685 = vpack.c.b16 %v1151, %v1145
    %v1686 = vpack.c.b16 %v1152, %v1146
    %v1687 = vpack.c.b16 %v1153, %v1147
    %v1688 = vpack.c.b16 %v1160, %v1154
    %v1689 = vpack.c.b16 %v1161, %v1155
    %v1690 = vpack.c.b16 %v1162, %v1156
    %v1691 = vpack.c.b16 %v1163, %v1157
    %v1692 = vpack.c.b16 %v1164, %v1158
    %v1693 = vpack.c.b16 %v1165, %v1159
    %v1694 = vpack.c.b16 %v1172, %v1166
    %v1695 = vpack.c.b16 %v1173, %v1167
    %v1696 = vpack.c.b16 %v1174, %v1168
    %v1697 = vpack.c.b16 %v1175, %v1169
    %v1698 = vpack.c.b16 %v1176, %v1170
    %v1699 = vpack.c.b16 %v1177, %v1171
    %v1700 = vpack.c.b16 %v1184, %v1178
    %v1701 = vpack.c.b16 %v1185, %v1179
    %v1702 = vpack.c.b16 %v1186, %v1180
    %v1703 = vpack.c.b16 %v1187, %v1181
    %v1704 = vpack.c.b16 %v1188, %v1182
    %v1705 = vpack.c.b16 %v1189, %v1183
    %v1706 = vpack.c.b16 %v1196, %v1190
    %v1707 = vpack.c.b16 %v1197, %v1191
    %v1708 = vpack.c.b16 %v1198, %v1192
    %v1709 = vpack.c.b16 %v1199, %v1193
    %v1710 = vpack.c.b16 %v1200, %v1194
    %v1711 = vpack.c.b16 %v1201, %v1195
    %v1712 = vpack.c.b16 %v1208, %v1202
    %v1713 = vpack.c.b16 %v1209, %v1203
    %v1714 = vpack.c.b16 %v1210, %v1204
    %v1715 = vpack.c.b16 %v1211, %v1205
    %v1716 = vpack.c.b16 %v1212, %v1206
    %v1717 = vpack.c.b16 %v1213, %v1207
    %v1718 = vpack.c.b16 %v1220, %v1214
    %v1719 = vpack.c.b16 %v1221, %v1215
    %v1720 = vpack.c.b16 %v1222, %v1216
    %v1721 = vpack.c.b16 %v1223, %v1217
    %v1722 = vpack.c.b16 %v1224, %v1218
    %v1723 = vpack.c.b16 %v1225, %v1219
    %v1724 = vpack.c.b16 %v1232, %v1226
    %v1725 = vpack.c.b16 %v1233, %v1227
    %v1726 = vpack.c.b16 %v1234, %v1228
    %v1727 = vpack.c.b16 %v1235, %v1229
    %v1728 = vpack.c.b16 %v1236, %v1230
    %v1729 = vpack.c.b16 %v1237, %v1231
    %v1730 = vpack.c.b16 %v1244, %v1238
    %v1731 = vpack.c.b16 %v1245, %v1239
    %v1732 = vpack.c.b16 %v1246, %v1240
    %v1733 = vpack.c.b16 %v1247, %v1241
    %v1734 = vpack.c.b16 %v1248, %v1242
    %v1735 = vpack.c.b16 %v1249, %v1243
    %v1736 = vpack.c.b16 %v1256, %v1250
    %v1737 = vpack.c.b16 %v1257, %v1251
    %v1738 = vpack.c.b16 %v1258, %v1252
    %v1739 = vpack.c.b16 %v1259, %v1253
    %v1740 = vpack.c.b16 %v1260, %v1254
    %v1741 = vpack.c.b16 %v1261, %v1255
    %v1742 = vpack.c.b16 %v1268, %v1262
    %v1743 = vpack.c.b16 %v1269, %v1263
    %v1744 = vpack.c.b16 %v1270, %v1264
    %v1745 = vpack.c.b16 %v1271, %v1265
    %v1746 = vpack.c.b16 %v1272, %v1266
    %v1747 = vpack.c.b16 %v1273, %v1267
    %v1748 = vpack.c.b16 %v1280, %v1274
    %v1749 = vpack.c.b16 %v1281, %v1275
    %v1750 = vpack.c.b16 %v1282, %v1276
    %v1751 = vpack.c.b16 %v1283, %v1277
    %v1752 = vpack.c.b16 %v1284, %v1278
    %v1753 = vpack.c.b16 %v1285, %v1279
    %v1754 = vpack.c.b16 %v1292, %v1286
    %v1755 = vpack.c.b16 %v1293, %v1287
    %v1756 = vpack.c.b16 %v1294, %v1288
    %v1757 = vpack.c.b16 %v1295, %v1289
    %v1758 = vpack.c.b16 %v1296, %v1290
    %v1759 = vpack.c.b16 %v1297, %v1291
    %v1760 = vpack.c.b16 %v1304, %v1298
    %v1761 = vpack.c.b16 %v1305, %v1299
    %v1762 = vpack.c.b16 %v1306, %v1300
    %v1763 = vpack.c.b16 %v1307, %v1301
    %v1764 = vpack.c.b16 %v1308, %v1302
    %v1765 = vpack.c.b16 %v1309, %v1303
    %v1766 = vpack.c.b16 %v1316, %v1310
    %v1767 = vpack.c.b16 %v1317, %v1311
    %v1768 = vpack.c.b16 %v1318, %v1312
    %v1769 = vpack.c.b16 %v1319, %v1313
    %v1770 = vpack.c.b16 %v1320, %v1314
    %v1771 = vpack.c.b16 %v1321, %v1315
    %v1772 = vpack.c.b16 %v1328, %v1322
    %v1773 = vpack.c.b16 %v1329, %v1323
    %v1774 = vpack.c.b16 %v1330, %v1324
    %v1775 = vpack.c.b16 %v1331, %v1325
    %v1776 = vpack.c.b16 %v1332, %v1326
    %v1777 = vpack.c.b16 %v1333, %v1327
    %v1778 = vpack.c.b16 %v1340, %v1334
    %v1779 = vpack.c.b16 %v1341, %v1335
    %v1780 = vpack.c.b16 %v1342, %v1336
    %v1781 = vpack.c.b16 %v1343, %v1337
    %v1782 = vpack.c.b16 %v1344, %v1338
    %v1783 = vpack.c.b16 %v1345, %v1339
    %v1784 = vpack.c.b16 %v1352, %v1346
    %v1785 = vpack.c.b16 %v1353, %v1347
    %v1786 = vpack.c.b16 %v1354, %v1348
    %v1787 = vpack.c.b16 %v1355, %v1349
    %v1788 = vpack.c.b16 %v1356, %v1350
    %v1789 = vpack.c.b16 %v1357, %v1351
    %v1790 = vpack.c.b16 %v1364, %v1358
    %v1791 = vpack.c.b16 %v1365, %v1359
    %v1792 = vpack.c.b16 %v1366, %v1360
    %v1793 = vpack.c.b16 %v1367, %v1361
    %v1794 = vpack.c.b16 %v1368, %v1362
    %v1795 = vpack.c.b16 %v1369, %v1363
    %v1796 = vpack.c.b16 %v1376, %v1370
    %v1797 = vpack.c.b16 %v1377, %v1371
    %v1798 = vpack.c.b16 %v1378, %v1372
    %v1799 = vpack.c.b16 %v1379, %v1373
    %v1800 = vpack.c.b16 %v1380, %v1374
    %v1801 = vpack.c.b16 %v1381, %v1375
    %v1802 = vpack.c.b16 %v1388, %v1382
    %v1803 = vpack.c.b16 %v1389, %v1383
    %v1804 = vpack.c.b16 %v1390, %v1384
    %v1805 = vpack.c.b16 %v1391, %v1385
    %v1806 = vpack.c.b16 %v1392, %v1386
    %v1807 = vpack.c.b16 %v1393, %v1387
    %v1808 = vpack.c.b16 %v1400, %v1394
    %v1809 = vpack.c.b16 %v1401, %v1395
    %v1810 = vpack.c.b16 %v1402, %v1396
    %v1811 = vpack.c.b16 %v1403, %v1397
    %v1812 = vpack.c.b16 %v1404, %v1398
    %v1813 = vpack.c.b16 %v1405, %v1399
    %v1814 = vpack.c.b16 %v1412, %v1406
    %v1815 = vpack.c.b16 %v1413, %v1407
    %v1816 = vpack.c.b16 %v1414, %v1408
    %v1817 = vpack.c.b16 %v1415, %v1409
    %v1818 = vpack.c.b16 %v1416, %v1410
    %v1819 = vpack.c.b16 %v1417, %v1411
    %v1820 = vpack.c.b16 %v1424, %v1418
    %v1821 = vpack.c.b16 %v1425, %v1419
    %v1822 = vpack.c.b16 %v1426, %v1420
    %v1823 = vpack.c.b16 %v1427, %v1421
    %v1824 = vpack.c.b16 %v1428, %v1422
    %v1825 = vpack.c.b16 %v1429, %v1423
    %v1826 = vpack.c.b16 %v1436, %v1430
    %v1827 = vpack.c.b16 %v1437, %v1431
    %v1828 = vpack.c.b16 %v1438, %v1432
    %v1829 = vpack.c.b16 %v1439, %v1433
    %v1830 = vpack.c.b16 %v1440, %v1434
    %v1831 = vpack.c.b16 %v1441, %v1435
    %v1832 = vpack.c.b16 %v1448, %v1442
    %v1833 = vpack.c.b16 %v1449, %v1443
    %v1834 = vpack.c.b16 %v1450, %v1444
    %v1835 = vpack.c.b16 %v1451, %v1445
    %v1836 = vpack.c.b16 %v1452, %v1446
    %v1837 = vpack.c.b16 %v1453, %v1447
    %v1838 = vpack.c.b16 %v1460, %v1454
    %v1839 = vpack.c.b16 %v1461, %v1455
    %v1840 = vpack.c.b16 %v1462, %v1456
    %v1841 = vpack.c.b16 %v1463, %v1457
    %v1842 = vpack.c.b16 %v1464, %v1458
    %v1843 = vpack.c.b16 %v1465, %v1459
    %v1844 = vpack.c.b16 %v1472, %v1466
    %v1845 = vpack.c.b16 %v1473, %v1467
    %v1846 = vpack.c.b16 %v1474, %v1468
    %v1847 = vpack.c.b16 %v1475, %v1469
    %v1848 = vpack.c.b16 %v1476, %v1470
    %v1849 = vpack.c.b16 %v1477, %v1471
    %v1850 = vpack.c.b16 %v1484, %v1478
    %v1851 = vpack.c.b16 %v1485, %v1479
    %v1852 = vpack.c.b16 %v1486, %v1480
    %v1853 = vpack.c.b16 %v1487, %v1481
    %v1854 = vpack.c.b16 %v1488, %v1482
    %v1855 = vpack.c.b16 %v1489, %v1483
    %v1856 = vpack.c.b16 %v1496, %v1490
    %v1857 = vpack.c.b16 %v1497, %v1491
    %v1858 = vpack.c.b16 %v1498, %v1492
    %v1859 = vpack.c.b16 %v1499, %v1493
    %v1860 = vpack.c.b16 %v1500, %v1494
    %v1861 = vpack.c.b16 %v1501, %v1495
    %v1862 = vpack.c.b16 %v1508, %v1502
    %v1863 = vpack.c.b16 %v1509, %v1503
    %v1864 = vpack.c.b16 %v1510, %v1504
    %v1865 = vpack.c.b16 %v1511, %v1505
    %v1866 = vpack.c.b16 %v1512, %v1506
    %v1867 = vpack.c.b16 %v1513, %v1507
    %v1868 = vpack.c.b16 %v1520, %v1514
    %v1869 = vpack.c.b16 %v1521, %v1515
    %v1870 = vpack.c.b16 %v1522, %v1516
    %v1871 = vpack.c.b16 %v1523, %v1517
    %v1872 = vpack.c.b16 %v1524, %v1518
    %v1873 = vpack.c.b16 %v1525, %v1519
    %v1874 = vpack.c.b16 %v1532, %v1526
    %v1875 = vpack.c.b16 %v1533, %v1527
    %v1876 = vpack.c.b16 %v1534, %v1528
    %v1877 = vpack.c.b16 %v1535, %v1529
    %v1878 = vpack.c.b16 %v1536, %v1530
    %v1879 = vpack.c.b16 %v1537, %v1531
    %v1880 = vpack.c.b16 %v1544, %v1538
    %v1881 = vpack.c.b16 %v1545, %v1539
    %v1882 = vpack.c.b16 %v1546, %v1540
    %v1883 = vpack.c.b16 %v1547, %v1541
    %v1884 = vpack.c.b16 %v1548, %v1542
    %v1885 = vpack.c.b16 %v1549, %v1543
    %v1886 = vpack.c.b16 %v1556, %v1550
    %v1887 = vpack.c.b16 %v1557, %v1551
    %v1888 = vpack.c.b16 %v1558, %v1552
    %v1889 = vpack.c.b16 %v1559, %v1553
    %v1890 = vpack.c.b16 %v1560, %v1554
    %v1891 = vpack.c.b16 %v1561, %v1555
    %v1892 = vpack.c.b16 %v1568, %v1562
    %v1893 = vpack.c.b16 %v1569, %v1563
    %v1894 = vpack.c.b16 %v1570, %v1564
    %v1895 = vpack.c.b16 %v1571, %v1565
    %v1896 = vpack.c.b16 %v1572, %v1566
    %v1897 = vpack.c.b16 %v1573, %v1567
    %v1898 = vpack.c.b16 %v1580, %v1574
    %v1899 = vpack.c.b16 %v1581, %v1575
    %v1900 = vpack.c.b16 %v1582, %v1576
    %v1901 = vpack.c.b16 %v1583, %v1577
    %v1902 = vpack.c.b16 %v1584, %v1578
    %v1903 = vpack.c.b16 %v1585, %v1579
    %v1904 = vpack.c.b16 %v1592, %v1586
    %v1905 = vpack.c.b16 %v1593, %v1587
    %v1906 = vpack.c.b16 %v1594, %v1588
    %v1907 = vpack.c.b16 %v1595, %v1589
    %v1908 = vpack.c.b16 %v1596, %v1590
    %v1909 = vpack.c.b16 %v1597, %v1591
    %v1910 = vpack.c.b16 %v1604, %v1598
    %v1911 = vpack.c.b16 %v1605, %v1599
    %v1912 = vpack.c.b16 %v1606, %v1600
    %v1913 = vpack.c.b16 %v1607, %v1601
    %v1914 = vpack.c.b16 %v1608, %v1602
    %v1915 = vpack.c.b16 %v1609, %v1603
    %v1916 = vpack.c.b16 %v1616, %v1610
    %v1917 = vpack.c.b16 %v1617, %v1611
    %v1918 = vpack.c.b16 %v1618, %v1612
    %v1919 = vpack.c.b16 %v1619, %v1613
    %v1920 = vpack.c.b16 %v1620, %v1614
    %v1921 = vpack.c.b16 %v1621, %v1615
    %v1922 = vpack.c.b16 %v1628, %v1622
    %v1923 = vpack.c.b16 %v1629, %v1623
    %v1924 = vpack.c.b16 %v1630, %v1624
    %v1925 = vpack.c.b16 %v1631, %v1625
    %v1926 = vpack.c.b16 %v1632, %v1626
    %v1927 = vpack.c.b16 %v1633, %v1627
    %v1928 = vpack.c.b16 %v1640, %v1634
    %v1929 = vpack.c.b16 %v1641, %v1635
    %v1930 = vpack.c.b16 %v1642, %v1636
    %v1931 = vpack.c.b16 %v1643, %v1637
    %v1932 = vpack.c.b16 %v1644, %v1638
    %v1933 = vpack.c.b16 %v1645, %v1639
    %2222 = vmatprep.subr.bf16.mxu0 %v1647
    %2223 = vmatpush1.bf16.msra.mxu0 %v1646
    %2224 = vmatprep.subr.bf16.mxu0 %v1653
    %2225 = vmatpush1.bf16.msra.mxu0 %v1652
    %2226 = vmatprep.subr.bf16.mxu0 %v1659
    %2227 = vmatpush1.bf16.msra.mxu0 %v1658
    %2228 = vmatprep.subr.bf16.mxu0 %v1665
    %2229 = vmatpush1.bf16.msra.mxu0 %v1664
    %2230 = vmatprep.subr.bf16.mxu0 %v1671
    %2231 = vmatpush1.bf16.msra.mxu0 %v1670
    %2232 = vmatprep.subr.bf16.mxu0 %v1677
    %2233 = vmatpush1.bf16.msra.mxu0 %v1676
    %2234 = vmatprep.subr.bf16.mxu0 %v1683
    %2235 = vmatpush1.bf16.msra.mxu0 %v1682
    %2236 = vmatprep.subr.bf16.mxu0 %v1689
    %2237 = vmatpush1.bf16.msra.mxu0 %v1688
    %2238 = vmatprep.subr.bf16.mxu0 %v1695
    %2239 = vmatpush1.bf16.msra.mxu0 %v1694
    %2240 = vmatprep.subr.bf16.mxu0 %v1701
    %2241 = vmatpush1.bf16.msra.mxu0 %v1700
    %2242 = vmatprep.subr.bf16.mxu0 %v1707
    %2243 = vmatpush1.bf16.msra.mxu0 %v1706
    %2244 = vmatprep.subr.bf16.mxu0 %v1713
    %2245 = vmatpush1.bf16.msra.mxu0 %v1712
    %2246 = vmatprep.subr.bf16.mxu0 %v1719
    %2247 = vmatpush1.bf16.msra.mxu0 %v1718
    %2248 = vmatprep.subr.bf16.mxu0 %v1725
    %2249 = vmatpush1.bf16.msra.mxu0 %v1724
    %2250 = vmatprep.subr.bf16.mxu0 %v1731
    %2251 = vmatpush1.bf16.msra.mxu0 %v1730
    %2252 = vmatprep.subr.bf16.mxu0 %v1737
    %2253 = vmatpush1.bf16.msra.mxu0 %v1736
    %2254 = vmatprep.mubr.bf16.mxu0 %v459
    %2255 = vmatmul.mubr.bf16.gmra.mrb[0].mxu0 %v458
    %v2256 = vpop.f32.mrb[0].mxu0
    %v2257 = vadd.f32 0.0, %v2256
    %v2258 = vpop.f32.mrb[0].mxu0
    %v2259 = vadd.f32 0.0, %v2258
    %v2260 = vpop.f32.mrb[0].mxu0
    %v2261 = vadd.f32 0.0, %v2260
    %v2262 = vpop.f32.mrb[0].mxu0
    %v2263 = vadd.f32 0.0, %v2262
    %2264 = vmatprep.mubr.bf16.mxu0 %v461
    %2265 = vmatmul.mubr.bf16.gmra.mrb[0].mxu0 %v460
    %v2266 = vpop.f32.mrb[0].mxu0
    %v2267 = vadd.f32 0.0, %v2266
    %v2268 = vpop.f32.mrb[0].mxu0
    %v2269 = vadd.f32 0.0, %v2268
    %v2270 = vpop.f32.mrb[0].mxu0
    %v2271 = vadd.f32 0.0, %v2270
    %v2272 = vpop.f32.mrb[0].mxu0
    %v2273 = vadd.f32 0.0, %v2272
    %2274 = vmatprep.mubr.bf16.mxu0 %v463
    %2275 = vmatmul.mubr.bf16.gmra.mrb[0].mxu0 %v462
    %v2276 = vpop.f32.mrb[0].mxu0
    %v2277 = vadd.f32 0.0, %v2276
    %v2278 = vpop.f32.mrb[0].mxu0
    %v2279 = vadd.f32 0.0, %v2278
    %v2280 = vpop.f32.mrb[0].mxu0
    %v2281 = vadd.f32 0.0, %v2280
    %v2282 = vpop.f32.mrb[0].mxu0
    %v2283 = vadd.f32 0.0, %v2282
    %2284 = vmatprep.mubr.bf16.mxu0 %v465
    %2285 = vmatmul.mubr.bf16.gmra.mrb[0].mxu0 %v464
    %v2286 = vpop.f32.mrb[0].mxu0
    %v2287 = vadd.f32 0.0, %v2286
    %v2288 = vpop.f32.mrb[0].mxu0
    %v2289 = vadd.f32 0.0, %v2288
    %v2290 = vpop.f32.mrb[0].mxu0
    %v2291 = vadd.f32 0.0, %v2290
    %v2292 = vpop.f32.mrb[0].mxu0
    %v2293 = vadd.f32 0.0, %v2292
    %2294 = vmatprep.mubr.bf16.mxu0 %v467
    %2295 = vmatmul.mubr.bf16.gmra.mrb[0].mxu0 %v466
    %v2296 = vpop.f32.mrb[0].mxu0
    %v2297 = vadd.f32 0.0, %v2296
    %v2298 = vpop.f32.mrb[0].mxu0
    %v2299 = vadd.f32 0.0, %v2298
    %v2300 = vpop.f32.mrb[0].mxu0
    %v2301 = vadd.f32 0.0, %v2300
    %v2302 = vpop.f32.mrb[0].mxu0
    %v2303 = vadd.f32 0.0, %v2302
    %2304 = vmatprep.mubr.bf16.mxu0 %v469
    %2305 = vmatmul.mubr.bf16.gmra.mrb[0].mxu0 %v468
    %v2306 = vpop.f32.mrb[0].mxu0
    %v2307 = vadd.f32 0.0, %v2306
    %v2308 = vpop.f32.mrb[0].mxu0
    %v2309 = vadd.f32 0.0, %v2308
    %v2310 = vpop.f32.mrb[0].mxu0
    %v2311 = vadd.f32 0.0, %v2310
    %v2312 = vpop.f32.mrb[0].mxu0
    %v2313 = vadd.f32 0.0, %v2312
    %2314 = vmatprep.mubr.bf16.mxu0 %v471
    %2315 = vmatmul.mubr.bf16.gmra.mrb[0].mxu0 %v470
    %v2316 = vpop.f32.mrb[0].mxu0
    %v2317 = vadd.f32 0.0, %v2316
    %v2318 = vpop.f32.mrb[0].mxu0
    %v2319 = vadd.f32 0.0, %v2318
    %v2320 = vpop.f32.mrb[0].mxu0
    %v2321 = vadd.f32 0.0, %v2320
    %v2322 = vpop.f32.mrb[0].mxu0
    %v2323 = vadd.f32 0.0, %v2322
    %2324 = vmatprep.mubr.bf16.mxu0 %v473
    %2325 = vmatmul.mubr.bf16.gmra.mrb[0].mxu0 %v472
    %v2326 = vpop.f32.mrb[0].mxu0
    %v2327 = vadd.f32 0.0, %v2326
    %v2328 = vpop.f32.mrb[0].mxu0
    %v2329 = vadd.f32 0.0, %v2328
    %v2330 = vpop.f32.mrb[0].mxu0
    %v2331 = vadd.f32 0.0, %v2330
    %v2332 = vpop.f32.mrb[0].mxu0
    %v2333 = vadd.f32 0.0, %v2332
    %2334 = vdwg.mxu0
    %2335 = vmatprep.subr.bf16.mxu0 %v1743
    %2336 = vmatpush1.bf16.msra.mxu0 %v1742
    %2337 = vmatprep.subr.bf16.mxu0 %v1749
    %2338 = vmatpush1.bf16.msra.mxu0 %v1748
    %2339 = vmatprep.subr.bf16.mxu0 %v1755
    %2340 = vmatpush1.bf16.msra.mxu0 %v1754
    %2341 = vmatprep.subr.bf16.mxu0 %v1761
    %2342 = vmatpush1.bf16.msra.mxu0 %v1760
    %2343 = vmatprep.subr.bf16.mxu0 %v1767
    %2344 = vmatpush1.bf16.msra.mxu0 %v1766
    %2345 = vmatprep.subr.bf16.mxu0 %v1773
    %2346 = vmatpush1.bf16.msra.mxu0 %v1772
    %2347 = vmatprep.subr.bf16.mxu0 %v1779
    %2348 = vmatpush1.bf16.msra.mxu0 %v1778
    %2349 = vmatprep.subr.bf16.mxu0 %v1785
    %2350 = vmatpush1.bf16.msra.mxu0 %v1784
    %2351 = vmatprep.subr.bf16.mxu0 %v1791
    %2352 = vmatpush1.bf16.msra.mxu0 %v1790
    %2353 = vmatprep.subr.bf16.mxu0 %v1797
    %2354 = vmatpush1.bf16.msra.mxu0 %v1796
    %2355 = vmatprep.subr.bf16.mxu0 %v1803
    %2356 = vmatpush1.bf16.msra.mxu0 %v1802
    %2357 = vmatprep.subr.bf16.mxu0 %v1809
    %2358 = vmatpush1.bf16.msra.mxu0 %v1808
    %2359 = vmatprep.subr.bf16.mxu0 %v1815
    %2360 = vmatpush1.bf16.msra.mxu0 %v1814
    %2361 = vmatprep.subr.bf16.mxu0 %v1821
    %2362 = vmatpush1.bf16.msra.mxu0 %v1820
    %2363 = vmatprep.subr.bf16.mxu0 %v1827
    %2364 = vmatpush1.bf16.msra.mxu0 %v1826
    %2365 = vmatprep.subr.bf16.mxu0 %v1833
    %2366 = vmatpush1.bf16.msra.mxu0 %v1832
    %2367 = vmatprep.mubr.bf16.mxu0 %v475
    %2368 = vmatmul.mubr.bf16.gmra.mrb[0].mxu0 %v474
    %v2369 = vpop.f32.mrb[0].mxu0
    %v2370 = vadd.f32 %v2257, %v2369
    %v2371 = vpop.f32.mrb[0].mxu0
    %v2372 = vadd.f32 %v2259, %v2371
    %v2373 = vpop.f32.mrb[0].mxu0
    %v2374 = vadd.f32 %v2261, %v2373
    %v2375 = vpop.f32.mrb[0].mxu0
    %v2376 = vadd.f32 %v2263, %v2375
    %2377 = vmatprep.mubr.bf16.mxu0 %v477
    %2378 = vmatmul.mubr.bf16.gmra.mrb[0].mxu0 %v476
    %v2379 = vpop.f32.mrb[0].mxu0
    %v2380 = vadd.f32 %v2267, %v2379
    %v2381 = vpop.f32.mrb[0].mxu0
    %v2382 = vadd.f32 %v2269, %v2381
    %v2383 = vpop.f32.mrb[0].mxu0
    %v2384 = vadd.f32 %v2271, %v2383
    %v2385 = vpop.f32.mrb[0].mxu0
    %v2386 = vadd.f32 %v2273, %v2385
    %2387 = vmatprep.mubr.bf16.mxu0 %v479
    %2388 = vmatmul.mubr.bf16.gmra.mrb[0].mxu0 %v478
    %v2389 = vpop.f32.mrb[0].mxu0
    %v2390 = vadd.f32 %v2277, %v2389
    %v2391 = vpop.f32.mrb[0].mxu0
    %v2392 = vadd.f32 %v2279, %v2391
    %v2393 = vpop.f32.mrb[0].mxu0
    %v2394 = vadd.f32 %v2281, %v2393
    %v2395 = vpop.f32.mrb[0].mxu0
    %v2396 = vadd.f32 %v2283, %v2395
    %2397 = vmatprep.mubr.bf16.mxu0 %v481
    %2398 = vmatmul.mubr.bf16.gmra.mrb[0].mxu0 %v480
    %v2399 = vpop.f32.mrb[0].mxu0
    %v2400 = vadd.f32 %v2287, %v2399
    %v2401 = vpop.f32.mrb[0].mxu0
    %v2402 = vadd.f32 %v2289, %v2401
    %v2403 = vpop.f32.mrb[0].mxu0
    %v2404 = vadd.f32 %v2291, %v2403
    %v2405 = vpop.f32.mrb[0].mxu0
    %v2406 = vadd.f32 %v2293, %v2405
    %2407 = vmatprep.mubr.bf16.mxu0 %v483
    %2408 = vmatmul.mubr.bf16.gmra.mrb[0].mxu0 %v482
    %v2409 = vpop.f32.mrb[0].mxu0
    %v2410 = vadd.f32 %v2297, %v2409
    %v2411 = vpop.f32.mrb[0].mxu0
    %v2412 = vadd.f32 %v2299, %v2411
    %v2413 = vpop.f32.mrb[0].mxu0
    %v2414 = vadd.f32 %v2301, %v2413
    %v2415 = vpop.f32.mrb[0].mxu0
    %v2416 = vadd.f32 %v2303, %v2415
    %2417 = vmatprep.mubr.bf16.mxu0 %v485
    %2418 = vmatmul.mubr.bf16.gmra.mrb[0].mxu0 %v484
    %v2419 = vpop.f32.mrb[0].mxu0
    %v2420 = vadd.f32 %v2307, %v2419
    %v2421 = vpop.f32.mrb[0].mxu0
    %v2422 = vadd.f32 %v2309, %v2421
    %v2423 = vpop.f32.mrb[0].mxu0
    %v2424 = vadd.f32 %v2311, %v2423
    %v2425 = vpop.f32.mrb[0].mxu0
    %v2426 = vadd.f32 %v2313, %v2425
    %2427 = vmatprep.mubr.bf16.mxu0 %v487
    %2428 = vmatmul.mubr.bf16.gmra.mrb[0].mxu0 %v486
    %v2429 = vpop.f32.mrb[0].mxu0
    %v2430 = vadd.f32 %v2317, %v2429
    %v2431 = vpop.f32.mrb[0].mxu0
    %v2432 = vadd.f32 %v2319, %v2431
    %v2433 = vpop.f32.mrb[0].mxu0
    %v2434 = vadd.f32 %v2321, %v2433
    %v2435 = vpop.f32.mrb[0].mxu0
    %v2436 = vadd.f32 %v2323, %v2435
    %2437 = vmatprep.mubr.bf16.mxu0 %v489
    %2438 = vmatmul.mubr.bf16.gmra.mrb[0].mxu0 %v488
    %v2439 = vpop.f32.mrb[0].mxu0
    %v2440 = vadd.f32 %v2327, %v2439
    %v2441 = vpop.f32.mrb[0].mxu0
    %v2442 = vadd.f32 %v2329, %v2441
    %v2443 = vpop.f32.mrb[0].mxu0
    %v2444 = vadd.f32 %v2331, %v2443
    %v2445 = vpop.f32.mrb[0].mxu0
    %v2446 = vadd.f32 %v2333, %v2445
    %2447 = vdwg.mxu0
    %2448 = vmatprep.subr.bf16.mxu0 %v1839
    %2449 = vmatpush1.bf16.msra.mxu0 %v1838
    %2450 = vmatprep.subr.bf16.mxu0 %v1845
    %2451 = vmatpush1.bf16.msra.mxu0 %v1844
    %2452 = vmatprep.subr.bf16.mxu0 %v1851
    %2453 = vmatpush1.bf16.msra.mxu0 %v1850
    %2454 = vmatprep.subr.bf16.mxu0 %v1857
    %2455 = vmatpush1.bf16.msra.mxu0 %v1856
    %2456 = vmatprep.subr.bf16.mxu0 %v1863
    %2457 = vmatpush1.bf16.msra.mxu0 %v1862
    %2458 = vmatprep.subr.bf16.mxu0 %v1869
    %2459 = vmatpush1.bf16.msra.mxu0 %v1868
    %2460 = vmatprep.subr.bf16.mxu0 %v1875
    %2461 = vmatpush1.bf16.msra.mxu0 %v1874
    %2462 = vmatprep.subr.bf16.mxu0 %v1881
    %2463 = vmatpush1.bf16.msra.mxu0 %v1880
    %2464 = vmatprep.subr.bf16.mxu0 %v1887
    %2465 = vmatpush1.bf16.msra.mxu0 %v1886
    %2466 = vmatprep.subr.bf16.mxu0 %v1893
    %2467 = vmatpush1.bf16.msra.mxu0 %v1892
    %2468 = vmatprep.subr.bf16.mxu0 %v1899
    %2469 = vmatpush1.bf16.msra.mxu0 %v1898
    %2470 = vmatprep.subr.bf16.mxu0 %v1905
    %2471 = vmatpush1.bf16.msra.mxu0 %v1904
    %2472 = vmatprep.subr.bf16.mxu0 %v1911
    %2473 = vmatpush1.bf16.msra.mxu0 %v1910
    %2474 = vmatprep.subr.bf16.mxu0 %v1917
    %2475 = vmatpush1.bf16.msra.mxu0 %v1916
    %2476 = vmatprep.subr.bf16.mxu0 %v1923
    %2477 = vmatpush1.bf16.msra.mxu0 %v1922
    %2478 = vmatprep.subr.bf16.mxu0 %v1929
    %2479 = vmatpush1.bf16.msra.mxu0 %v1928
    %2480 = vmatprep.mubr.bf16.mxu0 %v461
    %2481 = vmatmul.mubr.bf16.gmra.mrb[0].mxu0 %v460
    %v2482 = vpop.f32.mrb[0].mxu0
    %v2483 = vadd.f32 %v2370, %v2482
    %v2484 = vpop.f32.mrb[0].mxu0
    %v2485 = vadd.f32 %v2372, %v2484
    %v2486 = vpop.f32.mrb[0].mxu0
    %v2487 = vadd.f32 %v2374, %v2486
    %v2488 = vpop.f32.mrb[0].mxu0
    %v2489 = vadd.f32 %v2376, %v2488
    %2490 = vmatprep.mubr.bf16.mxu0 %v463
    %2491 = vmatmul.mubr.bf16.gmra.mrb[0].mxu0 %v462
    %v2492 = vpop.f32.mrb[0].mxu0
    %v2493 = vadd.f32 %v2380, %v2492
    %v2494 = vpop.f32.mrb[0].mxu0
    %v2495 = vadd.f32 %v2382, %v2494
    %v2496 = vpop.f32.mrb[0].mxu0
    %v2497 = vadd.f32 %v2384, %v2496
    %v2498 = vpop.f32.mrb[0].mxu0
    %v2499 = vadd.f32 %v2386, %v2498
    %2500 = vmatprep.mubr.bf16.mxu0 %v465
    %2501 = vmatmul.mubr.bf16.gmra.mrb[0].mxu0 %v464
    %v2502 = vpop.f32.mrb[0].mxu0
    %v2503 = vadd.f32 %v2390, %v2502
    %v2504 = vpop.f32.mrb[0].mxu0
    %v2505 = vadd.f32 %v2392, %v2504
    %v2506 = vpop.f32.mrb[0].mxu0
    %v2507 = vadd.f32 %v2394, %v2506
    %v2508 = vpop.f32.mrb[0].mxu0
    %v2509 = vadd.f32 %v2396, %v2508
    %2510 = vmatprep.mubr.bf16.mxu0 %v491
    %2511 = vmatmul.mubr.bf16.gmra.mrb[0].mxu0 %v490
    %v2512 = vpop.f32.mrb[0].mxu0
    %v2513 = vadd.f32 %v2400, %v2512
    %v2514 = vpop.f32.mrb[0].mxu0
    %v2515 = vadd.f32 %v2402, %v2514
    %v2516 = vpop.f32.mrb[0].mxu0
    %v2517 = vadd.f32 %v2404, %v2516
    %v2518 = vpop.f32.mrb[0].mxu0
    %v2519 = vadd.f32 %v2406, %v2518
    %2520 = vmatprep.mubr.bf16.mxu0 %v469
    %2521 = vmatmul.mubr.bf16.gmra.mrb[0].mxu0 %v468
    %v2522 = vpop.f32.mrb[0].mxu0
    %v2523 = vadd.f32 %v2410, %v2522
    %v2524 = vpop.f32.mrb[0].mxu0
    %v2525 = vadd.f32 %v2412, %v2524
    %v2526 = vpop.f32.mrb[0].mxu0
    %v2527 = vadd.f32 %v2414, %v2526
    %v2528 = vpop.f32.mrb[0].mxu0
    %v2529 = vadd.f32 %v2416, %v2528
    %2530 = vmatprep.mubr.bf16.mxu0 %v471
    %2531 = vmatmul.mubr.bf16.gmra.mrb[0].mxu0 %v470
    %v2532 = vpop.f32.mrb[0].mxu0
    %v2533 = vadd.f32 %v2420, %v2532
    %v2534 = vpop.f32.mrb[0].mxu0
    %v2535 = vadd.f32 %v2422, %v2534
    %v2536 = vpop.f32.mrb[0].mxu0
    %v2537 = vadd.f32 %v2424, %v2536
    %v2538 = vpop.f32.mrb[0].mxu0
    %v2539 = vadd.f32 %v2426, %v2538
    %2540 = vmatprep.mubr.bf16.mxu0 %v473
    %2541 = vmatmul.mubr.bf16.gmra.mrb[0].mxu0 %v472
    %v2542 = vpop.f32.mrb[0].mxu0
    %v2543 = vadd.f32 %v2430, %v2542
    %v2544 = vpop.f32.mrb[0].mxu0
    %v2545 = vadd.f32 %v2432, %v2544
    %v2546 = vpop.f32.mrb[0].mxu0
    %v2547 = vadd.f32 %v2434, %v2546
    %v2548 = vpop.f32.mrb[0].mxu0
    %v2549 = vadd.f32 %v2436, %v2548
    %2550 = vmatprep.mubr.bf16.mxu0 %v493
    %2551 = vmatmul.mubr.bf16.gmra.mrb[0].mxu0 %v492
    %v2552 = vpop.f32.mrb[0].mxu0
    %v2553 = vadd.f32 %v2440, %v2552
    %v2554 = vpop.f32.mrb[0].mxu0
    %v2555 = vadd.f32 %v2442, %v2554
    %v2556 = vpop.f32.mrb[0].mxu0
    %v2557 = vadd.f32 %v2444, %v2556
    %v2558 = vpop.f32.mrb[0].mxu0
    %v2559 = vadd.f32 %v2446, %v2558
    %2560 = vdwg.mxu0
    %2561 = vmatprep.subr.bf16.mxu0 %v1649
    %2562 = vmatpush1.bf16.msra.mxu0 %v1648
    %2563 = vmatprep.subr.bf16.mxu0 %v1655
    %2564 = vmatpush1.bf16.msra.mxu0 %v1654
    %2565 = vmatprep.subr.bf16.mxu0 %v1661
    %2566 = vmatpush1.bf16.msra.mxu0 %v1660
    %2567 = vmatprep.subr.bf16.mxu0 %v1667
    %2568 = vmatpush1.bf16.msra.mxu0 %v1666
    %2569 = vmatprep.subr.bf16.mxu0 %v1673
    %2570 = vmatpush1.bf16.msra.mxu0 %v1672
    %2571 = vmatprep.subr.bf16.mxu0 %v1679
    %2572 = vmatpush1.bf16.msra.mxu0 %v1678
    %2573 = vmatprep.subr.bf16.mxu0 %v1685
    %2574 = vmatpush1.bf16.msra.mxu0 %v1684
    %2575 = vmatprep.subr.bf16.mxu0 %v1691
    %2576 = vmatpush1.bf16.msra.mxu0 %v1690
    %2577 = vmatprep.subr.bf16.mxu0 %v1697
    %2578 = vmatpush1.bf16.msra.mxu0 %v1696
    %2579 = vmatprep.subr.bf16.mxu0 %v1703
    %2580 = vmatpush1.bf16.msra.mxu0 %v1702
    %2581 = vmatprep.subr.bf16.mxu0 %v1709
    %2582 = vmatpush1.bf16.msra.mxu0 %v1708
    %2583 = vmatprep.subr.bf16.mxu0 %v1715
    %2584 = vmatpush1.bf16.msra.mxu0 %v1714
    %2585 = vmatprep.subr.bf16.mxu0 %v1721
    %2586 = vmatpush1.bf16.msra.mxu0 %v1720
    %2587 = vmatprep.subr.bf16.mxu0 %v1727
    %2588 = vmatpush1.bf16.msra.mxu0 %v1726
    %2589 = vmatprep.subr.bf16.mxu0 %v1733
    %2590 = vmatpush1.bf16.msra.mxu0 %v1732
    %2591 = vmatprep.subr.bf16.mxu0 %v1739
    %2592 = vmatpush1.bf16.msra.mxu0 %v1738
    %2593 = vmatprep.mubr.bf16.mxu0 %v459
    %2594 = vmatmul.mubr.bf16.gmra.mrb[0].mxu0 %v458
    %v2595 = vpop.f32.mrb[0].mxu0
    %v2596 = vadd.f32 0.0, %v2595
    %v2597 = vpop.f32.mrb[0].mxu0
    %v2598 = vadd.f32 0.0, %v2597
    %v2599 = vpop.f32.mrb[0].mxu0
    %v2600 = vadd.f32 0.0, %v2599
    %v2601 = vpop.f32.mrb[0].mxu0
    %v2602 = vadd.f32 0.0, %v2601
    %2603 = vmatprep.mubr.bf16.mxu0 %v461
    %2604 = vmatmul.mubr.bf16.gmra.mrb[0].mxu0 %v460
    %v2605 = vpop.f32.mrb[0].mxu0
    %v2606 = vadd.f32 0.0, %v2605
    %v2607 = vpop.f32.mrb[0].mxu0
    %v2608 = vadd.f32 0.0, %v2607
    %v2609 = vpop.f32.mrb[0].mxu0
    %v2610 = vadd.f32 0.0, %v2609
    %v2611 = vpop.f32.mrb[0].mxu0
    %v2612 = vadd.f32 0.0, %v2611
    %2613 = vmatprep.mubr.bf16.mxu0 %v463
    %2614 = vmatmul.mubr.bf16.gmra.mrb[0].mxu0 %v462
    %v2615 = vpop.f32.mrb[0].mxu0
    %v2616 = vadd.f32 0.0, %v2615
    %v2617 = vpop.f32.mrb[0].mxu0
    %v2618 = vadd.f32 0.0, %v2617
    %v2619 = vpop.f32.mrb[0].mxu0
    %v2620 = vadd.f32 0.0, %v2619
    %v2621 = vpop.f32.mrb[0].mxu0
    %v2622 = vadd.f32 0.0, %v2621
    %2623 = vmatprep.mubr.bf16.mxu0 %v465
    %2624 = vmatmul.mubr.bf16.gmra.mrb[0].mxu0 %v464
    %v2625 = vpop.f32.mrb[0].mxu0
    %v2626 = vadd.f32 0.0, %v2625
    %v2627 = vpop.f32.mrb[0].mxu0
    %v2628 = vadd.f32 0.0, %v2627
    %v2629 = vpop.f32.mrb[0].mxu0
    %v2630 = vadd.f32 0.0, %v2629
    %v2631 = vpop.f32.mrb[0].mxu0
    %v2632 = vadd.f32 0.0, %v2631
    %2633 = vmatprep.mubr.bf16.mxu0 %v467
    %2634 = vmatmul.mubr.bf16.gmra.mrb[0].mxu0 %v466
    %v2635 = vpop.f32.mrb[0].mxu0
    %v2636 = vadd.f32 0.0, %v2635
    %v2637 = vpop.f32.mrb[0].mxu0
    %v2638 = vadd.f32 0.0, %v2637
    %v2639 = vpop.f32.mrb[0].mxu0
    %v2640 = vadd.f32 0.0, %v2639
    %v2641 = vpop.f32.mrb[0].mxu0
    %v2642 = vadd.f32 0.0, %v2641
    %2643 = vmatprep.mubr.bf16.mxu0 %v469
    %2644 = vmatmul.mubr.bf16.gmra.mrb[0].mxu0 %v468
    %v2645 = vpop.f32.mrb[0].mxu0
    %v2646 = vadd.f32 0.0, %v2645
    %v2647 = vpop.f32.mrb[0].mxu0
    %v2648 = vadd.f32 0.0, %v2647
    %v2649 = vpop.f32.mrb[0].mxu0
    %v2650 = vadd.f32 0.0, %v2649
    %v2651 = vpop.f32.mrb[0].mxu0
    %v2652 = vadd.f32 0.0, %v2651
    %2653 = vmatprep.mubr.bf16.mxu0 %v471
    %2654 = vmatmul.mubr.bf16.gmra.mrb[0].mxu0 %v470
    %v2655 = vpop.f32.mrb[0].mxu0
    %v2656 = vadd.f32 0.0, %v2655
    %v2657 = vpop.f32.mrb[0].mxu0
    %v2658 = vadd.f32 0.0, %v2657
    %v2659 = vpop.f32.mrb[0].mxu0
    %v2660 = vadd.f32 0.0, %v2659
    %v2661 = vpop.f32.mrb[0].mxu0
    %v2662 = vadd.f32 0.0, %v2661
    %2663 = vmatprep.mubr.bf16.mxu0 %v473
    %2664 = vmatmul.mubr.bf16.gmra.mrb[0].mxu0 %v472
    %v2665 = vpop.f32.mrb[0].mxu0
    %v2666 = vadd.f32 0.0, %v2665
    %v2667 = vpop.f32.mrb[0].mxu0
    %v2668 = vadd.f32 0.0, %v2667
    %v2669 = vpop.f32.mrb[0].mxu0
    %v2670 = vadd.f32 0.0, %v2669
    %v2671 = vpop.f32.mrb[0].mxu0
    %v2672 = vadd.f32 0.0, %v2671
    %2673 = vdwg.mxu0
    %2674 = vmatprep.subr.bf16.mxu0 %v1745
    %2675 = vmatpush1.bf16.msra.mxu0 %v1744
    %2676 = vmatprep.subr.bf16.mxu0 %v1751
    %2677 = vmatpush1.bf16.msra.mxu0 %v1750
    %2678 = vmatprep.subr.bf16.mxu0 %v1757
    %2679 = vmatpush1.bf16.msra.mxu0 %v1756
    %2680 = vmatprep.subr.bf16.mxu0 %v1763
    %2681 = vmatpush1.bf16.msra.mxu0 %v1762
    %2682 = vmatprep.subr.bf16.mxu0 %v1769
    %2683 = vmatpush1.bf16.msra.mxu0 %v1768
    %2684 = vmatprep.subr.bf16.mxu0 %v1775
    %2685 = vmatpush1.bf16.msra.mxu0 %v1774
    %2686 = vmatprep.subr.bf16.mxu0 %v1781
    %2687 = vmatpush1.bf16.msra.mxu0 %v1780
    %2688 = vmatprep.subr.bf16.mxu0 %v1787
    %2689 = vmatpush1.bf16.msra.mxu0 %v1786
    %2690 = vmatprep.subr.bf16.mxu0 %v1793
    %2691 = vmatpush1.bf16.msra.mxu0 %v1792
    %2692 = vmatprep.subr.bf16.mxu0 %v1799
    %2693 = vmatpush1.bf16.msra.mxu0 %v1798
    %2694 = vmatprep.subr.bf16.mxu0 %v1805
    %2695 = vmatpush1.bf16.msra.mxu0 %v1804
    %2696 = vmatprep.subr.bf16.mxu0 %v1811
    %2697 = vmatpush1.bf16.msra.mxu0 %v1810
    %2698 = vmatprep.subr.bf16.mxu0 %v1817
    %2699 = vmatpush1.bf16.msra.mxu0 %v1816
    %2700 = vmatprep.subr.bf16.mxu0 %v1823
    %2701 = vmatpush1.bf16.msra.mxu0 %v1822
    %2702 = vmatprep.subr.bf16.mxu0 %v1829
    %2703 = vmatpush1.bf16.msra.mxu0 %v1828
    %2704 = vmatprep.subr.bf16.mxu0 %v1835
    %2705 = vmatpush1.bf16.msra.mxu0 %v1834
    %2706 = vmatprep.mubr.bf16.mxu0 %v475
    %2707 = vmatmul.mubr.bf16.gmra.mrb[0].mxu0 %v474
    %v2708 = vpop.f32.mrb[0].mxu0
    %v2709 = vadd.f32 %v2596, %v2708
    %v2710 = vpop.f32.mrb[0].mxu0
    %v2711 = vadd.f32 %v2598, %v2710
    %v2712 = vpop.f32.mrb[0].mxu0
    %v2713 = vadd.f32 %v2600, %v2712
    %v2714 = vpop.f32.mrb[0].mxu0
    %v2715 = vadd.f32 %v2602, %v2714
    %2716 = vmatprep.mubr.bf16.mxu0 %v477
    %2717 = vmatmul.mubr.bf16.gmra.mrb[0].mxu0 %v476
    %v2718 = vpop.f32.mrb[0].mxu0
    %v2719 = vadd.f32 %v2606, %v2718
    %v2720 = vpop.f32.mrb[0].mxu0
    %v2721 = vadd.f32 %v2608, %v2720
    %v2722 = vpop.f32.mrb[0].mxu0
    %v2723 = vadd.f32 %v2610, %v2722
    %v2724 = vpop.f32.mrb[0].mxu0
    %v2725 = vadd.f32 %v2612, %v2724
    %2726 = vmatprep.mubr.bf16.mxu0 %v479
    %2727 = vmatmul.mubr.bf16.gmra.mrb[0].mxu0 %v478
    %v2728 = vpop.f32.mrb[0].mxu0
    %v2729 = vadd.f32 %v2616, %v2728
    %v2730 = vpop.f32.mrb[0].mxu0
    %v2731 = vadd.f32 %v2618, %v2730
    %v2732 = vpop.f32.mrb[0].mxu0
    %v2733 = vadd.f32 %v2620, %v2732
    %v2734 = vpop.f32.mrb[0].mxu0
    %v2735 = vadd.f32 %v2622, %v2734
    %2736 = vmatprep.mubr.bf16.mxu0 %v481
    %2737 = vmatmul.mubr.bf16.gmra.mrb[0].mxu0 %v480
    %v2738 = vpop.f32.mrb[0].mxu0
    %v2739 = vadd.f32 %v2626, %v2738
    %v2740 = vpop.f32.mrb[0].mxu0
    %v2741 = vadd.f32 %v2628, %v2740
    %v2742 = vpop.f32.mrb[0].mxu0
    %v2743 = vadd.f32 %v2630, %v2742
    %v2744 = vpop.f32.mrb[0].mxu0
    %v2745 = vadd.f32 %v2632, %v2744
    %2746 = vmatprep.mubr.bf16.mxu0 %v483
    %2747 = vmatmul.mubr.bf16.gmra.mrb[0].mxu0 %v482
    %v2748 = vpop.f32.mrb[0].mxu0
    %v2749 = vadd.f32 %v2636, %v2748
    %v2750 = vpop.f32.mrb[0].mxu0
    %v2751 = vadd.f32 %v2638, %v2750
    %v2752 = vpop.f32.mrb[0].mxu0
    %v2753 = vadd.f32 %v2640, %v2752
    %v2754 = vpop.f32.mrb[0].mxu0
    %v2755 = vadd.f32 %v2642, %v2754
    %2756 = vmatprep.mubr.bf16.mxu0 %v485
    %2757 = vmatmul.mubr.bf16.gmra.mrb[0].mxu0 %v484
    %v2758 = vpop.f32.mrb[0].mxu0
    %v2759 = vadd.f32 %v2646, %v2758
    %v2760 = vpop.f32.mrb[0].mxu0
    %v2761 = vadd.f32 %v2648, %v2760
    %v2762 = vpop.f32.mrb[0].mxu0
    %v2763 = vadd.f32 %v2650, %v2762
    %v2764 = vpop.f32.mrb[0].mxu0
    %v2765 = vadd.f32 %v2652, %v2764
    %2766 = vmatprep.mubr.bf16.mxu0 %v487
    %2767 = vmatmul.mubr.bf16.gmra.mrb[0].mxu0 %v486
    %v2768 = vpop.f32.mrb[0].mxu0
    %v2769 = vadd.f32 %v2656, %v2768
    %v2770 = vpop.f32.mrb[0].mxu0
    %v2771 = vadd.f32 %v2658, %v2770
    %v2772 = vpop.f32.mrb[0].mxu0
    %v2773 = vadd.f32 %v2660, %v2772
    %v2774 = vpop.f32.mrb[0].mxu0
    %v2775 = vadd.f32 %v2662, %v2774
    %2776 = vmatprep.mubr.bf16.mxu0 %v489
    %2777 = vmatmul.mubr.bf16.gmra.mrb[0].mxu0 %v488
    %v2778 = vpop.f32.mrb[0].mxu0
    %v2779 = vadd.f32 %v2666, %v2778
    %v2780 = vpop.f32.mrb[0].mxu0
    %v2781 = vadd.f32 %v2668, %v2780
    %v2782 = vpop.f32.mrb[0].mxu0
    %v2783 = vadd.f32 %v2670, %v2782
    %v2784 = vpop.f32.mrb[0].mxu0
    %v2785 = vadd.f32 %v2672, %v2784
    %2786 = vdwg.mxu0
    %2787 = vmatprep.subr.bf16.mxu0 %v1841
    %2788 = vmatpush1.bf16.msra.mxu0 %v1840
    %2789 = vmatprep.subr.bf16.mxu0 %v1847
    %2790 = vmatpush1.bf16.msra.mxu0 %v1846
    %2791 = vmatprep.subr.bf16.mxu0 %v1853
    %2792 = vmatpush1.bf16.msra.mxu0 %v1852
    %2793 = vmatprep.subr.bf16.mxu0 %v1859
    %2794 = vmatpush1.bf16.msra.mxu0 %v1858
    %2795 = vmatprep.subr.bf16.mxu0 %v1865
    %2796 = vmatpush1.bf16.msra.mxu0 %v1864
    %2797 = vmatprep.subr.bf16.mxu0 %v1871
    %2798 = vmatpush1.bf16.msra.mxu0 %v1870
    %2799 = vmatprep.subr.bf16.mxu0 %v1877
    %2800 = vmatpush1.bf16.msra.mxu0 %v1876
    %2801 = vmatprep.subr.bf16.mxu0 %v1883
    %2802 = vmatpush1.bf16.msra.mxu0 %v1882
    %2803 = vmatprep.subr.bf16.mxu0 %v1889
    %2804 = vmatpush1.bf16.msra.mxu0 %v1888
    %2805 = vmatprep.subr.bf16.mxu0 %v1895
    %2806 = vmatpush1.bf16.msra.mxu0 %v1894
    %2807 = vmatprep.subr.bf16.mxu0 %v1901
    %2808 = vmatpush1.bf16.msra.mxu0 %v1900
    %2809 = vmatprep.subr.bf16.mxu0 %v1907
    %2810 = vmatpush1.bf16.msra.mxu0 %v1906
    %2811 = vmatprep.subr.bf16.mxu0 %v1913
    %2812 = vmatpush1.bf16.msra.mxu0 %v1912
    %2813 = vmatprep.subr.bf16.mxu0 %v1919
    %2814 = vmatpush1.bf16.msra.mxu0 %v1918
    %2815 = vmatprep.subr.bf16.mxu0 %v1925
    %2816 = vmatpush1.bf16.msra.mxu0 %v1924
    %2817 = vmatprep.subr.bf16.mxu0 %v1931
    %2818 = vmatpush1.bf16.msra.mxu0 %v1930
    %2819 = vmatprep.mubr.bf16.mxu0 %v461
    %2820 = vmatmul.mubr.bf16.gmra.mrb[0].mxu0 %v460
    %v2821 = vpop.f32.mrb[0].mxu0
    %v2822 = vadd.f32 %v2709, %v2821
    %v2823 = vpop.f32.mrb[0].mxu0
    %v2824 = vadd.f32 %v2711, %v2823
    %v2825 = vpop.f32.mrb[0].mxu0
    %v2826 = vadd.f32 %v2713, %v2825
    %v2827 = vpop.f32.mrb[0].mxu0
    %v2828 = vadd.f32 %v2715, %v2827
    %2829 = vmatprep.mubr.bf16.mxu0 %v463
    %2830 = vmatmul.mubr.bf16.gmra.mrb[0].mxu0 %v462
    %v2831 = vpop.f32.mrb[0].mxu0
    %v2832 = vadd.f32 %v2719, %v2831
    %v2833 = vpop.f32.mrb[0].mxu0
    %v2834 = vadd.f32 %v2721, %v2833
    %v2835 = vpop.f32.mrb[0].mxu0
    %v2836 = vadd.f32 %v2723, %v2835
    %v2837 = vpop.f32.mrb[0].mxu0
    %v2838 = vadd.f32 %v2725, %v2837
    %2839 = vmatprep.mubr.bf16.mxu0 %v465
    %2840 = vmatmul.mubr.bf16.gmra.mrb[0].mxu0 %v464
    %v2841 = vpop.f32.mrb[0].mxu0
    %v2842 = vadd.f32 %v2729, %v2841
    %v2843 = vpop.f32.mrb[0].mxu0
    %v2844 = vadd.f32 %v2731, %v2843
    %v2845 = vpop.f32.mrb[0].mxu0
    %v2846 = vadd.f32 %v2733, %v2845
    %v2847 = vpop.f32.mrb[0].mxu0
    %v2848 = vadd.f32 %v2735, %v2847
    %2849 = vmatprep.mubr.bf16.mxu0 %v491
    %2850 = vmatmul.mubr.bf16.gmra.mrb[0].mxu0 %v490
    %v2851 = vpop.f32.mrb[0].mxu0
    %v2852 = vadd.f32 %v2739, %v2851
    %v2853 = vpop.f32.mrb[0].mxu0
    %v2854 = vadd.f32 %v2741, %v2853
    %v2855 = vpop.f32.mrb[0].mxu0
    %v2856 = vadd.f32 %v2743, %v2855
    %v2857 = vpop.f32.mrb[0].mxu0
    %v2858 = vadd.f32 %v2745, %v2857
    %2859 = vmatprep.mubr.bf16.mxu0 %v469
    %2860 = vmatmul.mubr.bf16.gmra.mrb[0].mxu0 %v468
    %v2861 = vpop.f32.mrb[0].mxu0
    %v2862 = vadd.f32 %v2749, %v2861
    %v2863 = vpop.f32.mrb[0].mxu0
    %v2864 = vadd.f32 %v2751, %v2863
    %v2865 = vpop.f32.mrb[0].mxu0
    %v2866 = vadd.f32 %v2753, %v2865
    %v2867 = vpop.f32.mrb[0].mxu0
    %v2868 = vadd.f32 %v2755, %v2867
    %2869 = vmatprep.mubr.bf16.mxu0 %v471
    %2870 = vmatmul.mubr.bf16.gmra.mrb[0].mxu0 %v470
    %v2871 = vpop.f32.mrb[0].mxu0
    %v2872 = vadd.f32 %v2759, %v2871
    %v2873 = vpop.f32.mrb[0].mxu0
    %v2874 = vadd.f32 %v2761, %v2873
    %v2875 = vpop.f32.mrb[0].mxu0
    %v2876 = vadd.f32 %v2763, %v2875
    %v2877 = vpop.f32.mrb[0].mxu0
    %v2878 = vadd.f32 %v2765, %v2877
    %2879 = vmatprep.mubr.bf16.mxu0 %v473
    %2880 = vmatmul.mubr.bf16.gmra.mrb[0].mxu0 %v472
    %v2881 = vpop.f32.mrb[0].mxu0
    %v2882 = vadd.f32 %v2769, %v2881
    %v2883 = vpop.f32.mrb[0].mxu0
    %v2884 = vadd.f32 %v2771, %v2883
    %v2885 = vpop.f32.mrb[0].mxu0
    %v2886 = vadd.f32 %v2773, %v2885
    %v2887 = vpop.f32.mrb[0].mxu0
    %v2888 = vadd.f32 %v2775, %v2887
    %2889 = vmatprep.mubr.bf16.mxu0 %v493
    %2890 = vmatmul.mubr.bf16.gmra.mrb[0].mxu0 %v492
    %v2891 = vpop.f32.mrb[0].mxu0
    %v2892 = vadd.f32 %v2779, %v2891
    %v2893 = vpop.f32.mrb[0].mxu0
    %v2894 = vadd.f32 %v2781, %v2893
    %v2895 = vpop.f32.mrb[0].mxu0
    %v2896 = vadd.f32 %v2783, %v2895
    %v2897 = vpop.f32.mrb[0].mxu0
    %v2898 = vadd.f32 %v2785, %v2897
    %2899 = vdwg.mxu0
    %2900 = vmatprep.subr.bf16.mxu0 %v1651
    %2901 = vmatpush1.bf16.msra.mxu0 %v1650
    %2902 = vmatprep.subr.bf16.mxu0 %v1657
    %2903 = vmatpush1.bf16.msra.mxu0 %v1656
    %2904 = vmatprep.subr.bf16.mxu0 %v1663
    %2905 = vmatpush1.bf16.msra.mxu0 %v1662
    %2906 = vmatprep.subr.bf16.mxu0 %v1669
    %2907 = vmatpush1.bf16.msra.mxu0 %v1668
    %2908 = vmatprep.subr.bf16.mxu0 %v1675
    %2909 = vmatpush1.bf16.msra.mxu0 %v1674
    %2910 = vmatprep.subr.bf16.mxu0 %v1681
    %2911 = vmatpush1.bf16.msra.mxu0 %v1680
    %2912 = vmatprep.subr.bf16.mxu0 %v1687
    %2913 = vmatpush1.bf16.msra.mxu0 %v1686
    %2914 = vmatprep.subr.bf16.mxu0 %v1693
    %2915 = vmatpush1.bf16.msra.mxu0 %v1692
    %2916 = vmatprep.subr.bf16.mxu0 %v1699
    %2917 = vmatpush1.bf16.msra.mxu0 %v1698
    %2918 = vmatprep.subr.bf16.mxu0 %v1705
    %2919 = vmatpush1.bf16.msra.mxu0 %v1704
    %2920 = vmatprep.subr.bf16.mxu0 %v1711
    %2921 = vmatpush1.bf16.msra.mxu0 %v1710
    %2922 = vmatprep.subr.bf16.mxu0 %v1717
    %2923 = vmatpush1.bf16.msra.mxu0 %v1716
    %2924 = vmatprep.subr.bf16.mxu0 %v1723
    %2925 = vmatpush1.bf16.msra.mxu0 %v1722
    %2926 = vmatprep.subr.bf16.mxu0 %v1729
    %2927 = vmatpush1.bf16.msra.mxu0 %v1728
    %2928 = vmatprep.subr.bf16.mxu0 %v1735
    %2929 = vmatpush1.bf16.msra.mxu0 %v1734
    %2930 = vmatprep.subr.bf16.mxu0 %v1741
    %2931 = vmatpush1.bf16.msra.mxu0 %v1740
    %2932 = vmatprep.mubr.bf16.mxu0 %v459
    %2933 = vmatmul.mubr.bf16.gmra.mrb[0].mxu0 %v458
    %v2934 = vpop.f32.mrb[0].mxu0
    %v2935 = vadd.f32 0.0, %v2934
    %v2936 = vpop.f32.mrb[0].mxu0
    %v2937 = vadd.f32 0.0, %v2936
    %v2938 = vpop.f32.mrb[0].mxu0
    %v2939 = vadd.f32 0.0, %v2938
    %v2940 = vpop.f32.mrb[0].mxu0
    %v2941 = vadd.f32 0.0, %v2940
    %2942 = vmatprep.mubr.bf16.mxu0 %v461
    %2943 = vmatmul.mubr.bf16.gmra.mrb[0].mxu0 %v460
    %v2944 = vpop.f32.mrb[0].mxu0
    %v2945 = vadd.f32 0.0, %v2944
    %v2946 = vpop.f32.mrb[0].mxu0
    %v2947 = vadd.f32 0.0, %v2946
    %v2948 = vpop.f32.mrb[0].mxu0
    %v2949 = vadd.f32 0.0, %v2948
    %v2950 = vpop.f32.mrb[0].mxu0
    %v2951 = vadd.f32 0.0, %v2950
    %2952 = vmatprep.mubr.bf16.mxu0 %v463
    %2953 = vmatmul.mubr.bf16.gmra.mrb[0].mxu0 %v462
    %v2954 = vpop.f32.mrb[0].mxu0
    %v2955 = vadd.f32 0.0, %v2954
    %v2956 = vpop.f32.mrb[0].mxu0
    %v2957 = vadd.f32 0.0, %v2956
    %v2958 = vpop.f32.mrb[0].mxu0
    %v2959 = vadd.f32 0.0, %v2958
    %v2960 = vpop.f32.mrb[0].mxu0
    %v2961 = vadd.f32 0.0, %v2960
    %2962 = vmatprep.mubr.bf16.mxu0 %v465
    %2963 = vmatmul.mubr.bf16.gmra.mrb[0].mxu0 %v464
    %v2964 = vpop.f32.mrb[0].mxu0
    %v2965 = vadd.f32 0.0, %v2964
    %v2966 = vpop.f32.mrb[0].mxu0
    %v2967 = vadd.f32 0.0, %v2966
    %v2968 = vpop.f32.mrb[0].mxu0
    %v2969 = vadd.f32 0.0, %v2968
    %v2970 = vpop.f32.mrb[0].mxu0
    %v2971 = vadd.f32 0.0, %v2970
    %2972 = vmatprep.mubr.bf16.mxu0 %v467
    %2973 = vmatmul.mubr.bf16.gmra.mrb[0].mxu0 %v466
    %v2974 = vpop.f32.mrb[0].mxu0
    %v2975 = vadd.f32 0.0, %v2974
    %v2976 = vpop.f32.mrb[0].mxu0
    %v2977 = vadd.f32 0.0, %v2976
    %v2978 = vpop.f32.mrb[0].mxu0
    %v2979 = vadd.f32 0.0, %v2978
    %v2980 = vpop.f32.mrb[0].mxu0
    %v2981 = vadd.f32 0.0, %v2980
    %2982 = vmatprep.mubr.bf16.mxu0 %v469
    %2983 = vmatmul.mubr.bf16.gmra.mrb[0].mxu0 %v468
    %v2984 = vpop.f32.mrb[0].mxu0
    %v2985 = vadd.f32 0.0, %v2984
    %v2986 = vpop.f32.mrb[0].mxu0
    %v2987 = vadd.f32 0.0, %v2986
    %v2988 = vpop.f32.mrb[0].mxu0
    %v2989 = vadd.f32 0.0, %v2988
    %v2990 = vpop.f32.mrb[0].mxu0
    %v2991 = vadd.f32 0.0, %v2990
    %2992 = vmatprep.mubr.bf16.mxu0 %v471
    %2993 = vmatmul.mubr.bf16.gmra.mrb[0].mxu0 %v470
    %v2994 = vpop.f32.mrb[0].mxu0
    %v2995 = vadd.f32 0.0, %v2994
    %v2996 = vpop.f32.mrb[0].mxu0
    %v2997 = vadd.f32 0.0, %v2996
    %v2998 = vpop.f32.mrb[0].mxu0
    %v2999 = vadd.f32 0.0, %v2998
    %v3000 = vpop.f32.mrb[0].mxu0
    %v3001 = vadd.f32 0.0, %v3000
    %3002 = vmatprep.mubr.bf16.mxu0 %v473
    %3003 = vmatmul.mubr.bf16.gmra.mrb[0].mxu0 %v472
    %v3004 = vpop.f32.mrb[0].mxu0
    %v3005 = vadd.f32 0.0, %v3004
    %v3006 = vpop.f32.mrb[0].mxu0
    %v3007 = vadd.f32 0.0, %v3006
    %v3008 = vpop.f32.mrb[0].mxu0
    %v3009 = vadd.f32 0.0, %v3008
    %v3010 = vpop.f32.mrb[0].mxu0
    %v3011 = vadd.f32 0.0, %v3010
    %3012 = vdwg.mxu0
    %3013 = vmatprep.subr.bf16.mxu0 %v1747
    %3014 = vmatpush1.bf16.msra.mxu0 %v1746
    %3015 = vmatprep.subr.bf16.mxu0 %v1753
    %3016 = vmatpush1.bf16.msra.mxu0 %v1752
    %3017 = vmatprep.subr.bf16.mxu0 %v1759
    %3018 = vmatpush1.bf16.msra.mxu0 %v1758
    %3019 = vmatprep.subr.bf16.mxu0 %v1765
    %3020 = vmatpush1.bf16.msra.mxu0 %v1764
    %3021 = vmatprep.subr.bf16.mxu0 %v1771
    %3022 = vmatpush1.bf16.msra.mxu0 %v1770
    %3023 = vmatprep.subr.bf16.mxu0 %v1777
    %3024 = vmatpush1.bf16.msra.mxu0 %v1776
    %3025 = vmatprep.subr.bf16.mxu0 %v1783
    %3026 = vmatpush1.bf16.msra.mxu0 %v1782
    %3027 = vmatprep.subr.bf16.mxu0 %v1789
    %3028 = vmatpush1.bf16.msra.mxu0 %v1788
    %3029 = vmatprep.subr.bf16.mxu0 %v1795
    %3030 = vmatpush1.bf16.msra.mxu0 %v1794
    %3031 = vmatprep.subr.bf16.mxu0 %v1801
    %3032 = vmatpush1.bf16.msra.mxu0 %v1800
    %3033 = vmatprep.subr.bf16.mxu0 %v1807
    %3034 = vmatpush1.bf16.msra.mxu0 %v1806
    %3035 = vmatprep.subr.bf16.mxu0 %v1813
    %3036 = vmatpush1.bf16.msra.mxu0 %v1812
    %3037 = vmatprep.subr.bf16.mxu0 %v1819
    %3038 = vmatpush1.bf16.msra.mxu0 %v1818
    %3039 = vmatprep.subr.bf16.mxu0 %v1825
    %3040 = vmatpush1.bf16.msra.mxu0 %v1824
    %3041 = vmatprep.subr.bf16.mxu0 %v1831
    %3042 = vmatpush1.bf16.msra.mxu0 %v1830
    %3043 = vmatprep.subr.bf16.mxu0 %v1837
    %3044 = vmatpush1.bf16.msra.mxu0 %v1836
    %3045 = vmatprep.mubr.bf16.mxu0 %v475
    %3046 = vmatmul.mubr.bf16.gmra.mrb[0].mxu0 %v474
    %v3047 = vpop.f32.mrb[0].mxu0
    %v3048 = vadd.f32 %v2935, %v3047
    %v3049 = vpop.f32.mrb[0].mxu0
    %v3050 = vadd.f32 %v2937, %v3049
    %v3051 = vpop.f32.mrb[0].mxu0
    %v3052 = vadd.f32 %v2939, %v3051
    %v3053 = vpop.f32.mrb[0].mxu0
    %v3054 = vadd.f32 %v2941, %v3053
    %3055 = vmatprep.mubr.bf16.mxu0 %v477
    %3056 = vmatmul.mubr.bf16.gmra.mrb[0].mxu0 %v476
    %v3057 = vpop.f32.mrb[0].mxu0
    %v3058 = vadd.f32 %v2945, %v3057
    %v3059 = vpop.f32.mrb[0].mxu0
    %v3060 = vadd.f32 %v2947, %v3059
    %v3061 = vpop.f32.mrb[0].mxu0
    %v3062 = vadd.f32 %v2949, %v3061
    %v3063 = vpop.f32.mrb[0].mxu0
    %v3064 = vadd.f32 %v2951, %v3063
    %3065 = vmatprep.mubr.bf16.mxu0 %v479
    %3066 = vmatmul.mubr.bf16.gmra.mrb[0].mxu0 %v478
    %v3067 = vpop.f32.mrb[0].mxu0
    %v3068 = vadd.f32 %v2955, %v3067
    %v3069 = vpop.f32.mrb[0].mxu0
    %v3070 = vadd.f32 %v2957, %v3069
    %v3071 = vpop.f32.mrb[0].mxu0
    %v3072 = vadd.f32 %v2959, %v3071
    %v3073 = vpop.f32.mrb[0].mxu0
    %v3074 = vadd.f32 %v2961, %v3073
    %3075 = vmatprep.mubr.bf16.mxu0 %v481
    %3076 = vmatmul.mubr.bf16.gmra.mrb[0].mxu0 %v480
    %v3077 = vpop.f32.mrb[0].mxu0
    %v3078 = vadd.f32 %v2965, %v3077
    %v3079 = vpop.f32.mrb[0].mxu0
    %v3080 = vadd.f32 %v2967, %v3079
    %v3081 = vpop.f32.mrb[0].mxu0
    %v3082 = vadd.f32 %v2969, %v3081
    %v3083 = vpop.f32.mrb[0].mxu0
    %v3084 = vadd.f32 %v2971, %v3083
    %3085 = vmatprep.mubr.bf16.mxu0 %v483
    %3086 = vmatmul.mubr.bf16.gmra.mrb[0].mxu0 %v482
    %v3087 = vpop.f32.mrb[0].mxu0
    %v3088 = vadd.f32 %v2975, %v3087
    %v3089 = vpop.f32.mrb[0].mxu0
    %v3090 = vadd.f32 %v2977, %v3089
    %v3091 = vpop.f32.mrb[0].mxu0
    %v3092 = vadd.f32 %v2979, %v3091
    %v3093 = vpop.f32.mrb[0].mxu0
    %v3094 = vadd.f32 %v2981, %v3093
    %3095 = vmatprep.mubr.bf16.mxu0 %v485
    %3096 = vmatmul.mubr.bf16.gmra.mrb[0].mxu0 %v484
    %v3097 = vpop.f32.mrb[0].mxu0
    %v3098 = vadd.f32 %v2985, %v3097
    %v3099 = vpop.f32.mrb[0].mxu0
    %v3100 = vadd.f32 %v2987, %v3099
    %v3101 = vpop.f32.mrb[0].mxu0
    %v3102 = vadd.f32 %v2989, %v3101
    %v3103 = vpop.f32.mrb[0].mxu0
    %v3104 = vadd.f32 %v2991, %v3103
    %3105 = vmatprep.mubr.bf16.mxu0 %v487
    %3106 = vmatmul.mubr.bf16.gmra.mrb[0].mxu0 %v486
    %v3107 = vpop.f32.mrb[0].mxu0
    %v3108 = vadd.f32 %v2995, %v3107
    %v3109 = vpop.f32.mrb[0].mxu0
    %v3110 = vadd.f32 %v2997, %v3109
    %v3111 = vpop.f32.mrb[0].mxu0
    %v3112 = vadd.f32 %v2999, %v3111
    %v3113 = vpop.f32.mrb[0].mxu0
    %v3114 = vadd.f32 %v3001, %v3113
    %3115 = vmatprep.mubr.bf16.mxu0 %v489
    %3116 = vmatmul.mubr.bf16.gmra.mrb[0].mxu0 %v488
    %v3117 = vpop.f32.mrb[0].mxu0
    %v3118 = vadd.f32 %v3005, %v3117
    %v3119 = vpop.f32.mrb[0].mxu0
    %v3120 = vadd.f32 %v3007, %v3119
    %v3121 = vpop.f32.mrb[0].mxu0
    %v3122 = vadd.f32 %v3009, %v3121
    %v3123 = vpop.f32.mrb[0].mxu0
    %v3124 = vadd.f32 %v3011, %v3123
    %3125 = vdwg.mxu0
    %3126 = vmatprep.subr.bf16.mxu0 %v1843
    %3127 = vmatpush1.bf16.msra.mxu0 %v1842
    %3128 = vmatprep.subr.bf16.mxu0 %v1849
    %3129 = vmatpush1.bf16.msra.mxu0 %v1848
    %3130 = vmatprep.subr.bf16.mxu0 %v1855
    %3131 = vmatpush1.bf16.msra.mxu0 %v1854
    %3132 = vmatprep.subr.bf16.mxu0 %v1861
    %3133 = vmatpush1.bf16.msra.mxu0 %v1860
    %3134 = vmatprep.subr.bf16.mxu0 %v1867
    %3135 = vmatpush1.bf16.msra.mxu0 %v1866
    %3136 = vmatprep.subr.bf16.mxu0 %v1873
    %3137 = vmatpush1.bf16.msra.mxu0 %v1872
    %3138 = vmatprep.subr.bf16.mxu0 %v1879
    %3139 = vmatpush1.bf16.msra.mxu0 %v1878
    %3140 = vmatprep.subr.bf16.mxu0 %v1885
    %3141 = vmatpush1.bf16.msra.mxu0 %v1884
    %3142 = vmatprep.subr.bf16.mxu0 %v1891
    %3143 = vmatpush1.bf16.msra.mxu0 %v1890
    %3144 = vmatprep.subr.bf16.mxu0 %v1897
    %3145 = vmatpush1.bf16.msra.mxu0 %v1896
    %3146 = vmatprep.subr.bf16.mxu0 %v1903
    %3147 = vmatpush1.bf16.msra.mxu0 %v1902
    %3148 = vmatprep.subr.bf16.mxu0 %v1909
    %3149 = vmatpush1.bf16.msra.mxu0 %v1908
    %3150 = vmatprep.subr.bf16.mxu0 %v1915
    %3151 = vmatpush1.bf16.msra.mxu0 %v1914
    %3152 = vmatprep.subr.bf16.mxu0 %v1921
    %3153 = vmatpush1.bf16.msra.mxu0 %v1920
    %3154 = vmatprep.subr.bf16.mxu0 %v1927
    %3155 = vmatpush1.bf16.msra.mxu0 %v1926
    %3156 = vmatprep.subr.bf16.mxu0 %v1933
    %3157 = vmatpush1.bf16.msra.mxu0 %v1932
    %3158 = vmatprep.mubr.bf16.mxu0 %v461
    %3159 = vmatmul.mubr.bf16.gmra.mrb[0].mxu0 %v460
    %v3160 = vpop.f32.mrb[0].mxu0
    %v3161 = vadd.f32 %v3048, %v3160
    %v3162 = vpop.f32.mrb[0].mxu0
    %v3163 = vadd.f32 %v3050, %v3162
    %v3164 = vpop.f32.mrb[0].mxu0
    %v3165 = vadd.f32 %v3052, %v3164
    %v3166 = vpop.f32.mrb[0].mxu0
    %v3167 = vadd.f32 %v3054, %v3166
    %3168 = vmatprep.mubr.bf16.mxu0 %v463
    %3169 = vmatmul.mubr.bf16.gmra.mrb[0].mxu0 %v462
    %v3170 = vpop.f32.mrb[0].mxu0
    %v3171 = vadd.f32 %v3058, %v3170
    %v3172 = vpop.f32.mrb[0].mxu0
    %v3173 = vadd.f32 %v3060, %v3172
    %v3174 = vpop.f32.mrb[0].mxu0
    %v3175 = vadd.f32 %v3062, %v3174
    %v3176 = vpop.f32.mrb[0].mxu0
    %v3177 = vadd.f32 %v3064, %v3176
    %3178 = vmatprep.mubr.bf16.mxu0 %v465
    %3179 = vmatmul.mubr.bf16.gmra.mrb[0].mxu0 %v464
    %v3180 = vpop.f32.mrb[0].mxu0
    %v3181 = vadd.f32 %v3068, %v3180
    %v3182 = vpop.f32.mrb[0].mxu0
    %v3183 = vadd.f32 %v3070, %v3182
    %v3184 = vpop.f32.mrb[0].mxu0
    %v3185 = vadd.f32 %v3072, %v3184
    %v3186 = vpop.f32.mrb[0].mxu0
    %v3187 = vadd.f32 %v3074, %v3186
    %3188 = vmatprep.mubr.bf16.mxu0 %v491
    %3189 = vmatmul.mubr.bf16.gmra.mrb[0].mxu0 %v490
    %v3190 = vpop.f32.mrb[0].mxu0
    %v3191 = vadd.f32 %v3078, %v3190
    %v3192 = vpop.f32.mrb[0].mxu0
    %v3193 = vadd.f32 %v3080, %v3192
    %v3194 = vpop.f32.mrb[0].mxu0
    %v3195 = vadd.f32 %v3082, %v3194
    %v3196 = vpop.f32.mrb[0].mxu0
    %v3197 = vadd.f32 %v3084, %v3196
    %3198 = vmatprep.mubr.bf16.mxu0 %v469
    %3199 = vmatmul.mubr.bf16.gmra.mrb[0].mxu0 %v468
    %v3200 = vpop.f32.mrb[0].mxu0
    %v3201 = vadd.f32 %v3088, %v3200
    %v3202 = vpop.f32.mrb[0].mxu0
    %v3203 = vadd.f32 %v3090, %v3202
    %v3204 = vpop.f32.mrb[0].mxu0
    %v3205 = vadd.f32 %v3092, %v3204
    %v3206 = vpop.f32.mrb[0].mxu0
    %v3207 = vadd.f32 %v3094, %v3206
    %3208 = vmatprep.mubr.bf16.mxu0 %v471
    %3209 = vmatmul.mubr.bf16.gmra.mrb[0].mxu0 %v470
    %v3210 = vpop.f32.mrb[0].mxu0
    %v3211 = vadd.f32 %v3098, %v3210
    %v3212 = vpop.f32.mrb[0].mxu0
    %v3213 = vadd.f32 %v3100, %v3212
    %v3214 = vpop.f32.mrb[0].mxu0
    %v3215 = vadd.f32 %v3102, %v3214
    %v3216 = vpop.f32.mrb[0].mxu0
    %v3217 = vadd.f32 %v3104, %v3216
    %3218 = vmatprep.mubr.bf16.mxu0 %v473
    %3219 = vmatmul.mubr.bf16.gmra.mrb[0].mxu0 %v472
    %v3220 = vpop.f32.mrb[0].mxu0
    %v3221 = vadd.f32 %v3108, %v3220
    %v3222 = vpop.f32.mrb[0].mxu0
    %v3223 = vadd.f32 %v3110, %v3222
    %v3224 = vpop.f32.mrb[0].mxu0
    %v3225 = vadd.f32 %v3112, %v3224
    %v3226 = vpop.f32.mrb[0].mxu0
    %v3227 = vadd.f32 %v3114, %v3226
    %3228 = vmatprep.mubr.bf16.mxu0 %v493
    %3229 = vmatmul.mubr.bf16.gmra.mrb[0].mxu0 %v492
    %v3230 = vpop.f32.mrb[0].mxu0
    %v3231 = vadd.f32 %v3118, %v3230
    %v3232 = vpop.f32.mrb[0].mxu0
    %v3233 = vadd.f32 %v3120, %v3232
    %v3234 = vpop.f32.mrb[0].mxu0
    %v3235 = vadd.f32 %v3122, %v3234
    %v3236 = vpop.f32.mrb[0].mxu0
    %v3237 = vadd.f32 %v3124, %v3236
    %3238 = vdwg.mxu0
    %v3239 = vrot.slane %v2483, 7
    %v3240 = vrot.slane %v2485, 7
    %v3241 = vrot.slane %v2487, 7
    %v3242 = vrot.slane %v2489, 7
    %v3243 = vrot.slane %v2493, 7
    %v3244 = vrot.slane %v2495, 7
    %v3245 = vrot.slane %v2497, 7
    %v3246 = vrot.slane %v2499, 7
    %v3247 = vrot.slane %v2503, 7
    %v3248 = vrot.slane %v2505, 7
    %v3249 = vrot.slane %v2507, 7
    %v3250 = vrot.slane %v2509, 7
    %v3251 = vrot.slane %v2513, 7
    %v3252 = vrot.slane %v2515, 7
    %v3253 = vrot.slane %v2517, 7
    %v3254 = vrot.slane %v2519, 7
    %v3255 = vrot.slane %v2523, 7
    %v3256 = vrot.slane %v2525, 7
    %v3257 = vrot.slane %v2527, 7
    %v3258 = vrot.slane %v2529, 7
    %v3259 = vrot.slane %v2533, 7
    %v3260 = vrot.slane %v2535, 7
    %v3261 = vrot.slane %v2537, 7
    %v3262 = vrot.slane %v2539, 7
    %v3263 = vrot.slane %v2543, 7
    %v3264 = vrot.slane %v2545, 7
    %v3265 = vrot.slane %v2547, 7
    %v3266 = vrot.slane %v2549, 7
    %v3267 = vrot.slane %v2553, 7
    %v3268 = vrot.slane %v2555, 7
    %v3269 = vrot.slane %v2557, 7
    %v3270 = vrot.slane %v2559, 7
    %vm3271 = vcmp.lt.s32.totalorder %v455, 1
    %v3272 = vsel %vm3271, %v3267, %v3269
    %v3273 = vsel %vm3271, %v3268, %v3270
    %v3274 = vsel %vm3271, %v3265, %v3267
    %v3275 = vsel %vm3271, %v3266, %v3268
    %v3276 = vsel %vm3271, %v3263, %v3265
    %v3277 = vsel %vm3271, %v3264, %v3266
    %v3278 = vsel %vm3271, %v3261, %v3263
    %v3279 = vsel %vm3271, %v3262, %v3264
    %v3280 = vsel %vm3271, %v3259, %v3261
    %v3281 = vsel %vm3271, %v3260, %v3262
    %v3282 = vsel %vm3271, %v3257, %v3259
    %v3283 = vsel %vm3271, %v3258, %v3260
    %v3284 = vsel %vm3271, %v3255, %v3257
    %v3285 = vsel %vm3271, %v3256, %v3258
    %v3286 = vsel %vm3271, %v3253, %v3255
    %v3287 = vsel %vm3271, %v3254, %v3256
    %v3288 = vsel %vm3271, %v3251, %v3253
    %v3289 = vsel %vm3271, %v3252, %v3254
    %v3290 = vsel %vm3271, %v3249, %v3251
    %v3291 = vsel %vm3271, %v3250, %v3252
    %v3292 = vsel %vm3271, %v3247, %v3249
    %v3293 = vsel %vm3271, %v3248, %v3250
    %v3294 = vsel %vm3271, %v3245, %v3247
    %v3295 = vsel %vm3271, %v3246, %v3248
    %v3296 = vsel %vm3271, %v3243, %v3245
    %v3297 = vsel %vm3271, %v3244, %v3246
    %v3298 = vsel %vm3271, %v3241, %v3243
    %v3299 = vsel %vm3271, %v3242, %v3244
    %v3300 = vsel %vm3271, %v3239, %v3241
    %v3301 = vsel %vm3271, %v3240, %v3242
    %v3302 = vsel %vm3271, %v3269, %v3239
    %v3303 = vsel %vm3271, %v3270, %v3240
    %v3304 = vsel %vm456, %v3302, 0.0
    %v3305 = vsel %vm456, %v3303, 0.0
    %v3306 = vsel %vm456, %v3300, 0.0
    %v3307 = vsel %vm456, %v3301, 0.0
    %v3308 = vsel %vm456, %v3298, 0.0
    %v3309 = vsel %vm456, %v3299, 0.0
    %v3310 = vsel %vm456, %v3296, 0.0
    %v3311 = vsel %vm456, %v3297, 0.0
    %v3312 = vsel %vm456, %v3294, 0.0
    %v3313 = vsel %vm456, %v3295, 0.0
    %v3314 = vsel %vm456, %v3292, 0.0
    %v3315 = vsel %vm456, %v3293, 0.0
    %v3316 = vsel %vm456, %v3290, 0.0
    %v3317 = vsel %vm456, %v3291, 0.0
    %v3318 = vsel %vm456, %v3288, 0.0
    %v3319 = vsel %vm456, %v3289, 0.0
    %v3320 = vsel %vm456, %v3286, 0.0
    %v3321 = vsel %vm456, %v3287, 0.0
    %v3322 = vsel %vm456, %v3284, 0.0
    %v3323 = vsel %vm456, %v3285, 0.0
    %v3324 = vsel %vm456, %v3282, 0.0
    %v3325 = vsel %vm456, %v3283, 0.0
    %v3326 = vsel %vm456, %v3280, 0.0
    %v3327 = vsel %vm456, %v3281, 0.0
    %v3328 = vsel %vm456, %v3278, 0.0
    %v3329 = vsel %vm456, %v3279, 0.0
    %v3330 = vsel %vm456, %v3276, 0.0
    %v3331 = vsel %vm456, %v3277, 0.0
    %v3332 = vsel %vm456, %v3274, 0.0
    %v3333 = vsel %vm456, %v3275, 0.0
    %v3334 = vsel %vm456, %v3272, 0.0
    %v3335 = vsel %vm456, %v3273, 0.0
    %v3336 = vadd.f32 %v2822, %v3304
    %v3337 = vadd.f32 %v2824, %v3305
    %v3338 = vadd.f32 %v2826, %v3306
    %v3339 = vadd.f32 %v2828, %v3307
    %v3340 = vadd.f32 %v2832, %v3308
    %v3341 = vadd.f32 %v2834, %v3309
    %v3342 = vadd.f32 %v2836, %v3310
    %v3343 = vadd.f32 %v2838, %v3311
    %v3344 = vadd.f32 %v2842, %v3312
    %v3345 = vadd.f32 %v2844, %v3313
    %v3346 = vadd.f32 %v2846, %v3314
    %v3347 = vadd.f32 %v2848, %v3315
    %v3348 = vadd.f32 %v2852, %v3316
    %v3349 = vadd.f32 %v2854, %v3317
    %v3350 = vadd.f32 %v2856, %v3318
    %v3351 = vadd.f32 %v2858, %v3319
    %v3352 = vadd.f32 %v2862, %v3320
    %v3353 = vadd.f32 %v2864, %v3321
    %v3354 = vadd.f32 %v2866, %v3322
    %v3355 = vadd.f32 %v2868, %v3323
    %v3356 = vadd.f32 %v2872, %v3324
    %v3357 = vadd.f32 %v2874, %v3325
    %v3358 = vadd.f32 %v2876, %v3326
    %v3359 = vadd.f32 %v2878, %v3327
    %v3360 = vadd.f32 %v2882, %v3328
    %v3361 = vadd.f32 %v2884, %v3329
    %v3362 = vadd.f32 %v2886, %v3330
    %v3363 = vadd.f32 %v2888, %v3331
    %v3364 = vadd.f32 %v2892, %v3332
    %v3365 = vadd.f32 %v2894, %v3333
    %v3366 = vadd.f32 %v2896, %v3334
    %v3367 = vadd.f32 %v2898, %v3335
    %v3368 = vrot.slane %v3161, 1
    %v3369 = vrot.slane %v3163, 1
    %v3370 = vrot.slane %v3165, 1
    %v3371 = vrot.slane %v3167, 1
    %v3372 = vrot.slane %v3171, 1
    %v3373 = vrot.slane %v3173, 1
    %v3374 = vrot.slane %v3175, 1
    %v3375 = vrot.slane %v3177, 1
    %v3376 = vrot.slane %v3181, 1
    %v3377 = vrot.slane %v3183, 1
    %v3378 = vrot.slane %v3185, 1
    %v3379 = vrot.slane %v3187, 1
    %v3380 = vrot.slane %v3191, 1
    %v3381 = vrot.slane %v3193, 1
    %v3382 = vrot.slane %v3195, 1
    %v3383 = vrot.slane %v3197, 1
    %v3384 = vrot.slane %v3201, 1
    %v3385 = vrot.slane %v3203, 1
    %v3386 = vrot.slane %v3205, 1
    %v3387 = vrot.slane %v3207, 1
    %v3388 = vrot.slane %v3211, 1
    %v3389 = vrot.slane %v3213, 1
    %v3390 = vrot.slane %v3215, 1
    %v3391 = vrot.slane %v3217, 1
    %v3392 = vrot.slane %v3221, 1
    %v3393 = vrot.slane %v3223, 1
    %v3394 = vrot.slane %v3225, 1
    %v3395 = vrot.slane %v3227, 1
    %v3396 = vrot.slane %v3231, 1
    %v3397 = vrot.slane %v3233, 1
    %v3398 = vrot.slane %v3235, 1
    %v3399 = vrot.slane %v3237, 1
    %vm3400 = vcmp.lt.s32.totalorder %v455, 7
    %v3401 = vsel %vm3400, %v3396, %v3398
    %v3402 = vsel %vm3400, %v3397, %v3399
    %v3403 = vsel %vm3400, %v3394, %v3396
    %v3404 = vsel %vm3400, %v3395, %v3397
    %v3405 = vsel %vm3400, %v3392, %v3394
    %v3406 = vsel %vm3400, %v3393, %v3395
    %v3407 = vsel %vm3400, %v3390, %v3392
    %v3408 = vsel %vm3400, %v3391, %v3393
    %v3409 = vsel %vm3400, %v3388, %v3390
    %v3410 = vsel %vm3400, %v3389, %v3391
    %v3411 = vsel %vm3400, %v3386, %v3388
    %v3412 = vsel %vm3400, %v3387, %v3389
    %v3413 = vsel %vm3400, %v3384, %v3386
    %v3414 = vsel %vm3400, %v3385, %v3387
    %v3415 = vsel %vm3400, %v3382, %v3384
    %v3416 = vsel %vm3400, %v3383, %v3385
    %v3417 = vsel %vm3400, %v3380, %v3382
    %v3418 = vsel %vm3400, %v3381, %v3383
    %v3419 = vsel %vm3400, %v3378, %v3380
    %v3420 = vsel %vm3400, %v3379, %v3381
    %v3421 = vsel %vm3400, %v3376, %v3378
    %v3422 = vsel %vm3400, %v3377, %v3379
    %v3423 = vsel %vm3400, %v3374, %v3376
    %v3424 = vsel %vm3400, %v3375, %v3377
    %v3425 = vsel %vm3400, %v3372, %v3374
    %v3426 = vsel %vm3400, %v3373, %v3375
    %v3427 = vsel %vm3400, %v3370, %v3372
    %v3428 = vsel %vm3400, %v3371, %v3373
    %v3429 = vsel %vm3400, %v3368, %v3370
    %v3430 = vsel %vm3400, %v3369, %v3371
    %v3431 = vsel %vm3400, %v3398, %v3368
    %v3432 = vsel %vm3400, %v3399, %v3369
    %v3433 = vsel %vm457, %v3429, 0.0
    %v3434 = vsel %vm457, %v3430, 0.0
    %v3435 = vsel %vm457, %v3427, 0.0
    %v3436 = vsel %vm457, %v3428, 0.0
    %v3437 = vsel %vm457, %v3425, 0.0
    %v3438 = vsel %vm457, %v3426, 0.0
    %v3439 = vsel %vm457, %v3423, 0.0
    %v3440 = vsel %vm457, %v3424, 0.0
    %v3441 = vsel %vm457, %v3421, 0.0
    %v3442 = vsel %vm457, %v3422, 0.0
    %v3443 = vsel %vm457, %v3419, 0.0
    %v3444 = vsel %vm457, %v3420, 0.0
    %v3445 = vsel %vm457, %v3417, 0.0
    %v3446 = vsel %vm457, %v3418, 0.0
    %v3447 = vsel %vm457, %v3415, 0.0
    %v3448 = vsel %vm457, %v3416, 0.0
    %v3449 = vsel %vm457, %v3413, 0.0
    %v3450 = vsel %vm457, %v3414, 0.0
    %v3451 = vsel %vm457, %v3411, 0.0
    %v3452 = vsel %vm457, %v3412, 0.0
    %v3453 = vsel %vm457, %v3409, 0.0
    %v3454 = vsel %vm457, %v3410, 0.0
    %v3455 = vsel %vm457, %v3407, 0.0
    %v3456 = vsel %vm457, %v3408, 0.0
    %v3457 = vsel %vm457, %v3405, 0.0
    %v3458 = vsel %vm457, %v3406, 0.0
    %v3459 = vsel %vm457, %v3403, 0.0
    %v3460 = vsel %vm457, %v3404, 0.0
    %v3461 = vsel %vm457, %v3401, 0.0
    %v3462 = vsel %vm457, %v3402, 0.0
    %v3463 = vsel %vm457, %v3431, 0.0
    %v3464 = vsel %vm457, %v3432, 0.0
    %v3465 = vadd.f32 %v3336, %v3433
    %v3466 = vadd.f32 %v3337, %v3434
    %v3467 = vadd.f32 %v3338, %v3435
    %v3468 = vadd.f32 %v3339, %v3436
    %v3469 = vadd.f32 %v3340, %v3437
    %v3470 = vadd.f32 %v3341, %v3438
    %v3471 = vadd.f32 %v3342, %v3439
    %v3472 = vadd.f32 %v3343, %v3440
    %v3473 = vadd.f32 %v3344, %v3441
    %v3474 = vadd.f32 %v3345, %v3442
    %v3475 = vadd.f32 %v3346, %v3443
    %v3476 = vadd.f32 %v3347, %v3444
    %v3477 = vadd.f32 %v3348, %v3445
    %v3478 = vadd.f32 %v3349, %v3446
    %v3479 = vadd.f32 %v3350, %v3447
    %v3480 = vadd.f32 %v3351, %v3448
    %v3481 = vadd.f32 %v3352, %v3449
    %v3482 = vadd.f32 %v3353, %v3450
    %v3483 = vadd.f32 %v3354, %v3451
    %v3484 = vadd.f32 %v3355, %v3452
    %v3485 = vadd.f32 %v3356, %v3453
    %v3486 = vadd.f32 %v3357, %v3454
    %v3487 = vadd.f32 %v3358, %v3455
    %v3488 = vadd.f32 %v3359, %v3456
    %v3489 = vadd.f32 %v3360, %v3457
    %v3490 = vadd.f32 %v3361, %v3458
    %v3491 = vadd.f32 %v3362, %v3459
    %v3492 = vadd.f32 %v3363, %v3460
    %v3493 = vadd.f32 %v3364, %v3461
    %v3494 = vadd.f32 %v3365, %v3462
    %v3495 = vadd.f32 %v3366, %v3463
    %v3496 = vadd.f32 %v3367, %v3464
    %v3497 = vld [vmem:[#allocation8] sm:$0x3]
    %v3499 = vlaneseq
    %v3500 = vshrl.u32 %v3499, 7
    %v3501 = vsub.s32 0, %v3500
    %v3502 = vrot.slane %v3497, %v3501
    %v3503 = vlaneseq
    %v3504 = vshrl.u32 %v3503, 7
    %v3505 = vsub.s32 1, %v3504
    %v3506 = vrot.slane %v3497, %v3505
    %v3509 = vadd.f32 %v3465, %v3502
    %v3510 = vadd.f32 %v3466, %v3506
    %v3511 = vadd.f32 %v3467, %v3502
    %v3512 = vadd.f32 %v3468, %v3506
    %v3513 = vadd.f32 %v3469, %v3502
    %v3514 = vadd.f32 %v3470, %v3506
    %v3515 = vadd.f32 %v3471, %v3502
    %v3516 = vadd.f32 %v3472, %v3506
    %v3517 = vadd.f32 %v3473, %v3502
    %v3518 = vadd.f32 %v3474, %v3506
    %v3519 = vadd.f32 %v3475, %v3502
    %v3520 = vadd.f32 %v3476, %v3506
    %v3521 = vadd.f32 %v3477, %v3502
    %v3522 = vadd.f32 %v3478, %v3506
    %v3523 = vadd.f32 %v3479, %v3502
    %v3524 = vadd.f32 %v3480, %v3506
    %v3525 = vadd.f32 %v3481, %v3502
    %v3526 = vadd.f32 %v3482, %v3506
    %v3527 = vadd.f32 %v3483, %v3502
    %v3528 = vadd.f32 %v3484, %v3506
    %v3529 = vadd.f32 %v3485, %v3502
    %v3530 = vadd.f32 %v3486, %v3506
    %v3531 = vadd.f32 %v3487, %v3502
    %v3532 = vadd.f32 %v3488, %v3506
    %v3533 = vadd.f32 %v3489, %v3502
    %v3534 = vadd.f32 %v3490, %v3506
    %v3535 = vadd.f32 %v3491, %v3502
    %v3536 = vadd.f32 %v3492, %v3506
    %v3537 = vadd.f32 %v3493, %v3502
    %v3538 = vadd.f32 %v3494, %v3506
    %v3539 = vadd.f32 %v3495, %v3502
    %v3540 = vadd.f32 %v3496, %v3506
    %v3541 = vmax.f32 %v3509, 0.0
    %v3542 = vmax.f32 %v3510, 0.0
    %v3543 = vmax.f32 %v3511, 0.0
    %v3544 = vmax.f32 %v3512, 0.0
    %v3545 = vmax.f32 %v3513, 0.0
    %v3546 = vmax.f32 %v3514, 0.0
    %v3547 = vmax.f32 %v3515, 0.0
    %v3548 = vmax.f32 %v3516, 0.0
    %v3549 = vmax.f32 %v3517, 0.0
    %v3550 = vmax.f32 %v3518, 0.0
    %v3551 = vmax.f32 %v3519, 0.0
    %v3552 = vmax.f32 %v3520, 0.0
    %v3553 = vmax.f32 %v3521, 0.0
    %v3554 = vmax.f32 %v3522, 0.0
    %v3555 = vmax.f32 %v3523, 0.0
    %v3556 = vmax.f32 %v3524, 0.0
    %v3557 = vmax.f32 %v3525, 0.0
    %v3558 = vmax.f32 %v3526, 0.0
    %v3559 = vmax.f32 %v3527, 0.0
    %v3560 = vmax.f32 %v3528, 0.0
    %v3561 = vmax.f32 %v3529, 0.0
    %v3562 = vmax.f32 %v3530, 0.0
    %v3563 = vmax.f32 %v3531, 0.0
    %v3564 = vmax.f32 %v3532, 0.0
    %v3565 = vmax.f32 %v3533, 0.0
    %v3566 = vmax.f32 %v3534, 0.0
    %v3567 = vmax.f32 %v3535, 0.0
    %v3568 = vmax.f32 %v3536, 0.0
    %v3569 = vmax.f32 %v3537, 0.0
    %v3570 = vmax.f32 %v3538, 0.0
    %v3571 = vmax.f32 %v3539, 0.0
    %v3572 = vmax.f32 %v3540, 0.0
    %v3573 = vpack.c.bf16 %v3541, 0.0
    %v3574 = vpack.c.bf16 %v3542, 0.0
    %v3575 = vpack.c.bf16 %v3545, %v3543
    %v3576 = vpack.c.bf16 %v3546, %v3544
    %v3577 = vpack.c.bf16 %v3549, %v3547
    %v3578 = vpack.c.bf16 %v3550, %v3548
    %v3579 = vpack.c.bf16 %v3553, %v3551
    %v3580 = vpack.c.bf16 %v3554, %v3552
    %v3581 = vpack.c.bf16 %v3557, 0.0
    %v3582 = vpack.c.bf16 %v3558, 0.0
    %v3583 = vpack.c.bf16 %v3561, %v3559
    %v3584 = vpack.c.bf16 %v3562, %v3560
    %v3585 = vpack.c.bf16 %v3565, %v3563
    %v3586 = vpack.c.bf16 %v3566, %v3564
    %v3587 = vpack.c.bf16 %v3569, %v3567
    %v3588 = vpack.c.bf16 %v3570, %v3568
    %v3589 = vpack.c.bf16 %v3543, %v3541
    %v3590 = vpack.c.bf16 %v3544, %v3542
    %v3591 = vpack.c.bf16 %v3547, %v3545
    %v3592 = vpack.c.bf16 %v3548, %v3546
    %v3593 = vpack.c.bf16 %v3551, %v3549
    %v3594 = vpack.c.bf16 %v3552, %v3550
    %v3595 = vpack.c.bf16 %v3555, %v3553
    %v3596 = vpack.c.bf16 %v3556, %v3554
    %v3597 = vpack.c.bf16 %v3559, %v3557
    %v3598 = vpack.c.bf16 %v3560, %v3558
    %v3599 = vpack.c.bf16 %v3563, %v3561
    %v3600 = vpack.c.bf16 %v3564, %v3562
    %v3601 = vpack.c.bf16 %v3567, %v3565
    %v3602 = vpack.c.bf16 %v3568, %v3566
    %v3603 = vpack.c.bf16 %v3571, %v3569
    %v3604 = vpack.c.bf16 %v3572, %v3570
    %v3605 = vpack.c.bf16 0.0, %v3555
    %v3606 = vpack.c.bf16 0.0, %v3556
    %v3607 = vpack.c.bf16 0.0, %v3571
    %v3608 = vpack.c.bf16 0.0, %v3572
    %v3609 = vld [vmem:[#allocation10] sm:$0xff]
    %v3610 = vld [vmem:[#allocation10 + $0x8] sm:$0xff]
    %v3611 = vld [vmem:[#allocation10 + $0x10] sm:$0xff]
    %v3612 = vld [vmem:[#allocation10 + $0x18] sm:$0xff]
    %v3613 = vld [vmem:[#allocation10 + $0x20] sm:$0xff]
    %v3614 = vld [vmem:[#allocation10 + $0x28] sm:$0xff]
    %v3615 = vld [vmem:[#allocation10 + $0x30] sm:$0xff]
    %v3616 = vld [vmem:[#allocation10 + $0x38] sm:$0xff]
    %v3617 = vld [vmem:[#allocation10 + $0x40] sm:$0xff]
    %v3618 = vld [vmem:[#allocation10 + $0x48] sm:$0xff]
    %v3619 = vld [vmem:[#allocation10 + $0x50] sm:$0xff]
    %v3620 = vld [vmem:[#allocation10 + $0x58] sm:$0xff]
    %v3621 = vld [vmem:[#allocation10 + $0x60] sm:$0xff]
    %v3622 = vld [vmem:[#allocation10 + $0x68] sm:$0xff]
    %v3623 = vld [vmem:[#allocation10 + $0x70] sm:$0xff]
    %v3624 = vld [vmem:[#allocation10 + $0x78] sm:$0xff]
    %v3625 = vld [vmem:[#allocation10 + $0x80] sm:$0xff]
    %v3626 = vld [vmem:[#allocation10 + $0x88] sm:$0xff]
    %v3627 = vld [vmem:[#allocation10 + $0x90] sm:$0xff]
    %v3628 = vld [vmem:[#allocation10 + $0x98] sm:$0xff]
    %v3629 = vld [vmem:[#allocation10 + $0xa0] sm:$0xff]
    %v3630 = vld [vmem:[#allocation10 + $0xa8] sm:$0xff]
    %v3631 = vld [vmem:[#allocation10 + $0xb0] sm:$0xff]
    %v3632 = vld [vmem:[#allocation10 + $0xb8] sm:$0xff]
    %v3633 = vld [vmem:[#allocation10 + $0xc0] sm:$0xff]
    %v3634 = vld [vmem:[#allocation10 + $0xc8] sm:$0xff]
    %v3635 = vld [vmem:[#allocation10 + $0xd0] sm:$0xff]
    %v3636 = vld [vmem:[#allocation10 + $0xd8] sm:$0xff]
    %v3637 = vld [vmem:[#allocation10 + $0xe0] sm:$0xff]
    %v3638 = vld [vmem:[#allocation10 + $0xe8] sm:$0xff]
    %v3639 = vld [vmem:[#allocation10 + $0xf0] sm:$0xff]
    %v3640 = vld [vmem:[#allocation10 + $0xf8] sm:$0xff]
    %v3641 = vld [vmem:[#allocation10 + $0x100] sm:$0xff]
    %v3642 = vld [vmem:[#allocation10 + $0x108] sm:$0xff]
    %v3643 = vld [vmem:[#allocation10 + $0x110] sm:$0xff]
    %v3644 = vld [vmem:[#allocation10 + $0x118] sm:$0xff]
    %v3645 = vld [vmem:[#allocation10 + $0x120] sm:$0xff]
    %v3646 = vld [vmem:[#allocation10 + $0x128] sm:$0xff]
    %v3647 = vld [vmem:[#allocation10 + $0x130] sm:$0xff]
    %v3648 = vld [vmem:[#allocation10 + $0x138] sm:$0xff]
    %v3649 = vld [vmem:[#allocation10 + $0x140] sm:$0xff]
    %v3650 = vld [vmem:[#allocation10 + $0x148] sm:$0xff]
    %v3651 = vld [vmem:[#allocation10 + $0x150] sm:$0xff]
    %v3652 = vld [vmem:[#allocation10 + $0x158] sm:$0xff]
    %v3653 = vld [vmem:[#allocation10 + $0x160] sm:$0xff]
    %v3654 = vld [vmem:[#allocation10 + $0x168] sm:$0xff]
    %v3655 = vld [vmem:[#allocation10 + $0x170] sm:$0xff]
    %v3656 = vld [vmem:[#allocation10 + $0x178] sm:$0xff]
    %v3657 = vld [vmem:[#allocation10 + $0x180] sm:$0xff]
    %v3658 = vld [vmem:[#allocation10 + $0x188] sm:$0xff]
    %v3659 = vld [vmem:[#allocation10 + $0x190] sm:$0xff]
    %v3660 = vld [vmem:[#allocation10 + $0x198] sm:$0xff]
    %v3661 = vld [vmem:[#allocation10 + $0x1a0] sm:$0xff]
    %v3662 = vld [vmem:[#allocation10 + $0x1a8] sm:$0xff]
    %v3663 = vld [vmem:[#allocation10 + $0x1b0] sm:$0xff]
    %v3664 = vld [vmem:[#allocation10 + $0x1b8] sm:$0xff]
    %v3665 = vld [vmem:[#allocation10 + $0x1c0] sm:$0xff]
    %v3666 = vld [vmem:[#allocation10 + $0x1c8] sm:$0xff]
    %v3667 = vld [vmem:[#allocation10 + $0x1d0] sm:$0xff]
    %v3668 = vld [vmem:[#allocation10 + $0x1d8] sm:$0xff]
    %v3669 = vld [vmem:[#allocation10 + $0x1e0] sm:$0xff]
    %v3670 = vld [vmem:[#allocation10 + $0x1e8] sm:$0xff]
    %v3671 = vld [vmem:[#allocation10 + $0x1f0] sm:$0xff]
    %v3672 = vld [vmem:[#allocation10 + $0x1f8] sm:$0xff]
    %v3673 = vld [vmem:[#allocation10 + $0x200] sm:$0xff]
    %v3674 = vld [vmem:[#allocation10 + $0x208] sm:$0xff]
    %v3675 = vld [vmem:[#allocation10 + $0x210] sm:$0xff]
    %v3676 = vld [vmem:[#allocation10 + $0x218] sm:$0xff]
    %v3677 = vld [vmem:[#allocation10 + $0x220] sm:$0xff]
    %v3678 = vld [vmem:[#allocation10 + $0x228] sm:$0xff]
    %v3679 = vld [vmem:[#allocation10 + $0x230] sm:$0xff]
    %v3680 = vld [vmem:[#allocation10 + $0x238] sm:$0xff]
    %v3681 = vld [vmem:[#allocation10 + $0x240] sm:$0xff]
    %v3682 = vld [vmem:[#allocation10 + $0x248] sm:$0xff]
    %v3683 = vld [vmem:[#allocation10 + $0x250] sm:$0xff]
    %v3684 = vld [vmem:[#allocation10 + $0x258] sm:$0xff]
    %v3685 = vld [vmem:[#allocation10 + $0x260] sm:$0xff]
    %v3686 = vld [vmem:[#allocation10 + $0x268] sm:$0xff]
    %v3687 = vld [vmem:[#allocation10 + $0x270] sm:$0xff]
    %v3688 = vld [vmem:[#allocation10 + $0x278] sm:$0xff]
    %v3689 = vld [vmem:[#allocation10 + $0x280] sm:$0xff]
    %v3690 = vld [vmem:[#allocation10 + $0x288] sm:$0xff]
    %v3691 = vld [vmem:[#allocation10 + $0x290] sm:$0xff]
    %v3692 = vld [vmem:[#allocation10 + $0x298] sm:$0xff]
    %v3693 = vld [vmem:[#allocation10 + $0x2a0] sm:$0xff]
    %v3694 = vld [vmem:[#allocation10 + $0x2a8] sm:$0xff]
    %v3695 = vld [vmem:[#allocation10 + $0x2b0] sm:$0xff]
    %v3696 = vld [vmem:[#allocation10 + $0x2b8] sm:$0xff]
    %v3697 = vld [vmem:[#allocation10 + $0x2c0] sm:$0xff]
    %v3698 = vld [vmem:[#allocation10 + $0x2c8] sm:$0xff]
    %v3699 = vld [vmem:[#allocation10 + $0x2d0] sm:$0xff]
    %v3700 = vld [vmem:[#allocation10 + $0x2d8] sm:$0xff]
    %v3701 = vld [vmem:[#allocation10 + $0x2e0] sm:$0xff]
    %v3702 = vld [vmem:[#allocation10 + $0x2e8] sm:$0xff]
    %v3703 = vld [vmem:[#allocation10 + $0x2f0] sm:$0xff]
    %v3704 = vld [vmem:[#allocation10 + $0x2f8] sm:$0xff]
    %v3705 = vld [vmem:[#allocation10 + $0x300] sm:$0xff]
    %v3706 = vld [vmem:[#allocation10 + $0x308] sm:$0xff]
    %v3707 = vld [vmem:[#allocation10 + $0x310] sm:$0xff]
    %v3708 = vld [vmem:[#allocation10 + $0x318] sm:$0xff]
    %v3709 = vld [vmem:[#allocation10 + $0x320] sm:$0xff]
    %v3710 = vld [vmem:[#allocation10 + $0x328] sm:$0xff]
    %v3711 = vld [vmem:[#allocation10 + $0x330] sm:$0xff]
    %v3712 = vld [vmem:[#allocation10 + $0x338] sm:$0xff]
    %v3713 = vld [vmem:[#allocation10 + $0x340] sm:$0xff]
    %v3714 = vld [vmem:[#allocation10 + $0x348] sm:$0xff]
    %v3715 = vld [vmem:[#allocation10 + $0x350] sm:$0xff]
    %v3716 = vld [vmem:[#allocation10 + $0x358] sm:$0xff]
    %v3717 = vld [vmem:[#allocation10 + $0x360] sm:$0xff]
    %v3718 = vld [vmem:[#allocation10 + $0x368] sm:$0xff]
    %v3719 = vld [vmem:[#allocation10 + $0x370] sm:$0xff]
    %v3720 = vld [vmem:[#allocation10 + $0x378] sm:$0xff]
    %v3721 = vld [vmem:[#allocation10 + $0x380] sm:$0xff]
    %v3722 = vld [vmem:[#allocation10 + $0x388] sm:$0xff]
    %v3723 = vld [vmem:[#allocation10 + $0x390] sm:$0xff]
    %v3724 = vld [vmem:[#allocation10 + $0x398] sm:$0xff]
    %v3725 = vld [vmem:[#allocation10 + $0x3a0] sm:$0xff]
    %v3726 = vld [vmem:[#allocation10 + $0x3a8] sm:$0xff]
    %v3727 = vld [vmem:[#allocation10 + $0x3b0] sm:$0xff]
    %v3728 = vld [vmem:[#allocation10 + $0x3b8] sm:$0xff]
    %v3729 = vld [vmem:[#allocation10 + $0x3c0] sm:$0xff]
    %v3730 = vld [vmem:[#allocation10 + $0x3c8] sm:$0xff]
    %v3731 = vld [vmem:[#allocation10 + $0x3d0] sm:$0xff]
    %v3732 = vld [vmem:[#allocation10 + $0x3d8] sm:$0xff]
    %v3733 = vld [vmem:[#allocation10 + $0x3e0] sm:$0xff]
    %v3734 = vld [vmem:[#allocation10 + $0x3e8] sm:$0xff]
    %v3735 = vld [vmem:[#allocation10 + $0x3f0] sm:$0xff]
    %v3736 = vld [vmem:[#allocation10 + $0x3f8] sm:$0xff]
    %v3737 = vld [vmem:[#allocation10 + $0x400] sm:$0xff]
    %v3738 = vld [vmem:[#allocation10 + $0x408] sm:$0xff]
    %v3739 = vld [vmem:[#allocation10 + $0x410] sm:$0xff]
    %v3740 = vld [vmem:[#allocation10 + $0x418] sm:$0xff]
    %v3741 = vld [vmem:[#allocation10 + $0x420] sm:$0xff]
    %v3742 = vld [vmem:[#allocation10 + $0x428] sm:$0xff]
    %v3743 = vld [vmem:[#allocation10 + $0x430] sm:$0xff]
    %v3744 = vld [vmem:[#allocation10 + $0x438] sm:$0xff]
    %v3745 = vld [vmem:[#allocation10 + $0x440] sm:$0xff]
    %v3746 = vld [vmem:[#allocation10 + $0x448] sm:$0xff]
    %v3747 = vld [vmem:[#allocation10 + $0x450] sm:$0xff]
    %v3748 = vld [vmem:[#allocation10 + $0x458] sm:$0xff]
    %v3749 = vld [vmem:[#allocation10 + $0x460] sm:$0xff]
    %v3750 = vld [vmem:[#allocation10 + $0x468] sm:$0xff]
    %v3751 = vld [vmem:[#allocation10 + $0x470] sm:$0xff]
    %v3752 = vld [vmem:[#allocation10 + $0x478] sm:$0xff]
    %v3753 = vld [vmem:[#allocation10 + $0x480] sm:$0xff]
    %v3754 = vld [vmem:[#allocation10 + $0x488] sm:$0xff]
    %v3755 = vld [vmem:[#allocation10 + $0x490] sm:$0xff]
    %v3756 = vld [vmem:[#allocation10 + $0x498] sm:$0xff]
    %v3757 = vld [vmem:[#allocation10 + $0x4a0] sm:$0xff]
    %v3758 = vld [vmem:[#allocation10 + $0x4a8] sm:$0xff]
    %v3759 = vld [vmem:[#allocation10 + $0x4b0] sm:$0xff]
    %v3760 = vld [vmem:[#allocation10 + $0x4b8] sm:$0xff]
    %v3761 = vld [vmem:[#allocation10 + $0x4c0] sm:$0xff]
    %v3762 = vld [vmem:[#allocation10 + $0x4c8] sm:$0xff]
    %v3763 = vld [vmem:[#allocation10 + $0x4d0] sm:$0xff]
    %v3764 = vld [vmem:[#allocation10 + $0x4d8] sm:$0xff]
    %v3765 = vld [vmem:[#allocation10 + $0x4e0] sm:$0xff]
    %v3766 = vld [vmem:[#allocation10 + $0x4e8] sm:$0xff]
    %v3767 = vld [vmem:[#allocation10 + $0x4f0] sm:$0xff]
    %v3768 = vld [vmem:[#allocation10 + $0x4f8] sm:$0xff]
    %v3769 = vld [vmem:[#allocation10 + $0x500] sm:$0xff]
    %v3770 = vld [vmem:[#allocation10 + $0x508] sm:$0xff]
    %v3771 = vld [vmem:[#allocation10 + $0x510] sm:$0xff]
    %v3772 = vld [vmem:[#allocation10 + $0x518] sm:$0xff]
    %v3773 = vld [vmem:[#allocation10 + $0x520] sm:$0xff]
    %v3774 = vld [vmem:[#allocation10 + $0x528] sm:$0xff]
    %v3775 = vld [vmem:[#allocation10 + $0x530] sm:$0xff]
    %v3776 = vld [vmem:[#allocation10 + $0x538] sm:$0xff]
    %v3777 = vld [vmem:[#allocation10 + $0x540] sm:$0xff]
    %v3778 = vld [vmem:[#allocation10 + $0x548] sm:$0xff]
    %v3779 = vld [vmem:[#allocation10 + $0x550] sm:$0xff]
    %v3780 = vld [vmem:[#allocation10 + $0x558] sm:$0xff]
    %v3781 = vld [vmem:[#allocation10 + $0x560] sm:$0xff]
    %v3782 = vld [vmem:[#allocation10 + $0x568] sm:$0xff]
    %v3783 = vld [vmem:[#allocation10 + $0x570] sm:$0xff]
    %v3784 = vld [vmem:[#allocation10 + $0x578] sm:$0xff]
    %v3785 = vld [vmem:[#allocation10 + $0x580] sm:$0xff]
    %v3786 = vld [vmem:[#allocation10 + $0x588] sm:$0xff]
    %v3787 = vld [vmem:[#allocation10 + $0x590] sm:$0xff]
    %v3788 = vld [vmem:[#allocation10 + $0x598] sm:$0xff]
    %v3789 = vld [vmem:[#allocation10 + $0x5a0] sm:$0xff]
    %v3790 = vld [vmem:[#allocation10 + $0x5a8] sm:$0xff]
    %v3791 = vld [vmem:[#allocation10 + $0x5b0] sm:$0xff]
    %v3792 = vld [vmem:[#allocation10 + $0x5b8] sm:$0xff]
    %v3793 = vld [vmem:[#allocation10 + $0x5c0] sm:$0xff]
    %v3794 = vld [vmem:[#allocation10 + $0x5c8] sm:$0xff]
    %v3795 = vld [vmem:[#allocation10 + $0x5d0] sm:$0xff]
    %v3796 = vld [vmem:[#allocation10 + $0x5d8] sm:$0xff]
    %v3797 = vld [vmem:[#allocation10 + $0x5e0] sm:$0xff]
    %v3798 = vld [vmem:[#allocation10 + $0x5e8] sm:$0xff]
    %v3799 = vld [vmem:[#allocation10 + $0x5f0] sm:$0xff]
    %v3800 = vld [vmem:[#allocation10 + $0x5f8] sm:$0xff]
    %v3801 = vld [vmem:[#allocation10 + $0x600] sm:$0xff]
    %v3802 = vld [vmem:[#allocation10 + $0x608] sm:$0xff]
    %v3803 = vld [vmem:[#allocation10 + $0x610] sm:$0xff]
    %v3804 = vld [vmem:[#allocation10 + $0x618] sm:$0xff]
    %v3805 = vld [vmem:[#allocation10 + $0x620] sm:$0xff]
    %v3806 = vld [vmem:[#allocation10 + $0x628] sm:$0xff]
    %v3807 = vld [vmem:[#allocation10 + $0x630] sm:$0xff]
    %v3808 = vld [vmem:[#allocation10 + $0x638] sm:$0xff]
    %v3809 = vld [vmem:[#allocation10 + $0x640] sm:$0xff]
    %v3810 = vld [vmem:[#allocation10 + $0x648] sm:$0xff]
    %v3811 = vld [vmem:[#allocation10 + $0x650] sm:$0xff]
    %v3812 = vld [vmem:[#allocation10 + $0x658] sm:$0xff]
    %v3813 = vld [vmem:[#allocation10 + $0x660] sm:$0xff]
    %v3814 = vld [vmem:[#allocation10 + $0x668] sm:$0xff]
    %v3815 = vld [vmem:[#allocation10 + $0x670] sm:$0xff]
    %v3816 = vld [vmem:[#allocation10 + $0x678] sm:$0xff]
    %v3817 = vld [vmem:[#allocation10 + $0x680] sm:$0xff]
    %v3818 = vld [vmem:[#allocation10 + $0x688] sm:$0xff]
    %v3819 = vld [vmem:[#allocation10 + $0x690] sm:$0xff]
    %v3820 = vld [vmem:[#allocation10 + $0x698] sm:$0xff]
    %v3821 = vld [vmem:[#allocation10 + $0x6a0] sm:$0xff]
    %v3822 = vld [vmem:[#allocation10 + $0x6a8] sm:$0xff]
    %v3823 = vld [vmem:[#allocation10 + $0x6b0] sm:$0xff]
    %v3824 = vld [vmem:[#allocation10 + $0x6b8] sm:$0xff]
    %v3825 = vld [vmem:[#allocation10 + $0x6c0] sm:$0xff]
    %v3826 = vld [vmem:[#allocation10 + $0x6c8] sm:$0xff]
    %v3827 = vld [vmem:[#allocation10 + $0x6d0] sm:$0xff]
    %v3828 = vld [vmem:[#allocation10 + $0x6d8] sm:$0xff]
    %v3829 = vld [vmem:[#allocation10 + $0x6e0] sm:$0xff]
    %v3830 = vld [vmem:[#allocation10 + $0x6e8] sm:$0xff]
    %v3831 = vld [vmem:[#allocation10 + $0x6f0] sm:$0xff]
    %v3832 = vld [vmem:[#allocation10 + $0x6f8] sm:$0xff]
    %v3833 = vld [vmem:[#allocation10 + $0x700] sm:$0xff]
    %v3834 = vld [vmem:[#allocation10 + $0x708] sm:$0xff]
    %v3835 = vld [vmem:[#allocation10 + $0x710] sm:$0xff]
    %v3836 = vld [vmem:[#allocation10 + $0x718] sm:$0xff]
    %v3837 = vld [vmem:[#allocation10 + $0x720] sm:$0xff]
    %v3838 = vld [vmem:[#allocation10 + $0x728] sm:$0xff]
    %v3839 = vld [vmem:[#allocation10 + $0x730] sm:$0xff]
    %v3840 = vld [vmem:[#allocation10 + $0x738] sm:$0xff]
    %v3841 = vld [vmem:[#allocation10 + $0x740] sm:$0xff]
    %v3842 = vld [vmem:[#allocation10 + $0x748] sm:$0xff]
    %v3843 = vld [vmem:[#allocation10 + $0x750] sm:$0xff]
    %v3844 = vld [vmem:[#allocation10 + $0x758] sm:$0xff]
    %v3845 = vld [vmem:[#allocation10 + $0x760] sm:$0xff]
    %v3846 = vld [vmem:[#allocation10 + $0x768] sm:$0xff]
    %v3847 = vld [vmem:[#allocation10 + $0x770] sm:$0xff]
    %v3848 = vld [vmem:[#allocation10 + $0x778] sm:$0xff]
    %v3849 = vld [vmem:[#allocation10 + $0x780] sm:$0xff]
    %v3850 = vld [vmem:[#allocation10 + $0x788] sm:$0xff]
    %v3851 = vld [vmem:[#allocation10 + $0x790] sm:$0xff]
    %v3852 = vld [vmem:[#allocation10 + $0x798] sm:$0xff]
    %v3853 = vld [vmem:[#allocation10 + $0x7a0] sm:$0xff]
    %v3854 = vld [vmem:[#allocation10 + $0x7a8] sm:$0xff]
    %v3855 = vld [vmem:[#allocation10 + $0x7b0] sm:$0xff]
    %v3856 = vld [vmem:[#allocation10 + $0x7b8] sm:$0xff]
    %v3857 = vld [vmem:[#allocation10 + $0x7c0] sm:$0xff]
    %v3858 = vld [vmem:[#allocation10 + $0x7c8] sm:$0xff]
    %v3859 = vld [vmem:[#allocation10 + $0x7d0] sm:$0xff]
    %v3860 = vld [vmem:[#allocation10 + $0x7d8] sm:$0xff]
    %v3861 = vld [vmem:[#allocation10 + $0x7e0] sm:$0xff]
    %v3862 = vld [vmem:[#allocation10 + $0x7e8] sm:$0xff]
    %v3863 = vld [vmem:[#allocation10 + $0x7f0] sm:$0xff]
    %v3864 = vld [vmem:[#allocation10 + $0x7f8] sm:$0xff]
    %v3865 = vld [vmem:[#allocation10 + $0x800] sm:$0xff]
    %v3866 = vld [vmem:[#allocation10 + $0x808] sm:$0xff]
    %v3867 = vld [vmem:[#allocation10 + $0x810] sm:$0xff]
    %v3868 = vld [vmem:[#allocation10 + $0x818] sm:$0xff]
    %v3869 = vld [vmem:[#allocation10 + $0x820] sm:$0xff]
    %v3870 = vld [vmem:[#allocation10 + $0x828] sm:$0xff]
    %v3871 = vld [vmem:[#allocation10 + $0x830] sm:$0xff]
    %v3872 = vld [vmem:[#allocation10 + $0x838] sm:$0xff]
    %v3873 = vld [vmem:[#allocation10 + $0x840] sm:$0xff]
    %v3874 = vld [vmem:[#allocation10 + $0x848] sm:$0xff]
    %v3875 = vld [vmem:[#allocation10 + $0x850] sm:$0xff]
    %v3876 = vld [vmem:[#allocation10 + $0x858] sm:$0xff]
    %v3877 = vld [vmem:[#allocation10 + $0x860] sm:$0xff]
    %v3878 = vld [vmem:[#allocation10 + $0x868] sm:$0xff]
    %v3879 = vld [vmem:[#allocation10 + $0x870] sm:$0xff]
    %v3880 = vld [vmem:[#allocation10 + $0x878] sm:$0xff]
    %v3881 = vld [vmem:[#allocation10 + $0x880] sm:$0xff]
    %v3882 = vld [vmem:[#allocation10 + $0x888] sm:$0xff]
    %v3883 = vld [vmem:[#allocation10 + $0x890] sm:$0xff]
    %v3884 = vld [vmem:[#allocation10 + $0x898] sm:$0xff]
    %v3885 = vld [vmem:[#allocation10 + $0x8a0] sm:$0xff]
    %v3886 = vld [vmem:[#allocation10 + $0x8a8] sm:$0xff]
    %v3887 = vld [vmem:[#allocation10 + $0x8b0] sm:$0xff]
    %v3888 = vld [vmem:[#allocation10 + $0x8b8] sm:$0xff]
    %v3889 = vld [vmem:[#allocation10 + $0x8c0] sm:$0xff]
    %v3890 = vld [vmem:[#allocation10 + $0x8c8] sm:$0xff]
    %v3891 = vld [vmem:[#allocation10 + $0x8d0] sm:$0xff]
    %v3892 = vld [vmem:[#allocation10 + $0x8d8] sm:$0xff]
    %v3893 = vld [vmem:[#allocation10 + $0x8e0] sm:$0xff]
    %v3894 = vld [vmem:[#allocation10 + $0x8e8] sm:$0xff]
    %v3895 = vld [vmem:[#allocation10 + $0x8f0] sm:$0xff]
    %v3896 = vld [vmem:[#allocation10 + $0x8f8] sm:$0xff]
    %v4185 = vunpack.c.l.b16 %v3609
    %v4186 = vunpack.c.h.b16 %v3609
    %v4187 = vunpack.c.l.b16 %v3610
    %v4188 = vunpack.c.h.b16 %v3610
    %v4189 = vunpack.c.l.b16 %v3611
    %v4190 = vunpack.c.h.b16 %v3611
    %v4191 = vunpack.c.l.b16 %v3612
    %v4192 = vunpack.c.h.b16 %v3612
    %v4193 = vunpack.c.l.b16 %v3613
    %v4194 = vunpack.c.h.b16 %v3613
    %v4195 = vunpack.c.l.b16 %v3614
    %v4196 = vunpack.c.h.b16 %v3614
    %v4197 = vunpack.c.l.b16 %v3615
    %v4198 = vunpack.c.h.b16 %v3615
    %v4199 = vunpack.c.l.b16 %v3616
    %v4200 = vunpack.c.h.b16 %v3616
    %v4201 = vunpack.c.l.b16 %v3617
    %v4202 = vunpack.c.h.b16 %v3617
    %v4203 = vunpack.c.l.b16 %v3618
    %v4204 = vunpack.c.h.b16 %v3618
    %v4205 = vunpack.c.l.b16 %v3619
    %v4206 = vunpack.c.h.b16 %v3619
    %v4207 = vunpack.c.l.b16 %v3620
    %v4208 = vunpack.c.h.b16 %v3620
    %v4209 = vunpack.c.l.b16 %v3621
    %v4210 = vunpack.c.h.b16 %v3621
    %v4211 = vunpack.c.l.b16 %v3622
    %v4212 = vunpack.c.h.b16 %v3622
    %v4213 = vunpack.c.l.b16 %v3623
    %v4214 = vunpack.c.h.b16 %v3623
    %v4215 = vunpack.c.l.b16 %v3624
    %v4216 = vunpack.c.h.b16 %v3624
    %v4217 = vunpack.c.l.b16 %v3625
    %v4218 = vunpack.c.h.b16 %v3625
    %v4219 = vunpack.c.l.b16 %v3626
    %v4220 = vunpack.c.h.b16 %v3626
    %v4221 = vunpack.c.l.b16 %v3627
    %v4222 = vunpack.c.h.b16 %v3627
    %v4223 = vunpack.c.l.b16 %v3628
    %v4224 = vunpack.c.h.b16 %v3628
    %v4225 = vunpack.c.l.b16 %v3629
    %v4226 = vunpack.c.h.b16 %v3629
    %v4227 = vunpack.c.l.b16 %v3630
    %v4228 = vunpack.c.h.b16 %v3630
    %v4229 = vunpack.c.l.b16 %v3631
    %v4230 = vunpack.c.h.b16 %v3631
    %v4231 = vunpack.c.l.b16 %v3632
    %v4232 = vunpack.c.h.b16 %v3632
    %v4233 = vunpack.c.l.b16 %v3633
    %v4234 = vunpack.c.h.b16 %v3633
    %v4235 = vunpack.c.l.b16 %v3634
    %v4236 = vunpack.c.h.b16 %v3634
    %v4237 = vunpack.c.l.b16 %v3635
    %v4238 = vunpack.c.h.b16 %v3635
    %v4239 = vunpack.c.l.b16 %v3636
    %v4240 = vunpack.c.h.b16 %v3636
    %v4241 = vunpack.c.l.b16 %v3637
    %v4242 = vunpack.c.h.b16 %v3637
    %v4243 = vunpack.c.l.b16 %v3638
    %v4244 = vunpack.c.h.b16 %v3638
    %v4245 = vunpack.c.l.b16 %v3639
    %v4246 = vunpack.c.h.b16 %v3639
    %v4247 = vunpack.c.l.b16 %v3640
    %v4248 = vunpack.c.h.b16 %v3640
    %v4249 = vunpack.c.l.b16 %v3641
    %v4250 = vunpack.c.h.b16 %v3641
    %v4251 = vunpack.c.l.b16 %v3642
    %v4252 = vunpack.c.h.b16 %v3642
    %v4253 = vunpack.c.l.b16 %v3643
    %v4254 = vunpack.c.h.b16 %v3643
    %v4255 = vunpack.c.l.b16 %v3644
    %v4256 = vunpack.c.h.b16 %v3644
    %v4257 = vunpack.c.l.b16 %v3645
    %v4258 = vunpack.c.h.b16 %v3645
    %v4259 = vunpack.c.l.b16 %v3646
    %v4260 = vunpack.c.h.b16 %v3646
    %v4261 = vunpack.c.l.b16 %v3647
    %v4262 = vunpack.c.h.b16 %v3647
    %v4263 = vunpack.c.l.b16 %v3648
    %v4264 = vunpack.c.h.b16 %v3648
    %v4265 = vunpack.c.l.b16 %v3649
    %v4266 = vunpack.c.h.b16 %v3649
    %v4267 = vunpack.c.l.b16 %v3650
    %v4268 = vunpack.c.h.b16 %v3650
    %v4269 = vunpack.c.l.b16 %v3651
    %v4270 = vunpack.c.h.b16 %v3651
    %v4271 = vunpack.c.l.b16 %v3652
    %v4272 = vunpack.c.h.b16 %v3652
    %v4273 = vunpack.c.l.b16 %v3653
    %v4274 = vunpack.c.h.b16 %v3653
    %v4275 = vunpack.c.l.b16 %v3654
    %v4276 = vunpack.c.h.b16 %v3654
    %v4277 = vunpack.c.l.b16 %v3655
    %v4278 = vunpack.c.h.b16 %v3655
    %v4279 = vunpack.c.l.b16 %v3656
    %v4280 = vunpack.c.h.b16 %v3656
    %v4281 = vunpack.c.l.b16 %v3657
    %v4282 = vunpack.c.h.b16 %v3657
    %v4283 = vunpack.c.l.b16 %v3658
    %v4284 = vunpack.c.h.b16 %v3658
    %v4285 = vunpack.c.l.b16 %v3659
    %v4286 = vunpack.c.h.b16 %v3659
    %v4287 = vunpack.c.l.b16 %v3660
    %v4288 = vunpack.c.h.b16 %v3660
    %v4289 = vunpack.c.l.b16 %v3661
    %v4290 = vunpack.c.h.b16 %v3661
    %v4291 = vunpack.c.l.b16 %v3662
    %v4292 = vunpack.c.h.b16 %v3662
    %v4293 = vunpack.c.l.b16 %v3663
    %v4294 = vunpack.c.h.b16 %v3663
    %v4295 = vunpack.c.l.b16 %v3664
    %v4296 = vunpack.c.h.b16 %v3664
    %v4297 = vunpack.c.l.b16 %v3665
    %v4298 = vunpack.c.h.b16 %v3665
    %v4299 = vunpack.c.l.b16 %v3666
    %v4300 = vunpack.c.h.b16 %v3666
    %v4301 = vunpack.c.l.b16 %v3667
    %v4302 = vunpack.c.h.b16 %v3667
    %v4303 = vunpack.c.l.b16 %v3668
    %v4304 = vunpack.c.h.b16 %v3668
    %v4305 = vunpack.c.l.b16 %v3669
    %v4306 = vunpack.c.h.b16 %v3669
    %v4307 = vunpack.c.l.b16 %v3670
    %v4308 = vunpack.c.h.b16 %v3670
    %v4309 = vunpack.c.l.b16 %v3671
    %v4310 = vunpack.c.h.b16 %v3671
    %v4311 = vunpack.c.l.b16 %v3672
    %v4312 = vunpack.c.h.b16 %v3672
    %v4313 = vunpack.c.l.b16 %v3673
    %v4314 = vunpack.c.h.b16 %v3673
    %v4315 = vunpack.c.l.b16 %v3674
    %v4316 = vunpack.c.h.b16 %v3674
    %v4317 = vunpack.c.l.b16 %v3675
    %v4318 = vunpack.c.h.b16 %v3675
    %v4319 = vunpack.c.l.b16 %v3676
    %v4320 = vunpack.c.h.b16 %v3676
    %v4321 = vunpack.c.l.b16 %v3677
    %v4322 = vunpack.c.h.b16 %v3677
    %v4323 = vunpack.c.l.b16 %v3678
    %v4324 = vunpack.c.h.b16 %v3678
    %v4325 = vunpack.c.l.b16 %v3679
    %v4326 = vunpack.c.h.b16 %v3679
    %v4327 = vunpack.c.l.b16 %v3680
    %v4328 = vunpack.c.h.b16 %v3680
    %v4329 = vunpack.c.l.b16 %v3681
    %v4330 = vunpack.c.h.b16 %v3681
    %v4331 = vunpack.c.l.b16 %v3682
    %v4332 = vunpack.c.h.b16 %v3682
    %v4333 = vunpack.c.l.b16 %v3683
    %v4334 = vunpack.c.h.b16 %v3683
    %v4335 = vunpack.c.l.b16 %v3684
    %v4336 = vunpack.c.h.b16 %v3684
    %v4337 = vunpack.c.l.b16 %v3685
    %v4338 = vunpack.c.h.b16 %v3685
    %v4339 = vunpack.c.l.b16 %v3686
    %v4340 = vunpack.c.h.b16 %v3686
    %v4341 = vunpack.c.l.b16 %v3687
    %v4342 = vunpack.c.h.b16 %v3687
    %v4343 = vunpack.c.l.b16 %v3688
    %v4344 = vunpack.c.h.b16 %v3688
    %v4345 = vunpack.c.l.b16 %v3689
    %v4346 = vunpack.c.h.b16 %v3689
    %v4347 = vunpack.c.l.b16 %v3690
    %v4348 = vunpack.c.h.b16 %v3690
    %v4349 = vunpack.c.l.b16 %v3691
    %v4350 = vunpack.c.h.b16 %v3691
    %v4351 = vunpack.c.l.b16 %v3692
    %v4352 = vunpack.c.h.b16 %v3692
    %v4353 = vunpack.c.l.b16 %v3693
    %v4354 = vunpack.c.h.b16 %v3693
    %v4355 = vunpack.c.l.b16 %v3694
    %v4356 = vunpack.c.h.b16 %v3694
    %v4357 = vunpack.c.l.b16 %v3695
    %v4358 = vunpack.c.h.b16 %v3695
    %v4359 = vunpack.c.l.b16 %v3696
    %v4360 = vunpack.c.h.b16 %v3696
    %v4361 = vunpack.c.l.b16 %v3697
    %v4362 = vunpack.c.h.b16 %v3697
    %v4363 = vunpack.c.l.b16 %v3698
    %v4364 = vunpack.c.h.b16 %v3698
    %v4365 = vunpack.c.l.b16 %v3699
    %v4366 = vunpack.c.h.b16 %v3699
    %v4367 = vunpack.c.l.b16 %v3700
    %v4368 = vunpack.c.h.b16 %v3700
    %v4369 = vunpack.c.l.b16 %v3701
    %v4370 = vunpack.c.h.b16 %v3701
    %v4371 = vunpack.c.l.b16 %v3702
    %v4372 = vunpack.c.h.b16 %v3702
    %v4373 = vunpack.c.l.b16 %v3703
    %v4374 = vunpack.c.h.b16 %v3703
    %v4375 = vunpack.c.l.b16 %v3704
    %v4376 = vunpack.c.h.b16 %v3704
    %v4377 = vunpack.c.l.b16 %v3705
    %v4378 = vunpack.c.h.b16 %v3705
    %v4379 = vunpack.c.l.b16 %v3706
    %v4380 = vunpack.c.h.b16 %v3706
    %v4381 = vunpack.c.l.b16 %v3707
    %v4382 = vunpack.c.h.b16 %v3707
    %v4383 = vunpack.c.l.b16 %v3708
    %v4384 = vunpack.c.h.b16 %v3708
    %v4385 = vunpack.c.l.b16 %v3709
    %v4386 = vunpack.c.h.b16 %v3709
    %v4387 = vunpack.c.l.b16 %v3710
    %v4388 = vunpack.c.h.b16 %v3710
    %v4389 = vunpack.c.l.b16 %v3711
    %v4390 = vunpack.c.h.b16 %v3711
    %v4391 = vunpack.c.l.b16 %v3712
    %v4392 = vunpack.c.h.b16 %v3712
    %v4393 = vunpack.c.l.b16 %v3713
    %v4394 = vunpack.c.h.b16 %v3713
    %v4395 = vunpack.c.l.b16 %v3714
    %v4396 = vunpack.c.h.b16 %v3714
    %v4397 = vunpack.c.l.b16 %v3715
    %v4398 = vunpack.c.h.b16 %v3715
    %v4399 = vunpack.c.l.b16 %v3716
    %v4400 = vunpack.c.h.b16 %v3716
    %v4401 = vunpack.c.l.b16 %v3717
    %v4402 = vunpack.c.h.b16 %v3717
    %v4403 = vunpack.c.l.b16 %v3718
    %v4404 = vunpack.c.h.b16 %v3718
    %v4405 = vunpack.c.l.b16 %v3719
    %v4406 = vunpack.c.h.b16 %v3719
    %v4407 = vunpack.c.l.b16 %v3720
    %v4408 = vunpack.c.h.b16 %v3720
    %v4409 = vunpack.c.l.b16 %v3721
    %v4410 = vunpack.c.h.b16 %v3721
    %v4411 = vunpack.c.l.b16 %v3722
    %v4412 = vunpack.c.h.b16 %v3722
    %v4413 = vunpack.c.l.b16 %v3723
    %v4414 = vunpack.c.h.b16 %v3723
    %v4415 = vunpack.c.l.b16 %v3724
    %v4416 = vunpack.c.h.b16 %v3724
    %v4417 = vunpack.c.l.b16 %v3725
    %v4418 = vunpack.c.h.b16 %v3725
    %v4419 = vunpack.c.l.b16 %v3726
    %v4420 = vunpack.c.h.b16 %v3726
    %v4421 = vunpack.c.l.b16 %v3727
    %v4422 = vunpack.c.h.b16 %v3727
    %v4423 = vunpack.c.l.b16 %v3728
    %v4424 = vunpack.c.h.b16 %v3728
    %v4425 = vunpack.c.l.b16 %v3729
    %v4426 = vunpack.c.h.b16 %v3729
    %v4427 = vunpack.c.l.b16 %v3730
    %v4428 = vunpack.c.h.b16 %v3730
    %v4429 = vunpack.c.l.b16 %v3731
    %v4430 = vunpack.c.h.b16 %v3731
    %v4431 = vunpack.c.l.b16 %v3732
    %v4432 = vunpack.c.h.b16 %v3732
    %v4433 = vunpack.c.l.b16 %v3733
    %v4434 = vunpack.c.h.b16 %v3733
    %v4435 = vunpack.c.l.b16 %v3734
    %v4436 = vunpack.c.h.b16 %v3734
    %v4437 = vunpack.c.l.b16 %v3735
    %v4438 = vunpack.c.h.b16 %v3735
    %v4439 = vunpack.c.l.b16 %v3736
    %v4440 = vunpack.c.h.b16 %v3736
    %v4441 = vunpack.c.l.b16 %v3737
    %v4442 = vunpack.c.h.b16 %v3737
    %v4443 = vunpack.c.l.b16 %v3738
    %v4444 = vunpack.c.h.b16 %v3738
    %v4445 = vunpack.c.l.b16 %v3739
    %v4446 = vunpack.c.h.b16 %v3739
    %v4447 = vunpack.c.l.b16 %v3740
    %v4448 = vunpack.c.h.b16 %v3740
    %v4449 = vunpack.c.l.b16 %v3741
    %v4450 = vunpack.c.h.b16 %v3741
    %v4451 = vunpack.c.l.b16 %v3742
    %v4452 = vunpack.c.h.b16 %v3742
    %v4453 = vunpack.c.l.b16 %v3743
    %v4454 = vunpack.c.h.b16 %v3743
    %v4455 = vunpack.c.l.b16 %v3744
    %v4456 = vunpack.c.h.b16 %v3744
    %v4457 = vunpack.c.l.b16 %v3745
    %v4458 = vunpack.c.h.b16 %v3745
    %v4459 = vunpack.c.l.b16 %v3746
    %v4460 = vunpack.c.h.b16 %v3746
    %v4461 = vunpack.c.l.b16 %v3747
    %v4462 = vunpack.c.h.b16 %v3747
    %v4463 = vunpack.c.l.b16 %v3748
    %v4464 = vunpack.c.h.b16 %v3748
    %v4465 = vunpack.c.l.b16 %v3749
    %v4466 = vunpack.c.h.b16 %v3749
    %v4467 = vunpack.c.l.b16 %v3750
    %v4468 = vunpack.c.h.b16 %v3750
    %v4469 = vunpack.c.l.b16 %v3751
    %v4470 = vunpack.c.h.b16 %v3751
    %v4471 = vunpack.c.l.b16 %v3752
    %v4472 = vunpack.c.h.b16 %v3752
    %v4473 = vunpack.c.l.b16 %v3753
    %v4474 = vunpack.c.h.b16 %v3753
    %v4475 = vunpack.c.l.b16 %v3754
    %v4476 = vunpack.c.h.b16 %v3754
    %v4477 = vunpack.c.l.b16 %v3755
    %v4478 = vunpack.c.h.b16 %v3755
    %v4479 = vunpack.c.l.b16 %v3756
    %v4480 = vunpack.c.h.b16 %v3756
    %v4481 = vunpack.c.l.b16 %v3757
    %v4482 = vunpack.c.h.b16 %v3757
    %v4483 = vunpack.c.l.b16 %v3758
    %v4484 = vunpack.c.h.b16 %v3758
    %v4485 = vunpack.c.l.b16 %v3759
    %v4486 = vunpack.c.h.b16 %v3759
    %v4487 = vunpack.c.l.b16 %v3760
    %v4488 = vunpack.c.h.b16 %v3760
    %v4489 = vunpack.c.l.b16 %v3761
    %v4490 = vunpack.c.h.b16 %v3761
    %v4491 = vunpack.c.l.b16 %v3762
    %v4492 = vunpack.c.h.b16 %v3762
    %v4493 = vunpack.c.l.b16 %v3763
    %v4494 = vunpack.c.h.b16 %v3763
    %v4495 = vunpack.c.l.b16 %v3764
    %v4496 = vunpack.c.h.b16 %v3764
    %v4497 = vunpack.c.l.b16 %v3765
    %v4498 = vunpack.c.h.b16 %v3765
    %v4499 = vunpack.c.l.b16 %v3766
    %v4500 = vunpack.c.h.b16 %v3766
    %v4501 = vunpack.c.l.b16 %v3767
    %v4502 = vunpack.c.h.b16 %v3767
    %v4503 = vunpack.c.l.b16 %v3768
    %v4504 = vunpack.c.h.b16 %v3768
    %v4505 = vunpack.c.l.b16 %v3769
    %v4506 = vunpack.c.h.b16 %v3769
    %v4507 = vunpack.c.l.b16 %v3770
    %v4508 = vunpack.c.h.b16 %v3770
    %v4509 = vunpack.c.l.b16 %v3771
    %v4510 = vunpack.c.h.b16 %v3771
    %v4511 = vunpack.c.l.b16 %v3772
    %v4512 = vunpack.c.h.b16 %v3772
    %v4513 = vunpack.c.l.b16 %v3773
    %v4514 = vunpack.c.h.b16 %v3773
    %v4515 = vunpack.c.l.b16 %v3774
    %v4516 = vunpack.c.h.b16 %v3774
    %v4517 = vunpack.c.l.b16 %v3775
    %v4518 = vunpack.c.h.b16 %v3775
    %v4519 = vunpack.c.l.b16 %v3776
    %v4520 = vunpack.c.h.b16 %v3776
    %v4521 = vunpack.c.l.b16 %v3777
    %v4522 = vunpack.c.h.b16 %v3777
    %v4523 = vunpack.c.l.b16 %v3778
    %v4524 = vunpack.c.h.b16 %v3778
    %v4525 = vunpack.c.l.b16 %v3779
    %v4526 = vunpack.c.h.b16 %v3779
    %v4527 = vunpack.c.l.b16 %v3780
    %v4528 = vunpack.c.h.b16 %v3780
    %v4529 = vunpack.c.l.b16 %v3781
    %v4530 = vunpack.c.h.b16 %v3781
    %v4531 = vunpack.c.l.b16 %v3782
    %v4532 = vunpack.c.h.b16 %v3782
    %v4533 = vunpack.c.l.b16 %v3783
    %v4534 = vunpack.c.h.b16 %v3783
    %v4535 = vunpack.c.l.b16 %v3784
    %v4536 = vunpack.c.h.b16 %v3784
    %v4537 = vunpack.c.l.b16 %v3785
    %v4538 = vunpack.c.h.b16 %v3785
    %v4539 = vunpack.c.l.b16 %v3786
    %v4540 = vunpack.c.h.b16 %v3786
    %v4541 = vunpack.c.l.b16 %v3787
    %v4542 = vunpack.c.h.b16 %v3787
    %v4543 = vunpack.c.l.b16 %v3788
    %v4544 = vunpack.c.h.b16 %v3788
    %v4545 = vunpack.c.l.b16 %v3789
    %v4546 = vunpack.c.h.b16 %v3789
    %v4547 = vunpack.c.l.b16 %v3790
    %v4548 = vunpack.c.h.b16 %v3790
    %v4549 = vunpack.c.l.b16 %v3791
    %v4550 = vunpack.c.h.b16 %v3791
    %v4551 = vunpack.c.l.b16 %v3792
    %v4552 = vunpack.c.h.b16 %v3792
    %v4553 = vunpack.c.l.b16 %v3793
    %v4554 = vunpack.c.h.b16 %v3793
    %v4555 = vunpack.c.l.b16 %v3794
    %v4556 = vunpack.c.h.b16 %v3794
    %v4557 = vunpack.c.l.b16 %v3795
    %v4558 = vunpack.c.h.b16 %v3795
    %v4559 = vunpack.c.l.b16 %v3796
    %v4560 = vunpack.c.h.b16 %v3796
    %v4561 = vunpack.c.l.b16 %v3797
    %v4562 = vunpack.c.h.b16 %v3797
    %v4563 = vunpack.c.l.b16 %v3798
    %v4564 = vunpack.c.h.b16 %v3798
    %v4565 = vunpack.c.l.b16 %v3799
    %v4566 = vunpack.c.h.b16 %v3799
    %v4567 = vunpack.c.l.b16 %v3800
    %v4568 = vunpack.c.h.b16 %v3800
    %v4569 = vunpack.c.l.b16 %v3801
    %v4570 = vunpack.c.h.b16 %v3801
    %v4571 = vunpack.c.l.b16 %v3802
    %v4572 = vunpack.c.h.b16 %v3802
    %v4573 = vunpack.c.l.b16 %v3803
    %v4574 = vunpack.c.h.b16 %v3803
    %v4575 = vunpack.c.l.b16 %v3804
    %v4576 = vunpack.c.h.b16 %v3804
    %v4577 = vunpack.c.l.b16 %v3805
    %v4578 = vunpack.c.h.b16 %v3805
    %v4579 = vunpack.c.l.b16 %v3806
    %v4580 = vunpack.c.h.b16 %v3806
    %v4581 = vunpack.c.l.b16 %v3807
    %v4582 = vunpack.c.h.b16 %v3807
    %v4583 = vunpack.c.l.b16 %v3808
    %v4584 = vunpack.c.h.b16 %v3808
    %v4585 = vunpack.c.l.b16 %v3809
    %v4586 = vunpack.c.h.b16 %v3809
    %v4587 = vunpack.c.l.b16 %v3810
    %v4588 = vunpack.c.h.b16 %v3810
    %v4589 = vunpack.c.l.b16 %v3811
    %v4590 = vunpack.c.h.b16 %v3811
    %v4591 = vunpack.c.l.b16 %v3812
    %v4592 = vunpack.c.h.b16 %v3812
    %v4593 = vunpack.c.l.b16 %v3813
    %v4594 = vunpack.c.h.b16 %v3813
    %v4595 = vunpack.c.l.b16 %v3814
    %v4596 = vunpack.c.h.b16 %v3814
    %v4597 = vunpack.c.l.b16 %v3815
    %v4598 = vunpack.c.h.b16 %v3815
    %v4599 = vunpack.c.l.b16 %v3816
    %v4600 = vunpack.c.h.b16 %v3816
    %v4601 = vunpack.c.l.b16 %v3817
    %v4602 = vunpack.c.h.b16 %v3817
    %v4603 = vunpack.c.l.b16 %v3818
    %v4604 = vunpack.c.h.b16 %v3818
    %v4605 = vunpack.c.l.b16 %v3819
    %v4606 = vunpack.c.h.b16 %v3819
    %v4607 = vunpack.c.l.b16 %v3820
    %v4608 = vunpack.c.h.b16 %v3820
    %v4609 = vunpack.c.l.b16 %v3821
    %v4610 = vunpack.c.h.b16 %v3821
    %v4611 = vunpack.c.l.b16 %v3822
    %v4612 = vunpack.c.h.b16 %v3822
    %v4613 = vunpack.c.l.b16 %v3823
    %v4614 = vunpack.c.h.b16 %v3823
    %v4615 = vunpack.c.l.b16 %v3824
    %v4616 = vunpack.c.h.b16 %v3824
    %v4617 = vunpack.c.l.b16 %v3825
    %v4618 = vunpack.c.h.b16 %v3825
    %v4619 = vunpack.c.l.b16 %v3826
    %v4620 = vunpack.c.h.b16 %v3826
    %v4621 = vunpack.c.l.b16 %v3827
    %v4622 = vunpack.c.h.b16 %v3827
    %v4623 = vunpack.c.l.b16 %v3828
    %v4624 = vunpack.c.h.b16 %v3828
    %v4625 = vunpack.c.l.b16 %v3829
    %v4626 = vunpack.c.h.b16 %v3829
    %v4627 = vunpack.c.l.b16 %v3830
    %v4628 = vunpack.c.h.b16 %v3830
    %v4629 = vunpack.c.l.b16 %v3831
    %v4630 = vunpack.c.h.b16 %v3831
    %v4631 = vunpack.c.l.b16 %v3832
    %v4632 = vunpack.c.h.b16 %v3832
    %v4633 = vunpack.c.l.b16 %v3833
    %v4634 = vunpack.c.h.b16 %v3833
    %v4635 = vunpack.c.l.b16 %v3834
    %v4636 = vunpack.c.h.b16 %v3834
    %v4637 = vunpack.c.l.b16 %v3835
    %v4638 = vunpack.c.h.b16 %v3835
    %v4639 = vunpack.c.l.b16 %v3836
    %v4640 = vunpack.c.h.b16 %v3836
    %v4641 = vunpack.c.l.b16 %v3837
    %v4642 = vunpack.c.h.b16 %v3837
    %v4643 = vunpack.c.l.b16 %v3838
    %v4644 = vunpack.c.h.b16 %v3838
    %v4645 = vunpack.c.l.b16 %v3839
    %v4646 = vunpack.c.h.b16 %v3839
    %v4647 = vunpack.c.l.b16 %v3840
    %v4648 = vunpack.c.h.b16 %v3840
    %v4649 = vunpack.c.l.b16 %v3841
    %v4650 = vunpack.c.h.b16 %v3841
    %v4651 = vunpack.c.l.b16 %v3842
    %v4652 = vunpack.c.h.b16 %v3842
    %v4653 = vunpack.c.l.b16 %v3843
    %v4654 = vunpack.c.h.b16 %v3843
    %v4655 = vunpack.c.l.b16 %v3844
    %v4656 = vunpack.c.h.b16 %v3844
    %v4657 = vunpack.c.l.b16 %v3845
    %v4658 = vunpack.c.h.b16 %v3845
    %v4659 = vunpack.c.l.b16 %v3846
    %v4660 = vunpack.c.h.b16 %v3846
    %v4661 = vunpack.c.l.b16 %v3847
    %v4662 = vunpack.c.h.b16 %v3847
    %v4663 = vunpack.c.l.b16 %v3848
    %v4664 = vunpack.c.h.b16 %v3848
    %v4665 = vunpack.c.l.b16 %v3849
    %v4666 = vunpack.c.h.b16 %v3849
    %v4667 = vunpack.c.l.b16 %v3850
    %v4668 = vunpack.c.h.b16 %v3850
    %v4669 = vunpack.c.l.b16 %v3851
    %v4670 = vunpack.c.h.b16 %v3851
    %v4671 = vunpack.c.l.b16 %v3852
    %v4672 = vunpack.c.h.b16 %v3852
    %v4673 = vunpack.c.l.b16 %v3853
    %v4674 = vunpack.c.h.b16 %v3853
    %v4675 = vunpack.c.l.b16 %v3854
    %v4676 = vunpack.c.h.b16 %v3854
    %v4677 = vunpack.c.l.b16 %v3855
    %v4678 = vunpack.c.h.b16 %v3855
    %v4679 = vunpack.c.l.b16 %v3856
    %v4680 = vunpack.c.h.b16 %v3856
    %v4681 = vunpack.c.l.b16 %v3857
    %v4682 = vunpack.c.h.b16 %v3857
    %v4683 = vunpack.c.l.b16 %v3858
    %v4684 = vunpack.c.h.b16 %v3858
    %v4685 = vunpack.c.l.b16 %v3859
    %v4686 = vunpack.c.h.b16 %v3859
    %v4687 = vunpack.c.l.b16 %v3860
    %v4688 = vunpack.c.h.b16 %v3860
    %v4689 = vunpack.c.l.b16 %v3861
    %v4690 = vunpack.c.h.b16 %v3861
    %v4691 = vunpack.c.l.b16 %v3862
    %v4692 = vunpack.c.h.b16 %v3862
    %v4693 = vunpack.c.l.b16 %v3863
    %v4694 = vunpack.c.h.b16 %v3863
    %v4695 = vunpack.c.l.b16 %v3864
    %v4696 = vunpack.c.h.b16 %v3864
    %v4697 = vunpack.c.l.b16 %v3865
    %v4698 = vunpack.c.h.b16 %v3865
    %v4699 = vunpack.c.l.b16 %v3866
    %v4700 = vunpack.c.h.b16 %v3866
    %v4701 = vunpack.c.l.b16 %v3867
    %v4702 = vunpack.c.h.b16 %v3867
    %v4703 = vunpack.c.l.b16 %v3868
    %v4704 = vunpack.c.h.b16 %v3868
    %v4705 = vunpack.c.l.b16 %v3869
    %v4706 = vunpack.c.h.b16 %v3869
    %v4707 = vunpack.c.l.b16 %v3870
    %v4708 = vunpack.c.h.b16 %v3870
    %v4709 = vunpack.c.l.b16 %v3871
    %v4710 = vunpack.c.h.b16 %v3871
    %v4711 = vunpack.c.l.b16 %v3872
    %v4712 = vunpack.c.h.b16 %v3872
    %v4713 = vunpack.c.l.b16 %v3873
    %v4714 = vunpack.c.h.b16 %v3873
    %v4715 = vunpack.c.l.b16 %v3874
    %v4716 = vunpack.c.h.b16 %v3874
    %v4717 = vunpack.c.l.b16 %v3875
    %v4718 = vunpack.c.h.b16 %v3875
    %v4719 = vunpack.c.l.b16 %v3876
    %v4720 = vunpack.c.h.b16 %v3876
    %v4721 = vunpack.c.l.b16 %v3877
    %v4722 = vunpack.c.h.b16 %v3877
    %v4723 = vunpack.c.l.b16 %v3878
    %v4724 = vunpack.c.h.b16 %v3878
    %v4725 = vunpack.c.l.b16 %v3879
    %v4726 = vunpack.c.h.b16 %v3879
    %v4727 = vunpack.c.l.b16 %v3880
    %v4728 = vunpack.c.h.b16 %v3880
    %v4729 = vunpack.c.l.b16 %v3881
    %v4730 = vunpack.c.h.b16 %v3881
    %v4731 = vunpack.c.l.b16 %v3882
    %v4732 = vunpack.c.h.b16 %v3882
    %v4733 = vunpack.c.l.b16 %v3883
    %v4734 = vunpack.c.h.b16 %v3883
    %v4735 = vunpack.c.l.b16 %v3884
    %v4736 = vunpack.c.h.b16 %v3884
    %v4737 = vunpack.c.l.b16 %v3885
    %v4738 = vunpack.c.h.b16 %v3885
    %v4739 = vunpack.c.l.b16 %v3886
    %v4740 = vunpack.c.h.b16 %v3886
    %v4741 = vunpack.c.l.b16 %v3887
    %v4742 = vunpack.c.h.b16 %v3887
    %v4743 = vunpack.c.l.b16 %v3888
    %v4744 = vunpack.c.h.b16 %v3888
    %v4745 = vunpack.c.l.b16 %v3889
    %v4746 = vunpack.c.h.b16 %v3889
    %v4747 = vunpack.c.l.b16 %v3890
    %v4748 = vunpack.c.h.b16 %v3890
    %v4749 = vunpack.c.l.b16 %v3891
    %v4750 = vunpack.c.h.b16 %v3891
    %v4751 = vunpack.c.l.b16 %v3892
    %v4752 = vunpack.c.h.b16 %v3892
    %v4753 = vunpack.c.l.b16 %v3893
    %v4754 = vunpack.c.h.b16 %v3893
    %v4755 = vunpack.c.l.b16 %v3894
    %v4756 = vunpack.c.h.b16 %v3894
    %v4757 = vunpack.c.l.b16 %v3895
    %v4758 = vunpack.c.h.b16 %v3895
    %v4759 = vunpack.c.l.b16 %v3896
    %v4760 = vunpack.c.h.b16 %v3896
    %v4761 = vpack.c.b16 %v4191, %v4185
    %v4762 = vpack.c.b16 %v4192, %v4186
    %v4763 = vpack.c.b16 %v4193, %v4187
    %v4764 = vpack.c.b16 %v4194, %v4188
    %v4765 = vpack.c.b16 %v4195, %v4189
    %v4766 = vpack.c.b16 %v4196, %v4190
    %v4767 = vpack.c.b16 %v4203, %v4197
    %v4768 = vpack.c.b16 %v4204, %v4198
    %v4769 = vpack.c.b16 %v4205, %v4199
    %v4770 = vpack.c.b16 %v4206, %v4200
    %v4771 = vpack.c.b16 %v4207, %v4201
    %v4772 = vpack.c.b16 %v4208, %v4202
    %v4773 = vpack.c.b16 %v4215, %v4209
    %v4774 = vpack.c.b16 %v4216, %v4210
    %v4775 = vpack.c.b16 %v4217, %v4211
    %v4776 = vpack.c.b16 %v4218, %v4212
    %v4777 = vpack.c.b16 %v4219, %v4213
    %v4778 = vpack.c.b16 %v4220, %v4214
    %v4779 = vpack.c.b16 %v4227, %v4221
    %v4780 = vpack.c.b16 %v4228, %v4222
    %v4781 = vpack.c.b16 %v4229, %v4223
    %v4782 = vpack.c.b16 %v4230, %v4224
    %v4783 = vpack.c.b16 %v4231, %v4225
    %v4784 = vpack.c.b16 %v4232, %v4226
    %v4785 = vpack.c.b16 %v4239, %v4233
    %v4786 = vpack.c.b16 %v4240, %v4234
    %v4787 = vpack.c.b16 %v4241, %v4235
    %v4788 = vpack.c.b16 %v4242, %v4236
    %v4789 = vpack.c.b16 %v4243, %v4237
    %v4790 = vpack.c.b16 %v4244, %v4238
    %v4791 = vpack.c.b16 %v4251, %v4245
    %v4792 = vpack.c.b16 %v4252, %v4246
    %v4793 = vpack.c.b16 %v4253, %v4247
    %v4794 = vpack.c.b16 %v4254, %v4248
    %v4795 = vpack.c.b16 %v4255, %v4249
    %v4796 = vpack.c.b16 %v4256, %v4250
    %v4797 = vpack.c.b16 %v4263, %v4257
    %v4798 = vpack.c.b16 %v4264, %v4258
    %v4799 = vpack.c.b16 %v4265, %v4259
    %v4800 = vpack.c.b16 %v4266, %v4260
    %v4801 = vpack.c.b16 %v4267, %v4261
    %v4802 = vpack.c.b16 %v4268, %v4262
    %v4803 = vpack.c.b16 %v4275, %v4269
    %v4804 = vpack.c.b16 %v4276, %v4270
    %v4805 = vpack.c.b16 %v4277, %v4271
    %v4806 = vpack.c.b16 %v4278, %v4272
    %v4807 = vpack.c.b16 %v4279, %v4273
    %v4808 = vpack.c.b16 %v4280, %v4274
    %v4809 = vpack.c.b16 %v4287, %v4281
    %v4810 = vpack.c.b16 %v4288, %v4282
    %v4811 = vpack.c.b16 %v4289, %v4283
    %v4812 = vpack.c.b16 %v4290, %v4284
    %v4813 = vpack.c.b16 %v4291, %v4285
    %v4814 = vpack.c.b16 %v4292, %v4286
    %v4815 = vpack.c.b16 %v4299, %v4293
    %v4816 = vpack.c.b16 %v4300, %v4294
    %v4817 = vpack.c.b16 %v4301, %v4295
    %v4818 = vpack.c.b16 %v4302, %v4296
    %v4819 = vpack.c.b16 %v4303, %v4297
    %v4820 = vpack.c.b16 %v4304, %v4298
    %v4821 = vpack.c.b16 %v4311, %v4305
    %v4822 = vpack.c.b16 %v4312, %v4306
    %v4823 = vpack.c.b16 %v4313, %v4307
    %v4824 = vpack.c.b16 %v4314, %v4308
    %v4825 = vpack.c.b16 %v4315, %v4309
    %v4826 = vpack.c.b16 %v4316, %v4310
    %v4827 = vpack.c.b16 %v4323, %v4317
    %v4828 = vpack.c.b16 %v4324, %v4318
    %v4829 = vpack.c.b16 %v4325, %v4319
    %v4830 = vpack.c.b16 %v4326, %v4320
    %v4831 = vpack.c.b16 %v4327, %v4321
    %v4832 = vpack.c.b16 %v4328, %v4322
    %v4833 = vpack.c.b16 %v4335, %v4329
    %v4834 = vpack.c.b16 %v4336, %v4330
    %v4835 = vpack.c.b16 %v4337, %v4331
    %v4836 = vpack.c.b16 %v4338, %v4332
    %v4837 = vpack.c.b16 %v4339, %v4333
    %v4838 = vpack.c.b16 %v4340, %v4334
    %v4839 = vpack.c.b16 %v4347, %v4341
    %v4840 = vpack.c.b16 %v4348, %v4342
    %v4841 = vpack.c.b16 %v4349, %v4343
    %v4842 = vpack.c.b16 %v4350, %v4344
    %v4843 = vpack.c.b16 %v4351, %v4345
    %v4844 = vpack.c.b16 %v4352, %v4346
    %v4845 = vpack.c.b16 %v4359, %v4353
    %v4846 = vpack.c.b16 %v4360, %v4354
    %v4847 = vpack.c.b16 %v4361, %v4355
    %v4848 = vpack.c.b16 %v4362, %v4356
    %v4849 = vpack.c.b16 %v4363, %v4357
    %v4850 = vpack.c.b16 %v4364, %v4358
    %v4851 = vpack.c.b16 %v4371, %v4365
    %v4852 = vpack.c.b16 %v4372, %v4366
    %v4853 = vpack.c.b16 %v4373, %v4367
    %v4854 = vpack.c.b16 %v4374, %v4368
    %v4855 = vpack.c.b16 %v4375, %v4369
    %v4856 = vpack.c.b16 %v4376, %v4370
    %v4857 = vpack.c.b16 %v4383, %v4377
    %v4858 = vpack.c.b16 %v4384, %v4378
    %v4859 = vpack.c.b16 %v4385, %v4379
    %v4860 = vpack.c.b16 %v4386, %v4380
    %v4861 = vpack.c.b16 %v4387, %v4381
    %v4862 = vpack.c.b16 %v4388, %v4382
    %v4863 = vpack.c.b16 %v4395, %v4389
    %v4864 = vpack.c.b16 %v4396, %v4390
    %v4865 = vpack.c.b16 %v4397, %v4391
    %v4866 = vpack.c.b16 %v4398, %v4392
    %v4867 = vpack.c.b16 %v4399, %v4393
    %v4868 = vpack.c.b16 %v4400, %v4394
    %v4869 = vpack.c.b16 %v4407, %v4401
    %v4870 = vpack.c.b16 %v4408, %v4402
    %v4871 = vpack.c.b16 %v4409, %v4403
    %v4872 = vpack.c.b16 %v4410, %v4404
    %v4873 = vpack.c.b16 %v4411, %v4405
    %v4874 = vpack.c.b16 %v4412, %v4406
    %v4875 = vpack.c.b16 %v4419, %v4413
    %v4876 = vpack.c.b16 %v4420, %v4414
    %v4877 = vpack.c.b16 %v4421, %v4415
    %v4878 = vpack.c.b16 %v4422, %v4416
    %v4879 = vpack.c.b16 %v4423, %v4417
    %v4880 = vpack.c.b16 %v4424, %v4418
    %v4881 = vpack.c.b16 %v4431, %v4425
    %v4882 = vpack.c.b16 %v4432, %v4426
    %v4883 = vpack.c.b16 %v4433, %v4427
    %v4884 = vpack.c.b16 %v4434, %v4428
    %v4885 = vpack.c.b16 %v4435, %v4429
    %v4886 = vpack.c.b16 %v4436, %v4430
    %v4887 = vpack.c.b16 %v4443, %v4437
    %v4888 = vpack.c.b16 %v4444, %v4438
    %v4889 = vpack.c.b16 %v4445, %v4439
    %v4890 = vpack.c.b16 %v4446, %v4440
    %v4891 = vpack.c.b16 %v4447, %v4441
    %v4892 = vpack.c.b16 %v4448, %v4442
    %v4893 = vpack.c.b16 %v4455, %v4449
    %v4894 = vpack.c.b16 %v4456, %v4450
    %v4895 = vpack.c.b16 %v4457, %v4451
    %v4896 = vpack.c.b16 %v4458, %v4452
    %v4897 = vpack.c.b16 %v4459, %v4453
    %v4898 = vpack.c.b16 %v4460, %v4454
    %v4899 = vpack.c.b16 %v4467, %v4461
    %v4900 = vpack.c.b16 %v4468, %v4462
    %v4901 = vpack.c.b16 %v4469, %v4463
    %v4902 = vpack.c.b16 %v4470, %v4464
    %v4903 = vpack.c.b16 %v4471, %v4465
    %v4904 = vpack.c.b16 %v4472, %v4466
    %v4905 = vpack.c.b16 %v4479, %v4473
    %v4906 = vpack.c.b16 %v4480, %v4474
    %v4907 = vpack.c.b16 %v4481, %v4475
    %v4908 = vpack.c.b16 %v4482, %v4476
    %v4909 = vpack.c.b16 %v4483, %v4477
    %v4910 = vpack.c.b16 %v4484, %v4478
    %v4911 = vpack.c.b16 %v4491, %v4485
    %v4912 = vpack.c.b16 %v4492, %v4486
    %v4913 = vpack.c.b16 %v4493, %v4487
    %v4914 = vpack.c.b16 %v4494, %v4488
    %v4915 = vpack.c.b16 %v4495, %v4489
    %v4916 = vpack.c.b16 %v4496, %v4490
    %v4917 = vpack.c.b16 %v4503, %v4497
    %v4918 = vpack.c.b16 %v4504, %v4498
    %v4919 = vpack.c.b16 %v4505, %v4499
    %v4920 = vpack.c.b16 %v4506, %v4500
    %v4921 = vpack.c.b16 %v4507, %v4501
    %v4922 = vpack.c.b16 %v4508, %v4502
    %v4923 = vpack.c.b16 %v4515, %v4509
    %v4924 = vpack.c.b16 %v4516, %v4510
    %v4925 = vpack.c.b16 %v4517, %v4511
    %v4926 = vpack.c.b16 %v4518, %v4512
    %v4927 = vpack.c.b16 %v4519, %v4513
    %v4928 = vpack.c.b16 %v4520, %v4514
    %v4929 = vpack.c.b16 %v4527, %v4521
    %v4930 = vpack.c.b16 %v4528, %v4522
    %v4931 = vpack.c.b16 %v4529, %v4523
    %v4932 = vpack.c.b16 %v4530, %v4524
    %v4933 = vpack.c.b16 %v4531, %v4525
    %v4934 = vpack.c.b16 %v4532, %v4526
    %v4935 = vpack.c.b16 %v4539, %v4533
    %v4936 = vpack.c.b16 %v4540, %v4534
    %v4937 = vpack.c.b16 %v4541, %v4535
    %v4938 = vpack.c.b16 %v4542, %v4536
    %v4939 = vpack.c.b16 %v4543, %v4537
    %v4940 = vpack.c.b16 %v4544, %v4538
    %v4941 = vpack.c.b16 %v4551, %v4545
    %v4942 = vpack.c.b16 %v4552, %v4546
    %v4943 = vpack.c.b16 %v4553, %v4547
    %v4944 = vpack.c.b16 %v4554, %v4548
    %v4945 = vpack.c.b16 %v4555, %v4549
    %v4946 = vpack.c.b16 %v4556, %v4550
    %v4947 = vpack.c.b16 %v4563, %v4557
    %v4948 = vpack.c.b16 %v4564, %v4558
    %v4949 = vpack.c.b16 %v4565, %v4559
    %v4950 = vpack.c.b16 %v4566, %v4560
    %v4951 = vpack.c.b16 %v4567, %v4561
    %v4952 = vpack.c.b16 %v4568, %v4562
    %v4953 = vpack.c.b16 %v4575, %v4569
    %v4954 = vpack.c.b16 %v4576, %v4570
    %v4955 = vpack.c.b16 %v4577, %v4571
    %v4956 = vpack.c.b16 %v4578, %v4572
    %v4957 = vpack.c.b16 %v4579, %v4573
    %v4958 = vpack.c.b16 %v4580, %v4574
    %v4959 = vpack.c.b16 %v4587, %v4581
    %v4960 = vpack.c.b16 %v4588, %v4582
    %v4961 = vpack.c.b16 %v4589, %v4583
    %v4962 = vpack.c.b16 %v4590, %v4584
    %v4963 = vpack.c.b16 %v4591, %v4585
    %v4964 = vpack.c.b16 %v4592, %v4586
    %v4965 = vpack.c.b16 %v4599, %v4593
    %v4966 = vpack.c.b16 %v4600, %v4594
    %v4967 = vpack.c.b16 %v4601, %v4595
    %v4968 = vpack.c.b16 %v4602, %v4596
    %v4969 = vpack.c.b16 %v4603, %v4597
    %v4970 = vpack.c.b16 %v4604, %v4598
    %v4971 = vpack.c.b16 %v4611, %v4605
    %v4972 = vpack.c.b16 %v4612, %v4606
    %v4973 = vpack.c.b16 %v4613, %v4607
    %v4974 = vpack.c.b16 %v4614, %v4608
    %v4975 = vpack.c.b16 %v4615, %v4609
    %v4976 = vpack.c.b16 %v4616, %v4610
    %v4977 = vpack.c.b16 %v4623, %v4617
    %v4978 = vpack.c.b16 %v4624, %v4618
    %v4979 = vpack.c.b16 %v4625, %v4619
    %v4980 = vpack.c.b16 %v4626, %v4620
    %v4981 = vpack.c.b16 %v4627, %v4621
    %v4982 = vpack.c.b16 %v4628, %v4622
    %v4983 = vpack.c.b16 %v4635, %v4629
    %v4984 = vpack.c.b16 %v4636, %v4630
    %v4985 = vpack.c.b16 %v4637, %v4631
    %v4986 = vpack.c.b16 %v4638, %v4632
    %v4987 = vpack.c.b16 %v4639, %v4633
    %v4988 = vpack.c.b16 %v4640, %v4634
    %v4989 = vpack.c.b16 %v4647, %v4641
    %v4990 = vpack.c.b16 %v4648, %v4642
    %v4991 = vpack.c.b16 %v4649, %v4643
    %v4992 = vpack.c.b16 %v4650, %v4644
    %v4993 = vpack.c.b16 %v4651, %v4645
    %v4994 = vpack.c.b16 %v4652, %v4646
    %v4995 = vpack.c.b16 %v4659, %v4653
    %v4996 = vpack.c.b16 %v4660, %v4654
    %v4997 = vpack.c.b16 %v4661, %v4655
    %v4998 = vpack.c.b16 %v4662, %v4656
    %v4999 = vpack.c.b16 %v4663, %v4657
    %v5000 = vpack.c.b16 %v4664, %v4658
    %v5001 = vpack.c.b16 %v4671, %v4665
    %v5002 = vpack.c.b16 %v4672, %v4666
    %v5003 = vpack.c.b16 %v4673, %v4667
    %v5004 = vpack.c.b16 %v4674, %v4668
    %v5005 = vpack.c.b16 %v4675, %v4669
    %v5006 = vpack.c.b16 %v4676, %v4670
    %v5007 = vpack.c.b16 %v4683, %v4677
    %v5008 = vpack.c.b16 %v4684, %v4678
    %v5009 = vpack.c.b16 %v4685, %v4679
    %v5010 = vpack.c.b16 %v4686, %v4680
    %v5011 = vpack.c.b16 %v4687, %v4681
    %v5012 = vpack.c.b16 %v4688, %v4682
    %v5013 = vpack.c.b16 %v4695, %v4689
    %v5014 = vpack.c.b16 %v4696, %v4690
    %v5015 = vpack.c.b16 %v4697, %v4691
    %v5016 = vpack.c.b16 %v4698, %v4692
    %v5017 = vpack.c.b16 %v4699, %v4693
    %v5018 = vpack.c.b16 %v4700, %v4694
    %v5019 = vpack.c.b16 %v4707, %v4701
    %v5020 = vpack.c.b16 %v4708, %v4702
    %v5021 = vpack.c.b16 %v4709, %v4703
    %v5022 = vpack.c.b16 %v4710, %v4704
    %v5023 = vpack.c.b16 %v4711, %v4705
    %v5024 = vpack.c.b16 %v4712, %v4706
    %v5025 = vpack.c.b16 %v4719, %v4713
    %v5026 = vpack.c.b16 %v4720, %v4714
    %v5027 = vpack.c.b16 %v4721, %v4715
    %v5028 = vpack.c.b16 %v4722, %v4716
    %v5029 = vpack.c.b16 %v4723, %v4717
    %v5030 = vpack.c.b16 %v4724, %v4718
    %v5031 = vpack.c.b16 %v4731, %v4725
    %v5032 = vpack.c.b16 %v4732, %v4726
    %v5033 = vpack.c.b16 %v4733, %v4727
    %v5034 = vpack.c.b16 %v4734, %v4728
    %v5035 = vpack.c.b16 %v4735, %v4729
    %v5036 = vpack.c.b16 %v4736, %v4730
    %v5037 = vpack.c.b16 %v4743, %v4737
    %v5038 = vpack.c.b16 %v4744, %v4738
    %v5039 = vpack.c.b16 %v4745, %v4739
    %v5040 = vpack.c.b16 %v4746, %v4740
    %v5041 = vpack.c.b16 %v4747, %v4741
    %v5042 = vpack.c.b16 %v4748, %v4742
    %v5043 = vpack.c.b16 %v4755, %v4749
    %v5044 = vpack.c.b16 %v4756, %v4750
    %v5045 = vpack.c.b16 %v4757, %v4751
    %v5046 = vpack.c.b16 %v4758, %v4752
    %v5047 = vpack.c.b16 %v4759, %v4753
    %v5048 = vpack.c.b16 %v4760, %v4754
    %5337 = vmatprep.subr.bf16.mxu0 %v4762
    %5338 = vmatpush1.bf16.msra.mxu0 %v4761
    %5339 = vmatprep.subr.bf16.mxu0 %v4768
    %5340 = vmatpush1.bf16.msra.mxu0 %v4767
    %5341 = vmatprep.subr.bf16.mxu0 %v4774
    %5342 = vmatpush1.bf16.msra.mxu0 %v4773
    %5343 = vmatprep.subr.bf16.mxu0 %v4780
    %5344 = vmatpush1.bf16.msra.mxu0 %v4779
    %5345 = vmatprep.subr.bf16.mxu0 %v4786
    %5346 = vmatpush1.bf16.msra.mxu0 %v4785
    %5347 = vmatprep.subr.bf16.mxu0 %v4792
    %5348 = vmatpush1.bf16.msra.mxu0 %v4791
    %5349 = vmatprep.subr.bf16.mxu0 %v4798
    %5350 = vmatpush1.bf16.msra.mxu0 %v4797
    %5351 = vmatprep.subr.bf16.mxu0 %v4804
    %5352 = vmatpush1.bf16.msra.mxu0 %v4803
    %5353 = vmatprep.subr.bf16.mxu0 %v4810
    %5354 = vmatpush1.bf16.msra.mxu0 %v4809
    %5355 = vmatprep.subr.bf16.mxu0 %v4816
    %5356 = vmatpush1.bf16.msra.mxu0 %v4815
    %5357 = vmatprep.subr.bf16.mxu0 %v4822
    %5358 = vmatpush1.bf16.msra.mxu0 %v4821
    %5359 = vmatprep.subr.bf16.mxu0 %v4828
    %5360 = vmatpush1.bf16.msra.mxu0 %v4827
    %5361 = vmatprep.subr.bf16.mxu0 %v4834
    %5362 = vmatpush1.bf16.msra.mxu0 %v4833
    %5363 = vmatprep.subr.bf16.mxu0 %v4840
    %5364 = vmatpush1.bf16.msra.mxu0 %v4839
    %5365 = vmatprep.subr.bf16.mxu0 %v4846
    %5366 = vmatpush1.bf16.msra.mxu0 %v4845
    %5367 = vmatprep.subr.bf16.mxu0 %v4852
    %5368 = vmatpush1.bf16.msra.mxu0 %v4851
    %5369 = vmatprep.mubr.bf16.mxu0 %v3574
    %5370 = vmatmul.mubr.bf16.gmra.mrb[0].mxu0 %v3573
    %v5371 = vpop.f32.mrb[0].mxu0
    %v5372 = vadd.f32 0.0, %v5371
    %v5373 = vpop.f32.mrb[0].mxu0
    %v5374 = vadd.f32 0.0, %v5373
    %v5375 = vpop.f32.mrb[0].mxu0
    %v5376 = vadd.f32 0.0, %v5375
    %v5377 = vpop.f32.mrb[0].mxu0
    %v5378 = vadd.f32 0.0, %v5377
    %5379 = vmatprep.mubr.bf16.mxu0 %v3576
    %5380 = vmatmul.mubr.bf16.gmra.mrb[0].mxu0 %v3575
    %v5381 = vpop.f32.mrb[0].mxu0
    %v5382 = vadd.f32 0.0, %v5381
    %v5383 = vpop.f32.mrb[0].mxu0
    %v5384 = vadd.f32 0.0, %v5383
    %v5385 = vpop.f32.mrb[0].mxu0
    %v5386 = vadd.f32 0.0, %v5385
    %v5387 = vpop.f32.mrb[0].mxu0
    %v5388 = vadd.f32 0.0, %v5387
    %5389 = vmatprep.mubr.bf16.mxu0 %v3578
    %5390 = vmatmul.mubr.bf16.gmra.mrb[0].mxu0 %v3577
    %v5391 = vpop.f32.mrb[0].mxu0
    %v5392 = vadd.f32 0.0, %v5391
    %v5393 = vpop.f32.mrb[0].mxu0
    %v5394 = vadd.f32 0.0, %v5393
    %v5395 = vpop.f32.mrb[0].mxu0
    %v5396 = vadd.f32 0.0, %v5395
    %v5397 = vpop.f32.mrb[0].mxu0
    %v5398 = vadd.f32 0.0, %v5397
    %5399 = vmatprep.mubr.bf16.mxu0 %v3580
    %5400 = vmatmul.mubr.bf16.gmra.mrb[0].mxu0 %v3579
    %v5401 = vpop.f32.mrb[0].mxu0
    %v5402 = vadd.f32 0.0, %v5401
    %v5403 = vpop.f32.mrb[0].mxu0
    %v5404 = vadd.f32 0.0, %v5403
    %v5405 = vpop.f32.mrb[0].mxu0
    %v5406 = vadd.f32 0.0, %v5405
    %v5407 = vpop.f32.mrb[0].mxu0
    %v5408 = vadd.f32 0.0, %v5407
    %5409 = vmatprep.mubr.bf16.mxu0 %v3582
    %5410 = vmatmul.mubr.bf16.gmra.mrb[0].mxu0 %v3581
    %v5411 = vpop.f32.mrb[0].mxu0
    %v5412 = vadd.f32 0.0, %v5411
    %v5413 = vpop.f32.mrb[0].mxu0
    %v5414 = vadd.f32 0.0, %v5413
    %v5415 = vpop.f32.mrb[0].mxu0
    %v5416 = vadd.f32 0.0, %v5415
    %v5417 = vpop.f32.mrb[0].mxu0
    %v5418 = vadd.f32 0.0, %v5417
    %5419 = vmatprep.mubr.bf16.mxu0 %v3584
    %5420 = vmatmul.mubr.bf16.gmra.mrb[0].mxu0 %v3583
    %v5421 = vpop.f32.mrb[0].mxu0
    %v5422 = vadd.f32 0.0, %v5421
    %v5423 = vpop.f32.mrb[0].mxu0
    %v5424 = vadd.f32 0.0, %v5423
    %v5425 = vpop.f32.mrb[0].mxu0
    %v5426 = vadd.f32 0.0, %v5425
    %v5427 = vpop.f32.mrb[0].mxu0
    %v5428 = vadd.f32 0.0, %v5427
    %5429 = vmatprep.mubr.bf16.mxu0 %v3586
    %5430 = vmatmul.mubr.bf16.gmra.mrb[0].mxu0 %v3585
    %v5431 = vpop.f32.mrb[0].mxu0
    %v5432 = vadd.f32 0.0, %v5431
    %v5433 = vpop.f32.mrb[0].mxu0
    %v5434 = vadd.f32 0.0, %v5433
    %v5435 = vpop.f32.mrb[0].mxu0
    %v5436 = vadd.f32 0.0, %v5435
    %v5437 = vpop.f32.mrb[0].mxu0
    %v5438 = vadd.f32 0.0, %v5437
    %5439 = vmatprep.mubr.bf16.mxu0 %v3588
    %5440 = vmatmul.mubr.bf16.gmra.mrb[0].mxu0 %v3587
    %v5441 = vpop.f32.mrb[0].mxu0
    %v5442 = vadd.f32 0.0, %v5441
    %v5443 = vpop.f32.mrb[0].mxu0
    %v5444 = vadd.f32 0.0, %v5443
    %v5445 = vpop.f32.mrb[0].mxu0
    %v5446 = vadd.f32 0.0, %v5445
    %v5447 = vpop.f32.mrb[0].mxu0
    %v5448 = vadd.f32 0.0, %v5447
    %5449 = vdwg.mxu0
    %5450 = vmatprep.subr.bf16.mxu0 %v4858
    %5451 = vmatpush1.bf16.msra.mxu0 %v4857
    %5452 = vmatprep.subr.bf16.mxu0 %v4864
    %5453 = vmatpush1.bf16.msra.mxu0 %v4863
    %5454 = vmatprep.subr.bf16.mxu0 %v4870
    %5455 = vmatpush1.bf16.msra.mxu0 %v4869
    %5456 = vmatprep.subr.bf16.mxu0 %v4876
    %5457 = vmatpush1.bf16.msra.mxu0 %v4875
    %5458 = vmatprep.subr.bf16.mxu0 %v4882
    %5459 = vmatpush1.bf16.msra.mxu0 %v4881
    %5460 = vmatprep.subr.bf16.mxu0 %v4888
    %5461 = vmatpush1.bf16.msra.mxu0 %v4887
    %5462 = vmatprep.subr.bf16.mxu0 %v4894
    %5463 = vmatpush1.bf16.msra.mxu0 %v4893
    %5464 = vmatprep.subr.bf16.mxu0 %v4900
    %5465 = vmatpush1.bf16.msra.mxu0 %v4899
    %5466 = vmatprep.subr.bf16.mxu0 %v4906
    %5467 = vmatpush1.bf16.msra.mxu0 %v4905
    %5468 = vmatprep.subr.bf16.mxu0 %v4912
    %5469 = vmatpush1.bf16.msra.mxu0 %v4911
    %5470 = vmatprep.subr.bf16.mxu0 %v4918
    %5471 = vmatpush1.bf16.msra.mxu0 %v4917
    %5472 = vmatprep.subr.bf16.mxu0 %v4924
    %5473 = vmatpush1.bf16.msra.mxu0 %v4923
    %5474 = vmatprep.subr.bf16.mxu0 %v4930
    %5475 = vmatpush1.bf16.msra.mxu0 %v4929
    %5476 = vmatprep.subr.bf16.mxu0 %v4936
    %5477 = vmatpush1.bf16.msra.mxu0 %v4935
    %5478 = vmatprep.subr.bf16.mxu0 %v4942
    %5479 = vmatpush1.bf16.msra.mxu0 %v4941
    %5480 = vmatprep.subr.bf16.mxu0 %v4948
    %5481 = vmatpush1.bf16.msra.mxu0 %v4947
    %5482 = vmatprep.mubr.bf16.mxu0 %v3590
    %5483 = vmatmul.mubr.bf16.gmra.mrb[0].mxu0 %v3589
    %v5484 = vpop.f32.mrb[0].mxu0
    %v5485 = vadd.f32 %v5372, %v5484
    %v5486 = vpop.f32.mrb[0].mxu0
    %v5487 = vadd.f32 %v5374, %v5486
    %v5488 = vpop.f32.mrb[0].mxu0
    %v5489 = vadd.f32 %v5376, %v5488
    %v5490 = vpop.f32.mrb[0].mxu0
    %v5491 = vadd.f32 %v5378, %v5490
    %5492 = vmatprep.mubr.bf16.mxu0 %v3592
    %5493 = vmatmul.mubr.bf16.gmra.mrb[0].mxu0 %v3591
    %v5494 = vpop.f32.mrb[0].mxu0
    %v5495 = vadd.f32 %v5382, %v5494
    %v5496 = vpop.f32.mrb[0].mxu0
    %v5497 = vadd.f32 %v5384, %v5496
    %v5498 = vpop.f32.mrb[0].mxu0
    %v5499 = vadd.f32 %v5386, %v5498
    %v5500 = vpop.f32.mrb[0].mxu0
    %v5501 = vadd.f32 %v5388, %v5500
    %5502 = vmatprep.mubr.bf16.mxu0 %v3594
    %5503 = vmatmul.mubr.bf16.gmra.mrb[0].mxu0 %v3593
    %v5504 = vpop.f32.mrb[0].mxu0
    %v5505 = vadd.f32 %v5392, %v5504
    %v5506 = vpop.f32.mrb[0].mxu0
    %v5507 = vadd.f32 %v5394, %v5506
    %v5508 = vpop.f32.mrb[0].mxu0
    %v5509 = vadd.f32 %v5396, %v5508
    %v5510 = vpop.f32.mrb[0].mxu0
    %v5511 = vadd.f32 %v5398, %v5510
    %5512 = vmatprep.mubr.bf16.mxu0 %v3596
    %5513 = vmatmul.mubr.bf16.gmra.mrb[0].mxu0 %v3595
    %v5514 = vpop.f32.mrb[0].mxu0
    %v5515 = vadd.f32 %v5402, %v5514
    %v5516 = vpop.f32.mrb[0].mxu0
    %v5517 = vadd.f32 %v5404, %v5516
    %v5518 = vpop.f32.mrb[0].mxu0
    %v5519 = vadd.f32 %v5406, %v5518
    %v5520 = vpop.f32.mrb[0].mxu0
    %v5521 = vadd.f32 %v5408, %v5520
    %5522 = vmatprep.mubr.bf16.mxu0 %v3598
    %5523 = vmatmul.mubr.bf16.gmra.mrb[0].mxu0 %v3597
    %v5524 = vpop.f32.mrb[0].mxu0
    %v5525 = vadd.f32 %v5412, %v5524
    %v5526 = vpop.f32.mrb[0].mxu0
    %v5527 = vadd.f32 %v5414, %v5526
    %v5528 = vpop.f32.mrb[0].mxu0
    %v5529 = vadd.f32 %v5416, %v5528
    %v5530 = vpop.f32.mrb[0].mxu0
    %v5531 = vadd.f32 %v5418, %v5530
    %5532 = vmatprep.mubr.bf16.mxu0 %v3600
    %5533 = vmatmul.mubr.bf16.gmra.mrb[0].mxu0 %v3599
    %v5534 = vpop.f32.mrb[0].mxu0
    %v5535 = vadd.f32 %v5422, %v5534
    %v5536 = vpop.f32.mrb[0].mxu0
    %v5537 = vadd.f32 %v5424, %v5536
    %v5538 = vpop.f32.mrb[0].mxu0
    %v5539 = vadd.f32 %v5426, %v5538
    %v5540 = vpop.f32.mrb[0].mxu0
    %v5541 = vadd.f32 %v5428, %v5540
    %5542 = vmatprep.mubr.bf16.mxu0 %v3602
    %5543 = vmatmul.mubr.bf16.gmra.mrb[0].mxu0 %v3601
    %v5544 = vpop.f32.mrb[0].mxu0
    %v5545 = vadd.f32 %v5432, %v5544
    %v5546 = vpop.f32.mrb[0].mxu0
    %v5547 = vadd.f32 %v5434, %v5546
    %v5548 = vpop.f32.mrb[0].mxu0
    %v5549 = vadd.f32 %v5436, %v5548
    %v5550 = vpop.f32.mrb[0].mxu0
    %v5551 = vadd.f32 %v5438, %v5550
    %5552 = vmatprep.mubr.bf16.mxu0 %v3604
    %5553 = vmatmul.mubr.bf16.gmra.mrb[0].mxu0 %v3603
    %v5554 = vpop.f32.mrb[0].mxu0
    %v5555 = vadd.f32 %v5442, %v5554
    %v5556 = vpop.f32.mrb[0].mxu0
    %v5557 = vadd.f32 %v5444, %v5556
    %v5558 = vpop.f32.mrb[0].mxu0
    %v5559 = vadd.f32 %v5446, %v5558
    %v5560 = vpop.f32.mrb[0].mxu0
    %v5561 = vadd.f32 %v5448, %v5560
    %5562 = vdwg.mxu0
    %5563 = vmatprep.subr.bf16.mxu0 %v4954
    %5564 = vmatpush1.bf16.msra.mxu0 %v4953
    %5565 = vmatprep.subr.bf16.mxu0 %v4960
    %5566 = vmatpush1.bf16.msra.mxu0 %v4959
    %5567 = vmatprep.subr.bf16.mxu0 %v4966
    %5568 = vmatpush1.bf16.msra.mxu0 %v4965
    %5569 = vmatprep.subr.bf16.mxu0 %v4972
    %5570 = vmatpush1.bf16.msra.mxu0 %v4971
    %5571 = vmatprep.subr.bf16.mxu0 %v4978
    %5572 = vmatpush1.bf16.msra.mxu0 %v4977
    %5573 = vmatprep.subr.bf16.mxu0 %v4984
    %5574 = vmatpush1.bf16.msra.mxu0 %v4983
    %5575 = vmatprep.subr.bf16.mxu0 %v4990
    %5576 = vmatpush1.bf16.msra.mxu0 %v4989
    %5577 = vmatprep.subr.bf16.mxu0 %v4996
    %5578 = vmatpush1.bf16.msra.mxu0 %v4995
    %5579 = vmatprep.subr.bf16.mxu0 %v5002
    %5580 = vmatpush1.bf16.msra.mxu0 %v5001
    %5581 = vmatprep.subr.bf16.mxu0 %v5008
    %5582 = vmatpush1.bf16.msra.mxu0 %v5007
    %5583 = vmatprep.subr.bf16.mxu0 %v5014
    %5584 = vmatpush1.bf16.msra.mxu0 %v5013
    %5585 = vmatprep.subr.bf16.mxu0 %v5020
    %5586 = vmatpush1.bf16.msra.mxu0 %v5019
    %5587 = vmatprep.subr.bf16.mxu0 %v5026
    %5588 = vmatpush1.bf16.msra.mxu0 %v5025
    %5589 = vmatprep.subr.bf16.mxu0 %v5032
    %5590 = vmatpush1.bf16.msra.mxu0 %v5031
    %5591 = vmatprep.subr.bf16.mxu0 %v5038
    %5592 = vmatpush1.bf16.msra.mxu0 %v5037
    %5593 = vmatprep.subr.bf16.mxu0 %v5044
    %5594 = vmatpush1.bf16.msra.mxu0 %v5043
    %5595 = vmatprep.mubr.bf16.mxu0 %v3576
    %5596 = vmatmul.mubr.bf16.gmra.mrb[0].mxu0 %v3575
    %v5597 = vpop.f32.mrb[0].mxu0
    %v5598 = vadd.f32 %v5485, %v5597
    %v5599 = vpop.f32.mrb[0].mxu0
    %v5600 = vadd.f32 %v5487, %v5599
    %v5601 = vpop.f32.mrb[0].mxu0
    %v5602 = vadd.f32 %v5489, %v5601
    %v5603 = vpop.f32.mrb[0].mxu0
    %v5604 = vadd.f32 %v5491, %v5603
    %5605 = vmatprep.mubr.bf16.mxu0 %v3578
    %5606 = vmatmul.mubr.bf16.gmra.mrb[0].mxu0 %v3577
    %v5607 = vpop.f32.mrb[0].mxu0
    %v5608 = vadd.f32 %v5495, %v5607
    %v5609 = vpop.f32.mrb[0].mxu0
    %v5610 = vadd.f32 %v5497, %v5609
    %v5611 = vpop.f32.mrb[0].mxu0
    %v5612 = vadd.f32 %v5499, %v5611
    %v5613 = vpop.f32.mrb[0].mxu0
    %v5614 = vadd.f32 %v5501, %v5613
    %5615 = vmatprep.mubr.bf16.mxu0 %v3580
    %5616 = vmatmul.mubr.bf16.gmra.mrb[0].mxu0 %v3579
    %v5617 = vpop.f32.mrb[0].mxu0
    %v5618 = vadd.f32 %v5505, %v5617
    %v5619 = vpop.f32.mrb[0].mxu0
    %v5620 = vadd.f32 %v5507, %v5619
    %v5621 = vpop.f32.mrb[0].mxu0
    %v5622 = vadd.f32 %v5509, %v5621
    %v5623 = vpop.f32.mrb[0].mxu0
    %v5624 = vadd.f32 %v5511, %v5623
    %5625 = vmatprep.mubr.bf16.mxu0 %v3606
    %5626 = vmatmul.mubr.bf16.gmra.mrb[0].mxu0 %v3605
    %v5627 = vpop.f32.mrb[0].mxu0
    %v5628 = vadd.f32 %v5515, %v5627
    %v5629 = vpop.f32.mrb[0].mxu0
    %v5630 = vadd.f32 %v5517, %v5629
    %v5631 = vpop.f32.mrb[0].mxu0
    %v5632 = vadd.f32 %v5519, %v5631
    %v5633 = vpop.f32.mrb[0].mxu0
    %v5634 = vadd.f32 %v5521, %v5633
    %5635 = vmatprep.mubr.bf16.mxu0 %v3584
    %5636 = vmatmul.mubr.bf16.gmra.mrb[0].mxu0 %v3583
    %v5637 = vpop.f32.mrb[0].mxu0
    %v5638 = vadd.f32 %v5525, %v5637
    %v5639 = vpop.f32.mrb[0].mxu0
    %v5640 = vadd.f32 %v5527, %v5639
    %v5641 = vpop.f32.mrb[0].mxu0
    %v5642 = vadd.f32 %v5529, %v5641
    %v5643 = vpop.f32.mrb[0].mxu0
    %v5644 = vadd.f32 %v5531, %v5643
    %5645 = vmatprep.mubr.bf16.mxu0 %v3586
    %5646 = vmatmul.mubr.bf16.gmra.mrb[0].mxu0 %v3585
    %v5647 = vpop.f32.mrb[0].mxu0
    %v5648 = vadd.f32 %v5535, %v5647
    %v5649 = vpop.f32.mrb[0].mxu0
    %v5650 = vadd.f32 %v5537, %v5649
    %v5651 = vpop.f32.mrb[0].mxu0
    %v5652 = vadd.f32 %v5539, %v5651
    %v5653 = vpop.f32.mrb[0].mxu0
    %v5654 = vadd.f32 %v5541, %v5653
    %5655 = vmatprep.mubr.bf16.mxu0 %v3588
    %5656 = vmatmul.mubr.bf16.gmra.mrb[0].mxu0 %v3587
    %v5657 = vpop.f32.mrb[0].mxu0
    %v5658 = vadd.f32 %v5545, %v5657
    %v5659 = vpop.f32.mrb[0].mxu0
    %v5660 = vadd.f32 %v5547, %v5659
    %v5661 = vpop.f32.mrb[0].mxu0
    %v5662 = vadd.f32 %v5549, %v5661
    %v5663 = vpop.f32.mrb[0].mxu0
    %v5664 = vadd.f32 %v5551, %v5663
    %5665 = vmatprep.mubr.bf16.mxu0 %v3608
    %5666 = vmatmul.mubr.bf16.gmra.mrb[0].mxu0 %v3607
    %v5667 = vpop.f32.mrb[0].mxu0
    %v5668 = vadd.f32 %v5555, %v5667
    %v5669 = vpop.f32.mrb[0].mxu0
    %v5670 = vadd.f32 %v5557, %v5669
    %v5671 = vpop.f32.mrb[0].mxu0
    %v5672 = vadd.f32 %v5559, %v5671
    %v5673 = vpop.f32.mrb[0].mxu0
    %v5674 = vadd.f32 %v5561, %v5673
    %5675 = vdwg.mxu0
    %5676 = vmatprep.subr.bf16.mxu0 %v4764
    %5677 = vmatpush1.bf16.msra.mxu0 %v4763
    %5678 = vmatprep.subr.bf16.mxu0 %v4770
    %5679 = vmatpush1.bf16.msra.mxu0 %v4769
    %5680 = vmatprep.subr.bf16.mxu0 %v4776
    %5681 = vmatpush1.bf16.msra.mxu0 %v4775
    %5682 = vmatprep.subr.bf16.mxu0 %v4782
    %5683 = vmatpush1.bf16.msra.mxu0 %v4781
    %5684 = vmatprep.subr.bf16.mxu0 %v4788
    %5685 = vmatpush1.bf16.msra.mxu0 %v4787
    %5686 = vmatprep.subr.bf16.mxu0 %v4794
    %5687 = vmatpush1.bf16.msra.mxu0 %v4793
    %5688 = vmatprep.subr.bf16.mxu0 %v4800
    %5689 = vmatpush1.bf16.msra.mxu0 %v4799
    %5690 = vmatprep.subr.bf16.mxu0 %v4806
    %5691 = vmatpush1.bf16.msra.mxu0 %v4805
    %5692 = vmatprep.subr.bf16.mxu0 %v4812
    %5693 = vmatpush1.bf16.msra.mxu0 %v4811
    %5694 = vmatprep.subr.bf16.mxu0 %v4818
    %5695 = vmatpush1.bf16.msra.mxu0 %v4817
    %5696 = vmatprep.subr.bf16.mxu0 %v4824
    %5697 = vmatpush1.bf16.msra.mxu0 %v4823
    %5698 = vmatprep.subr.bf16.mxu0 %v4830
    %5699 = vmatpush1.bf16.msra.mxu0 %v4829
    %5700 = vmatprep.subr.bf16.mxu0 %v4836
    %5701 = vmatpush1.bf16.msra.mxu0 %v4835
    %5702 = vmatprep.subr.bf16.mxu0 %v4842
    %5703 = vmatpush1.bf16.msra.mxu0 %v4841
    %5704 = vmatprep.subr.bf16.mxu0 %v4848
    %5705 = vmatpush1.bf16.msra.mxu0 %v4847
    %5706 = vmatprep.subr.bf16.mxu0 %v4854
    %5707 = vmatpush1.bf16.msra.mxu0 %v4853
    %5708 = vmatprep.mubr.bf16.mxu0 %v3574
    %5709 = vmatmul.mubr.bf16.gmra.mrb[0].mxu0 %v3573
    %v5710 = vpop.f32.mrb[0].mxu0
    %v5711 = vadd.f32 0.0, %v5710
    %v5712 = vpop.f32.mrb[0].mxu0
    %v5713 = vadd.f32 0.0, %v5712
    %v5714 = vpop.f32.mrb[0].mxu0
    %v5715 = vadd.f32 0.0, %v5714
    %v5716 = vpop.f32.mrb[0].mxu0
    %v5717 = vadd.f32 0.0, %v5716
    %5718 = vmatprep.mubr.bf16.mxu0 %v3576
    %5719 = vmatmul.mubr.bf16.gmra.mrb[0].mxu0 %v3575
    %v5720 = vpop.f32.mrb[0].mxu0
    %v5721 = vadd.f32 0.0, %v5720
    %v5722 = vpop.f32.mrb[0].mxu0
    %v5723 = vadd.f32 0.0, %v5722
    %v5724 = vpop.f32.mrb[0].mxu0
    %v5725 = vadd.f32 0.0, %v5724
    %v5726 = vpop.f32.mrb[0].mxu0
    %v5727 = vadd.f32 0.0, %v5726
    %5728 = vmatprep.mubr.bf16.mxu0 %v3578
    %5729 = vmatmul.mubr.bf16.gmra.mrb[0].mxu0 %v3577
    %v5730 = vpop.f32.mrb[0].mxu0
    %v5731 = vadd.f32 0.0, %v5730
    %v5732 = vpop.f32.mrb[0].mxu0
    %v5733 = vadd.f32 0.0, %v5732
    %v5734 = vpop.f32.mrb[0].mxu0
    %v5735 = vadd.f32 0.0, %v5734
    %v5736 = vpop.f32.mrb[0].mxu0
    %v5737 = vadd.f32 0.0, %v5736
    %5738 = vmatprep.mubr.bf16.mxu0 %v3580
    %5739 = vmatmul.mubr.bf16.gmra.mrb[0].mxu0 %v3579
    %v5740 = vpop.f32.mrb[0].mxu0
    %v5741 = vadd.f32 0.0, %v5740
    %v5742 = vpop.f32.mrb[0].mxu0
    %v5743 = vadd.f32 0.0, %v5742
    %v5744 = vpop.f32.mrb[0].mxu0
    %v5745 = vadd.f32 0.0, %v5744
    %v5746 = vpop.f32.mrb[0].mxu0
    %v5747 = vadd.f32 0.0, %v5746
    %5748 = vmatprep.mubr.bf16.mxu0 %v3582
    %5749 = vmatmul.mubr.bf16.gmra.mrb[0].mxu0 %v3581
    %v5750 = vpop.f32.mrb[0].mxu0
    %v5751 = vadd.f32 0.0, %v5750
    %v5752 = vpop.f32.mrb[0].mxu0
    %v5753 = vadd.f32 0.0, %v5752
    %v5754 = vpop.f32.mrb[0].mxu0
    %v5755 = vadd.f32 0.0, %v5754
    %v5756 = vpop.f32.mrb[0].mxu0
    %v5757 = vadd.f32 0.0, %v5756
    %5758 = vmatprep.mubr.bf16.mxu0 %v3584
    %5759 = vmatmul.mubr.bf16.gmra.mrb[0].mxu0 %v3583
    %v5760 = vpop.f32.mrb[0].mxu0
    %v5761 = vadd.f32 0.0, %v5760
    %v5762 = vpop.f32.mrb[0].mxu0
    %v5763 = vadd.f32 0.0, %v5762
    %v5764 = vpop.f32.mrb[0].mxu0
    %v5765 = vadd.f32 0.0, %v5764
    %v5766 = vpop.f32.mrb[0].mxu0
    %v5767 = vadd.f32 0.0, %v5766
    %5768 = vmatprep.mubr.bf16.mxu0 %v3586
    %5769 = vmatmul.mubr.bf16.gmra.mrb[0].mxu0 %v3585
    %v5770 = vpop.f32.mrb[0].mxu0
    %v5771 = vadd.f32 0.0, %v5770
    %v5772 = vpop.f32.mrb[0].mxu0
    %v5773 = vadd.f32 0.0, %v5772
    %v5774 = vpop.f32.mrb[0].mxu0
    %v5775 = vadd.f32 0.0, %v5774
    %v5776 = vpop.f32.mrb[0].mxu0
    %v5777 = vadd.f32 0.0, %v5776
    %5778 = vmatprep.mubr.bf16.mxu0 %v3588
    %5779 = vmatmul.mubr.bf16.gmra.mrb[0].mxu0 %v3587
    %v5780 = vpop.f32.mrb[0].mxu0
    %v5781 = vadd.f32 0.0, %v5780
    %v5782 = vpop.f32.mrb[0].mxu0
    %v5783 = vadd.f32 0.0, %v5782
    %v5784 = vpop.f32.mrb[0].mxu0
    %v5785 = vadd.f32 0.0, %v5784
    %v5786 = vpop.f32.mrb[0].mxu0
    %v5787 = vadd.f32 0.0, %v5786
    %5788 = vdwg.mxu0
    %5789 = vmatprep.subr.bf16.mxu0 %v4860
    %5790 = vmatpush1.bf16.msra.mxu0 %v4859
    %5791 = vmatprep.subr.bf16.mxu0 %v4866
    %5792 = vmatpush1.bf16.msra.mxu0 %v4865
    %5793 = vmatprep.subr.bf16.mxu0 %v4872
    %5794 = vmatpush1.bf16.msra.mxu0 %v4871
    %5795 = vmatprep.subr.bf16.mxu0 %v4878
    %5796 = vmatpush1.bf16.msra.mxu0 %v4877
    %5797 = vmatprep.subr.bf16.mxu0 %v4884
    %5798 = vmatpush1.bf16.msra.mxu0 %v4883
    %5799 = vmatprep.subr.bf16.mxu0 %v4890
    %5800 = vmatpush1.bf16.msra.mxu0 %v4889
    %5801 = vmatprep.subr.bf16.mxu0 %v4896
    %5802 = vmatpush1.bf16.msra.mxu0 %v4895
    %5803 = vmatprep.subr.bf16.mxu0 %v4902
    %5804 = vmatpush1.bf16.msra.mxu0 %v4901
    %5805 = vmatprep.subr.bf16.mxu0 %v4908
    %5806 = vmatpush1.bf16.msra.mxu0 %v4907
    %5807 = vmatprep.subr.bf16.mxu0 %v4914
    %5808 = vmatpush1.bf16.msra.mxu0 %v4913
    %5809 = vmatprep.subr.bf16.mxu0 %v4920
    %5810 = vmatpush1.bf16.msra.mxu0 %v4919
    %5811 = vmatprep.subr.bf16.mxu0 %v4926
    %5812 = vmatpush1.bf16.msra.mxu0 %v4925
    %5813 = vmatprep.subr.bf16.mxu0 %v4932
    %5814 = vmatpush1.bf16.msra.mxu0 %v4931
    %5815 = vmatprep.subr.bf16.mxu0 %v4938
    %5816 = vmatpush1.bf16.msra.mxu0 %v4937
    %5817 = vmatprep.subr.bf16.mxu0 %v4944
    %5818 = vmatpush1.bf16.msra.mxu0 %v4943
    %5819 = vmatprep.subr.bf16.mxu0 %v4950
    %5820 = vmatpush1.bf16.msra.mxu0 %v4949
    %5821 = vmatprep.mubr.bf16.mxu0 %v3590
    %5822 = vmatmul.mubr.bf16.gmra.mrb[0].mxu0 %v3589
    %v5823 = vpop.f32.mrb[0].mxu0
    %v5824 = vadd.f32 %v5711, %v5823
    %v5825 = vpop.f32.mrb[0].mxu0
    %v5826 = vadd.f32 %v5713, %v5825
    %v5827 = vpop.f32.mrb[0].mxu0
    %v5828 = vadd.f32 %v5715, %v5827
    %v5829 = vpop.f32.mrb[0].mxu0
    %v5830 = vadd.f32 %v5717, %v5829
    %5831 = vmatprep.mubr.bf16.mxu0 %v3592
    %5832 = vmatmul.mubr.bf16.gmra.mrb[0].mxu0 %v3591
    %v5833 = vpop.f32.mrb[0].mxu0
    %v5834 = vadd.f32 %v5721, %v5833
    %v5835 = vpop.f32.mrb[0].mxu0
    %v5836 = vadd.f32 %v5723, %v5835
    %v5837 = vpop.f32.mrb[0].mxu0
    %v5838 = vadd.f32 %v5725, %v5837
    %v5839 = vpop.f32.mrb[0].mxu0
    %v5840 = vadd.f32 %v5727, %v5839
    %5841 = vmatprep.mubr.bf16.mxu0 %v3594
    %5842 = vmatmul.mubr.bf16.gmra.mrb[0].mxu0 %v3593
    %v5843 = vpop.f32.mrb[0].mxu0
    %v5844 = vadd.f32 %v5731, %v5843
    %v5845 = vpop.f32.mrb[0].mxu0
    %v5846 = vadd.f32 %v5733, %v5845
    %v5847 = vpop.f32.mrb[0].mxu0
    %v5848 = vadd.f32 %v5735, %v5847
    %v5849 = vpop.f32.mrb[0].mxu0
    %v5850 = vadd.f32 %v5737, %v5849
    %5851 = vmatprep.mubr.bf16.mxu0 %v3596
    %5852 = vmatmul.mubr.bf16.gmra.mrb[0].mxu0 %v3595
    %v5853 = vpop.f32.mrb[0].mxu0
    %v5854 = vadd.f32 %v5741, %v5853
    %v5855 = vpop.f32.mrb[0].mxu0
    %v5856 = vadd.f32 %v5743, %v5855
    %v5857 = vpop.f32.mrb[0].mxu0
    %v5858 = vadd.f32 %v5745, %v5857
    %v5859 = vpop.f32.mrb[0].mxu0
    %v5860 = vadd.f32 %v5747, %v5859
    %5861 = vmatprep.mubr.bf16.mxu0 %v3598
    %5862 = vmatmul.mubr.bf16.gmra.mrb[0].mxu0 %v3597
    %v5863 = vpop.f32.mrb[0].mxu0
    %v5864 = vadd.f32 %v5751, %v5863
    %v5865 = vpop.f32.mrb[0].mxu0
    %v5866 = vadd.f32 %v5753, %v5865
    %v5867 = vpop.f32.mrb[0].mxu0
    %v5868 = vadd.f32 %v5755, %v5867
    %v5869 = vpop.f32.mrb[0].mxu0
    %v5870 = vadd.f32 %v5757, %v5869
    %5871 = vmatprep.mubr.bf16.mxu0 %v3600
    %5872 = vmatmul.mubr.bf16.gmra.mrb[0].mxu0 %v3599
    %v5873 = vpop.f32.mrb[0].mxu0
    %v5874 = vadd.f32 %v5761, %v5873
    %v5875 = vpop.f32.mrb[0].mxu0
    %v5876 = vadd.f32 %v5763, %v5875
    %v5877 = vpop.f32.mrb[0].mxu0
    %v5878 = vadd.f32 %v5765, %v5877
    %v5879 = vpop.f32.mrb[0].mxu0
    %v5880 = vadd.f32 %v5767, %v5879
    %5881 = vmatprep.mubr.bf16.mxu0 %v3602
    %5882 = vmatmul.mubr.bf16.gmra.mrb[0].mxu0 %v3601
    %v5883 = vpop.f32.mrb[0].mxu0
    %v5884 = vadd.f32 %v5771, %v5883
    %v5885 = vpop.f32.mrb[0].mxu0
    %v5886 = vadd.f32 %v5773, %v5885
    %v5887 = vpop.f32.mrb[0].mxu0
    %v5888 = vadd.f32 %v5775, %v5887
    %v5889 = vpop.f32.mrb[0].mxu0
    %v5890 = vadd.f32 %v5777, %v5889
    %5891 = vmatprep.mubr.bf16.mxu0 %v3604
    %5892 = vmatmul.mubr.bf16.gmra.mrb[0].mxu0 %v3603
    %v5893 = vpop.f32.mrb[0].mxu0
    %v5894 = vadd.f32 %v5781, %v5893
    %v5895 = vpop.f32.mrb[0].mxu0
    %v5896 = vadd.f32 %v5783, %v5895
    %v5897 = vpop.f32.mrb[0].mxu0
    %v5898 = vadd.f32 %v5785, %v5897
    %v5899 = vpop.f32.mrb[0].mxu0
    %v5900 = vadd.f32 %v5787, %v5899
    %5901 = vdwg.mxu0
    %5902 = vmatprep.subr.bf16.mxu0 %v4956
    %5903 = vmatpush1.bf16.msra.mxu0 %v4955
    %5904 = vmatprep.subr.bf16.mxu0 %v4962
    %5905 = vmatpush1.bf16.msra.mxu0 %v4961
    %5906 = vmatprep.subr.bf16.mxu0 %v4968
    %5907 = vmatpush1.bf16.msra.mxu0 %v4967
    %5908 = vmatprep.subr.bf16.mxu0 %v4974
    %5909 = vmatpush1.bf16.msra.mxu0 %v4973
    %5910 = vmatprep.subr.bf16.mxu0 %v4980
    %5911 = vmatpush1.bf16.msra.mxu0 %v4979
    %5912 = vmatprep.subr.bf16.mxu0 %v4986
    %5913 = vmatpush1.bf16.msra.mxu0 %v4985
    %5914 = vmatprep.subr.bf16.mxu0 %v4992
    %5915 = vmatpush1.bf16.msra.mxu0 %v4991
    %5916 = vmatprep.subr.bf16.mxu0 %v4998
    %5917 = vmatpush1.bf16.msra.mxu0 %v4997
    %5918 = vmatprep.subr.bf16.mxu0 %v5004
    %5919 = vmatpush1.bf16.msra.mxu0 %v5003
    %5920 = vmatprep.subr.bf16.mxu0 %v5010
    %5921 = vmatpush1.bf16.msra.mxu0 %v5009
    %5922 = vmatprep.subr.bf16.mxu0 %v5016
    %5923 = vmatpush1.bf16.msra.mxu0 %v5015
    %5924 = vmatprep.subr.bf16.mxu0 %v5022
    %5925 = vmatpush1.bf16.msra.mxu0 %v5021
    %5926 = vmatprep.subr.bf16.mxu0 %v5028
    %5927 = vmatpush1.bf16.msra.mxu0 %v5027
    %5928 = vmatprep.subr.bf16.mxu0 %v5034
    %5929 = vmatpush1.bf16.msra.mxu0 %v5033
    %5930 = vmatprep.subr.bf16.mxu0 %v5040
    %5931 = vmatpush1.bf16.msra.mxu0 %v5039
    %5932 = vmatprep.subr.bf16.mxu0 %v5046
    %5933 = vmatpush1.bf16.msra.mxu0 %v5045
    %5934 = vmatprep.mubr.bf16.mxu0 %v3576
    %5935 = vmatmul.mubr.bf16.gmra.mrb[0].mxu0 %v3575
    %v5936 = vpop.f32.mrb[0].mxu0
    %v5937 = vadd.f32 %v5824, %v5936
    %v5938 = vpop.f32.mrb[0].mxu0
    %v5939 = vadd.f32 %v5826, %v5938
    %v5940 = vpop.f32.mrb[0].mxu0
    %v5941 = vadd.f32 %v5828, %v5940
    %v5942 = vpop.f32.mrb[0].mxu0
    %v5943 = vadd.f32 %v5830, %v5942
    %5944 = vmatprep.mubr.bf16.mxu0 %v3578
    %5945 = vmatmul.mubr.bf16.gmra.mrb[0].mxu0 %v3577
    %v5946 = vpop.f32.mrb[0].mxu0
    %v5947 = vadd.f32 %v5834, %v5946
    %v5948 = vpop.f32.mrb[0].mxu0
    %v5949 = vadd.f32 %v5836, %v5948
    %v5950 = vpop.f32.mrb[0].mxu0
    %v5951 = vadd.f32 %v5838, %v5950
    %v5952 = vpop.f32.mrb[0].mxu0
    %v5953 = vadd.f32 %v5840, %v5952
    %5954 = vmatprep.mubr.bf16.mxu0 %v3580
    %5955 = vmatmul.mubr.bf16.gmra.mrb[0].mxu0 %v3579
    %v5956 = vpop.f32.mrb[0].mxu0
    %v5957 = vadd.f32 %v5844, %v5956
    %v5958 = vpop.f32.mrb[0].mxu0
    %v5959 = vadd.f32 %v5846, %v5958
    %v5960 = vpop.f32.mrb[0].mxu0
    %v5961 = vadd.f32 %v5848, %v5960
    %v5962 = vpop.f32.mrb[0].mxu0
    %v5963 = vadd.f32 %v5850, %v5962
    %5964 = vmatprep.mubr.bf16.mxu0 %v3606
    %5965 = vmatmul.mubr.bf16.gmra.mrb[0].mxu0 %v3605
    %v5966 = vpop.f32.mrb[0].mxu0
    %v5967 = vadd.f32 %v5854, %v5966
    %v5968 = vpop.f32.mrb[0].mxu0
    %v5969 = vadd.f32 %v5856, %v5968
    %v5970 = vpop.f32.mrb[0].mxu0
    %v5971 = vadd.f32 %v5858, %v5970
    %v5972 = vpop.f32.mrb[0].mxu0
    %v5973 = vadd.f32 %v5860, %v5972
    %5974 = vmatprep.mubr.bf16.mxu0 %v3584
    %5975 = vmatmul.mubr.bf16.gmra.mrb[0].mxu0 %v3583
    %v5976 = vpop.f32.mrb[0].mxu0
    %v5977 = vadd.f32 %v5864, %v5976
    %v5978 = vpop.f32.mrb[0].mxu0
    %v5979 = vadd.f32 %v5866, %v5978
    %v5980 = vpop.f32.mrb[0].mxu0
    %v5981 = vadd.f32 %v5868, %v5980
    %v5982 = vpop.f32.mrb[0].mxu0
    %v5983 = vadd.f32 %v5870, %v5982
    %5984 = vmatprep.mubr.bf16.mxu0 %v3586
    %5985 = vmatmul.mubr.bf16.gmra.mrb[0].mxu0 %v3585
    %v5986 = vpop.f32.mrb[0].mxu0
    %v5987 = vadd.f32 %v5874, %v5986
    %v5988 = vpop.f32.mrb[0].mxu0
    %v5989 = vadd.f32 %v5876, %v5988
    %v5990 = vpop.f32.mrb[0].mxu0
    %v5991 = vadd.f32 %v5878, %v5990
    %v5992 = vpop.f32.mrb[0].mxu0
    %v5993 = vadd.f32 %v5880, %v5992
    %5994 = vmatprep.mubr.bf16.mxu0 %v3588
    %5995 = vmatmul.mubr.bf16.gmra.mrb[0].mxu0 %v3587
    %v5996 = vpop.f32.mrb[0].mxu0
    %v5997 = vadd.f32 %v5884, %v5996
    %v5998 = vpop.f32.mrb[0].mxu0
    %v5999 = vadd.f32 %v5886, %v5998
    %v6000 = vpop.f32.mrb[0].mxu0
    %v6001 = vadd.f32 %v5888, %v6000
    %v6002 = vpop.f32.mrb[0].mxu0
    %v6003 = vadd.f32 %v5890, %v6002
    %6004 = vmatprep.mubr.bf16.mxu0 %v3608
    %6005 = vmatmul.mubr.bf16.gmra.mrb[0].mxu0 %v3607
    %v6006 = vpop.f32.mrb[0].mxu0
    %v6007 = vadd.f32 %v5894, %v6006
    %v6008 = vpop.f32.mrb[0].mxu0
    %v6009 = vadd.f32 %v5896, %v6008
    %v6010 = vpop.f32.mrb[0].mxu0
    %v6011 = vadd.f32 %v5898, %v6010
    %v6012 = vpop.f32.mrb[0].mxu0
    %v6013 = vadd.f32 %v5900, %v6012
    %6014 = vdwg.mxu0
    %6015 = vmatprep.subr.bf16.mxu0 %v4766
    %6016 = vmatpush1.bf16.msra.mxu0 %v4765
    %6017 = vmatprep.subr.bf16.mxu0 %v4772
    %6018 = vmatpush1.bf16.msra.mxu0 %v4771
    %6019 = vmatprep.subr.bf16.mxu0 %v4778
    %6020 = vmatpush1.bf16.msra.mxu0 %v4777
    %6021 = vmatprep.subr.bf16.mxu0 %v4784
    %6022 = vmatpush1.bf16.msra.mxu0 %v4783
    %6023 = vmatprep.subr.bf16.mxu0 %v4790
    %6024 = vmatpush1.bf16.msra.mxu0 %v4789
    %6025 = vmatprep.subr.bf16.mxu0 %v4796
    %6026 = vmatpush1.bf16.msra.mxu0 %v4795
    %6027 = vmatprep.subr.bf16.mxu0 %v4802
    %6028 = vmatpush1.bf16.msra.mxu0 %v4801
    %6029 = vmatprep.subr.bf16.mxu0 %v4808
    %6030 = vmatpush1.bf16.msra.mxu0 %v4807
    %6031 = vmatprep.subr.bf16.mxu0 %v4814
    %6032 = vmatpush1.bf16.msra.mxu0 %v4813
    %6033 = vmatprep.subr.bf16.mxu0 %v4820
    %6034 = vmatpush1.bf16.msra.mxu0 %v4819
    %6035 = vmatprep.subr.bf16.mxu0 %v4826
    %6036 = vmatpush1.bf16.msra.mxu0 %v4825
    %6037 = vmatprep.subr.bf16.mxu0 %v4832
    %6038 = vmatpush1.bf16.msra.mxu0 %v4831
    %6039 = vmatprep.subr.bf16.mxu0 %v4838
    %6040 = vmatpush1.bf16.msra.mxu0 %v4837
    %6041 = vmatprep.subr.bf16.mxu0 %v4844
    %6042 = vmatpush1.bf16.msra.mxu0 %v4843
    %6043 = vmatprep.subr.bf16.mxu0 %v4850
    %6044 = vmatpush1.bf16.msra.mxu0 %v4849
    %6045 = vmatprep.subr.bf16.mxu0 %v4856
    %6046 = vmatpush1.bf16.msra.mxu0 %v4855
    %6047 = vmatprep.mubr.bf16.mxu0 %v3574
    %6048 = vmatmul.mubr.bf16.gmra.mrb[0].mxu0 %v3573
    %v6049 = vpop.f32.mrb[0].mxu0
    %v6050 = vadd.f32 0.0, %v6049
    %v6051 = vpop.f32.mrb[0].mxu0
    %v6052 = vadd.f32 0.0, %v6051
    %v6053 = vpop.f32.mrb[0].mxu0
    %v6054 = vadd.f32 0.0, %v6053
    %v6055 = vpop.f32.mrb[0].mxu0
    %v6056 = vadd.f32 0.0, %v6055
    %6057 = vmatprep.mubr.bf16.mxu0 %v3576
    %6058 = vmatmul.mubr.bf16.gmra.mrb[0].mxu0 %v3575
    %v6059 = vpop.f32.mrb[0].mxu0
    %v6060 = vadd.f32 0.0, %v6059
    %v6061 = vpop.f32.mrb[0].mxu0
    %v6062 = vadd.f32 0.0, %v6061
    %v6063 = vpop.f32.mrb[0].mxu0
    %v6064 = vadd.f32 0.0, %v6063
    %v6065 = vpop.f32.mrb[0].mxu0
    %v6066 = vadd.f32 0.0, %v6065
    %6067 = vmatprep.mubr.bf16.mxu0 %v3578
    %6068 = vmatmul.mubr.bf16.gmra.mrb[0].mxu0 %v3577
    %v6069 = vpop.f32.mrb[0].mxu0
    %v6070 = vadd.f32 0.0, %v6069
    %v6071 = vpop.f32.mrb[0].mxu0
    %v6072 = vadd.f32 0.0, %v6071
    %v6073 = vpop.f32.mrb[0].mxu0
    %v6074 = vadd.f32 0.0, %v6073
    %v6075 = vpop.f32.mrb[0].mxu0
    %v6076 = vadd.f32 0.0, %v6075
    %6077 = vmatprep.mubr.bf16.mxu0 %v3580
    %6078 = vmatmul.mubr.bf16.gmra.mrb[0].mxu0 %v3579
    %v6079 = vpop.f32.mrb[0].mxu0
    %v6080 = vadd.f32 0.0, %v6079
    %v6081 = vpop.f32.mrb[0].mxu0
    %v6082 = vadd.f32 0.0, %v6081
    %v6083 = vpop.f32.mrb[0].mxu0
    %v6084 = vadd.f32 0.0, %v6083
    %v6085 = vpop.f32.mrb[0].mxu0
    %v6086 = vadd.f32 0.0, %v6085
    %6087 = vmatprep.mubr.bf16.mxu0 %v3582
    %6088 = vmatmul.mubr.bf16.gmra.mrb[0].mxu0 %v3581
    %v6089 = vpop.f32.mrb[0].mxu0
    %v6090 = vadd.f32 0.0, %v6089
    %v6091 = vpop.f32.mrb[0].mxu0
    %v6092 = vadd.f32 0.0, %v6091
    %v6093 = vpop.f32.mrb[0].mxu0
    %v6094 = vadd.f32 0.0, %v6093
    %v6095 = vpop.f32.mrb[0].mxu0
    %v6096 = vadd.f32 0.0, %v6095
    %6097 = vmatprep.mubr.bf16.mxu0 %v3584
    %6098 = vmatmul.mubr.bf16.gmra.mrb[0].mxu0 %v3583
    %v6099 = vpop.f32.mrb[0].mxu0
    %v6100 = vadd.f32 0.0, %v6099
    %v6101 = vpop.f32.mrb[0].mxu0
    %v6102 = vadd.f32 0.0, %v6101
    %v6103 = vpop.f32.mrb[0].mxu0
    %v6104 = vadd.f32 0.0, %v6103
    %v6105 = vpop.f32.mrb[0].mxu0
    %v6106 = vadd.f32 0.0, %v6105
    %6107 = vmatprep.mubr.bf16.mxu0 %v3586
    %6108 = vmatmul.mubr.bf16.gmra.mrb[0].mxu0 %v3585
    %v6109 = vpop.f32.mrb[0].mxu0
    %v6110 = vadd.f32 0.0, %v6109
    %v6111 = vpop.f32.mrb[0].mxu0
    %v6112 = vadd.f32 0.0, %v6111
    %v6113 = vpop.f32.mrb[0].mxu0
    %v6114 = vadd.f32 0.0, %v6113
    %v6115 = vpop.f32.mrb[0].mxu0
    %v6116 = vadd.f32 0.0, %v6115
    %6117 = vmatprep.mubr.bf16.mxu0 %v3588
    %6118 = vmatmul.mubr.bf16.gmra.mrb[0].mxu0 %v3587
    %v6119 = vpop.f32.mrb[0].mxu0
    %v6120 = vadd.f32 0.0, %v6119
    %v6121 = vpop.f32.mrb[0].mxu0
    %v6122 = vadd.f32 0.0, %v6121
    %v6123 = vpop.f32.mrb[0].mxu0
    %v6124 = vadd.f32 0.0, %v6123
    %v6125 = vpop.f32.mrb[0].mxu0
    %v6126 = vadd.f32 0.0, %v6125
    %6127 = vdwg.mxu0
    %6128 = vmatprep.subr.bf16.mxu0 %v4862
    %6129 = vmatpush1.bf16.msra.mxu0 %v4861
    %6130 = vmatprep.subr.bf16.mxu0 %v4868
    %6131 = vmatpush1.bf16.msra.mxu0 %v4867
    %6132 = vmatprep.subr.bf16.mxu0 %v4874
    %6133 = vmatpush1.bf16.msra.mxu0 %v4873
    %6134 = vmatprep.subr.bf16.mxu0 %v4880
    %6135 = vmatpush1.bf16.msra.mxu0 %v4879
    %6136 = vmatprep.subr.bf16.mxu0 %v4886
    %6137 = vmatpush1.bf16.msra.mxu0 %v4885
    %6138 = vmatprep.subr.bf16.mxu0 %v4892
    %6139 = vmatpush1.bf16.msra.mxu0 %v4891
    %6140 = vmatprep.subr.bf16.mxu0 %v4898
    %6141 = vmatpush1.bf16.msra.mxu0 %v4897
    %6142 = vmatprep.subr.bf16.mxu0 %v4904
    %6143 = vmatpush1.bf16.msra.mxu0 %v4903
    %6144 = vmatprep.subr.bf16.mxu0 %v4910
    %6145 = vmatpush1.bf16.msra.mxu0 %v4909
    %6146 = vmatprep.subr.bf16.mxu0 %v4916
    %6147 = vmatpush1.bf16.msra.mxu0 %v4915
    %6148 = vmatprep.subr.bf16.mxu0 %v4922
    %6149 = vmatpush1.bf16.msra.mxu0 %v4921
    %6150 = vmatprep.subr.bf16.mxu0 %v4928
    %6151 = vmatpush1.bf16.msra.mxu0 %v4927
    %6152 = vmatprep.subr.bf16.mxu0 %v4934
    %6153 = vmatpush1.bf16.msra.mxu0 %v4933
    %6154 = vmatprep.subr.bf16.mxu0 %v4940
    %6155 = vmatpush1.bf16.msra.mxu0 %v4939
    %6156 = vmatprep.subr.bf16.mxu0 %v4946
    %6157 = vmatpush1.bf16.msra.mxu0 %v4945
    %6158 = vmatprep.subr.bf16.mxu0 %v4952
    %6159 = vmatpush1.bf16.msra.mxu0 %v4951
    %6160 = vmatprep.mubr.bf16.mxu0 %v3590
    %6161 = vmatmul.mubr.bf16.gmra.mrb[0].mxu0 %v3589
    %v6162 = vpop.f32.mrb[0].mxu0
    %v6163 = vadd.f32 %v6050, %v6162
    %v6164 = vpop.f32.mrb[0].mxu0
    %v6165 = vadd.f32 %v6052, %v6164
    %v6166 = vpop.f32.mrb[0].mxu0
    %v6167 = vadd.f32 %v6054, %v6166
    %v6168 = vpop.f32.mrb[0].mxu0
    %v6169 = vadd.f32 %v6056, %v6168
    %6170 = vmatprep.mubr.bf16.mxu0 %v3592
    %6171 = vmatmul.mubr.bf16.gmra.mrb[0].mxu0 %v3591
    %v6172 = vpop.f32.mrb[0].mxu0
    %v6173 = vadd.f32 %v6060, %v6172
    %v6174 = vpop.f32.mrb[0].mxu0
    %v6175 = vadd.f32 %v6062, %v6174
    %v6176 = vpop.f32.mrb[0].mxu0
    %v6177 = vadd.f32 %v6064, %v6176
    %v6178 = vpop.f32.mrb[0].mxu0
    %v6179 = vadd.f32 %v6066, %v6178
    %6180 = vmatprep.mubr.bf16.mxu0 %v3594
    %6181 = vmatmul.mubr.bf16.gmra.mrb[0].mxu0 %v3593
    %v6182 = vpop.f32.mrb[0].mxu0
    %v6183 = vadd.f32 %v6070, %v6182
    %v6184 = vpop.f32.mrb[0].mxu0
    %v6185 = vadd.f32 %v6072, %v6184
    %v6186 = vpop.f32.mrb[0].mxu0
    %v6187 = vadd.f32 %v6074, %v6186
    %v6188 = vpop.f32.mrb[0].mxu0
    %v6189 = vadd.f32 %v6076, %v6188
    %6190 = vmatprep.mubr.bf16.mxu0 %v3596
    %6191 = vmatmul.mubr.bf16.gmra.mrb[0].mxu0 %v3595
    %v6192 = vpop.f32.mrb[0].mxu0
    %v6193 = vadd.f32 %v6080, %v6192
    %v6194 = vpop.f32.mrb[0].mxu0
    %v6195 = vadd.f32 %v6082, %v6194
    %v6196 = vpop.f32.mrb[0].mxu0
    %v6197 = vadd.f32 %v6084, %v6196
    %v6198 = vpop.f32.mrb[0].mxu0
    %v6199 = vadd.f32 %v6086, %v6198
    %6200 = vmatprep.mubr.bf16.mxu0 %v3598
    %6201 = vmatmul.mubr.bf16.gmra.mrb[0].mxu0 %v3597
    %v6202 = vpop.f32.mrb[0].mxu0
    %v6203 = vadd.f32 %v6090, %v6202
    %v6204 = vpop.f32.mrb[0].mxu0
    %v6205 = vadd.f32 %v6092, %v6204
    %v6206 = vpop.f32.mrb[0].mxu0
    %v6207 = vadd.f32 %v6094, %v6206
    %v6208 = vpop.f32.mrb[0].mxu0
    %v6209 = vadd.f32 %v6096, %v6208
    %6210 = vmatprep.mubr.bf16.mxu0 %v3600
    %6211 = vmatmul.mubr.bf16.gmra.mrb[0].mxu0 %v3599
    %v6212 = vpop.f32.mrb[0].mxu0
    %v6213 = vadd.f32 %v6100, %v6212
    %v6214 = vpop.f32.mrb[0].mxu0
    %v6215 = vadd.f32 %v6102, %v6214
    %v6216 = vpop.f32.mrb[0].mxu0
    %v6217 = vadd.f32 %v6104, %v6216
    %v6218 = vpop.f32.mrb[0].mxu0
    %v6219 = vadd.f32 %v6106, %v6218
    %6220 = vmatprep.mubr.bf16.mxu0 %v3602
    %6221 = vmatmul.mubr.bf16.gmra.mrb[0].mxu0 %v3601
    %v6222 = vpop.f32.mrb[0].mxu0
    %v6223 = vadd.f32 %v6110, %v6222
    %v6224 = vpop.f32.mrb[0].mxu0
    %v6225 = vadd.f32 %v6112, %v6224
    %v6226 = vpop.f32.mrb[0].mxu0
    %v6227 = vadd.f32 %v6114, %v6226
    %v6228 = vpop.f32.mrb[0].mxu0
    %v6229 = vadd.f32 %v6116, %v6228
    %6230 = vmatprep.mubr.bf16.mxu0 %v3604
    %6231 = vmatmul.mubr.bf16.gmra.mrb[0].mxu0 %v3603
    %v6232 = vpop.f32.mrb[0].mxu0
    %v6233 = vadd.f32 %v6120, %v6232
    %v6234 = vpop.f32.mrb[0].mxu0
    %v6235 = vadd.f32 %v6122, %v6234
    %v6236 = vpop.f32.mrb[0].mxu0
    %v6237 = vadd.f32 %v6124, %v6236
    %v6238 = vpop.f32.mrb[0].mxu0
    %v6239 = vadd.f32 %v6126, %v6238
    %6240 = vdwg.mxu0
    %6241 = vmatprep.subr.bf16.mxu0 %v4958
    %6242 = vmatpush1.bf16.msra.mxu0 %v4957
    %6243 = vmatprep.subr.bf16.mxu0 %v4964
    %6244 = vmatpush1.bf16.msra.mxu0 %v4963
    %6245 = vmatprep.subr.bf16.mxu0 %v4970
    %6246 = vmatpush1.bf16.msra.mxu0 %v4969
    %6247 = vmatprep.subr.bf16.mxu0 %v4976
    %6248 = vmatpush1.bf16.msra.mxu0 %v4975
    %6249 = vmatprep.subr.bf16.mxu0 %v4982
    %6250 = vmatpush1.bf16.msra.mxu0 %v4981
    %6251 = vmatprep.subr.bf16.mxu0 %v4988
    %6252 = vmatpush1.bf16.msra.mxu0 %v4987
    %6253 = vmatprep.subr.bf16.mxu0 %v4994
    %6254 = vmatpush1.bf16.msra.mxu0 %v4993
    %6255 = vmatprep.subr.bf16.mxu0 %v5000
    %6256 = vmatpush1.bf16.msra.mxu0 %v4999
    %6257 = vmatprep.subr.bf16.mxu0 %v5006
    %6258 = vmatpush1.bf16.msra.mxu0 %v5005
    %6259 = vmatprep.subr.bf16.mxu0 %v5012
    %6260 = vmatpush1.bf16.msra.mxu0 %v5011
    %6261 = vmatprep.subr.bf16.mxu0 %v5018
    %6262 = vmatpush1.bf16.msra.mxu0 %v5017
    %6263 = vmatprep.subr.bf16.mxu0 %v5024
    %6264 = vmatpush1.bf16.msra.mxu0 %v5023
    %6265 = vmatprep.subr.bf16.mxu0 %v5030
    %6266 = vmatpush1.bf16.msra.mxu0 %v5029
    %6267 = vmatprep.subr.bf16.mxu0 %v5036
    %6268 = vmatpush1.bf16.msra.mxu0 %v5035
    %6269 = vmatprep.subr.bf16.mxu0 %v5042
    %6270 = vmatpush1.bf16.msra.mxu0 %v5041
    %6271 = vmatprep.subr.bf16.mxu0 %v5048
    %6272 = vmatpush1.bf16.msra.mxu0 %v5047
    %6273 = vmatprep.mubr.bf16.mxu0 %v3576
    %6274 = vmatmul.mubr.bf16.gmra.mrb[0].mxu0 %v3575
    %v6275 = vpop.f32.mrb[0].mxu0
    %v6276 = vadd.f32 %v6163, %v6275
    %v6277 = vpop.f32.mrb[0].mxu0
    %v6278 = vadd.f32 %v6165, %v6277
    %v6279 = vpop.f32.mrb[0].mxu0
    %v6280 = vadd.f32 %v6167, %v6279
    %v6281 = vpop.f32.mrb[0].mxu0
    %v6282 = vadd.f32 %v6169, %v6281
    %6283 = vmatprep.mubr.bf16.mxu0 %v3578
    %6284 = vmatmul.mubr.bf16.gmra.mrb[0].mxu0 %v3577
    %v6285 = vpop.f32.mrb[0].mxu0
    %v6286 = vadd.f32 %v6173, %v6285
    %v6287 = vpop.f32.mrb[0].mxu0
    %v6288 = vadd.f32 %v6175, %v6287
    %v6289 = vpop.f32.mrb[0].mxu0
    %v6290 = vadd.f32 %v6177, %v6289
    %v6291 = vpop.f32.mrb[0].mxu0
    %v6292 = vadd.f32 %v6179, %v6291
    %6293 = vmatprep.mubr.bf16.mxu0 %v3580
    %6294 = vmatmul.mubr.bf16.gmra.mrb[0].mxu0 %v3579
    %v6295 = vpop.f32.mrb[0].mxu0
    %v6296 = vadd.f32 %v6183, %v6295
    %v6297 = vpop.f32.mrb[0].mxu0
    %v6298 = vadd.f32 %v6185, %v6297
    %v6299 = vpop.f32.mrb[0].mxu0
    %v6300 = vadd.f32 %v6187, %v6299
    %v6301 = vpop.f32.mrb[0].mxu0
    %v6302 = vadd.f32 %v6189, %v6301
    %6303 = vmatprep.mubr.bf16.mxu0 %v3606
    %6304 = vmatmul.mubr.bf16.gmra.mrb[0].mxu0 %v3605
    %v6305 = vpop.f32.mrb[0].mxu0
    %v6306 = vadd.f32 %v6193, %v6305
    %v6307 = vpop.f32.mrb[0].mxu0
    %v6308 = vadd.f32 %v6195, %v6307
    %v6309 = vpop.f32.mrb[0].mxu0
    %v6310 = vadd.f32 %v6197, %v6309
    %v6311 = vpop.f32.mrb[0].mxu0
    %v6312 = vadd.f32 %v6199, %v6311
    %6313 = vmatprep.mubr.bf16.mxu0 %v3584
    %6314 = vmatmul.mubr.bf16.gmra.mrb[0].mxu0 %v3583
    %v6315 = vpop.f32.mrb[0].mxu0
    %v6316 = vadd.f32 %v6203, %v6315
    %v6317 = vpop.f32.mrb[0].mxu0
    %v6318 = vadd.f32 %v6205, %v6317
    %v6319 = vpop.f32.mrb[0].mxu0
    %v6320 = vadd.f32 %v6207, %v6319
    %v6321 = vpop.f32.mrb[0].mxu0
    %v6322 = vadd.f32 %v6209, %v6321
    %6323 = vmatprep.mubr.bf16.mxu0 %v3586
    %6324 = vmatmul.mubr.bf16.gmra.mrb[0].mxu0 %v3585
    %v6325 = vpop.f32.mrb[0].mxu0
    %v6326 = vadd.f32 %v6213, %v6325
    %v6327 = vpop.f32.mrb[0].mxu0
    %v6328 = vadd.f32 %v6215, %v6327
    %v6329 = vpop.f32.mrb[0].mxu0
    %v6330 = vadd.f32 %v6217, %v6329
    %v6331 = vpop.f32.mrb[0].mxu0
    %v6332 = vadd.f32 %v6219, %v6331
    %6333 = vmatprep.mubr.bf16.mxu0 %v3588
    %6334 = vmatmul.mubr.bf16.gmra.mrb[0].mxu0 %v3587
    %v6335 = vpop.f32.mrb[0].mxu0
    %v6336 = vadd.f32 %v6223, %v6335
    %v6337 = vpop.f32.mrb[0].mxu0
    %v6338 = vadd.f32 %v6225, %v6337
    %v6339 = vpop.f32.mrb[0].mxu0
    %v6340 = vadd.f32 %v6227, %v6339
    %v6341 = vpop.f32.mrb[0].mxu0
    %v6342 = vadd.f32 %v6229, %v6341
    %6343 = vmatprep.mubr.bf16.mxu0 %v3608
    %6344 = vmatmul.mubr.bf16.gmra.mrb[0].mxu0 %v3607
    %v6345 = vpop.f32.mrb[0].mxu0
    %v6346 = vadd.f32 %v6233, %v6345
    %v6347 = vpop.f32.mrb[0].mxu0
    %v6348 = vadd.f32 %v6235, %v6347
    %v6349 = vpop.f32.mrb[0].mxu0
    %v6350 = vadd.f32 %v6237, %v6349
    %v6351 = vpop.f32.mrb[0].mxu0
    %v6352 = vadd.f32 %v6239, %v6351
    %6353 = vdwg.mxu0
    %v6354 = vrot.slane %v5598, 7
    %v6355 = vrot.slane %v5600, 7
    %v6356 = vrot.slane %v5602, 7
    %v6357 = vrot.slane %v5604, 7
    %v6358 = vrot.slane %v5608, 7
    %v6359 = vrot.slane %v5610, 7
    %v6360 = vrot.slane %v5612, 7
    %v6361 = vrot.slane %v5614, 7
    %v6362 = vrot.slane %v5618, 7
    %v6363 = vrot.slane %v5620, 7
    %v6364 = vrot.slane %v5622, 7
    %v6365 = vrot.slane %v5624, 7
    %v6366 = vrot.slane %v5628, 7
    %v6367 = vrot.slane %v5630, 7
    %v6368 = vrot.slane %v5632, 7
    %v6369 = vrot.slane %v5634, 7
    %v6370 = vrot.slane %v5638, 7
    %v6371 = vrot.slane %v5640, 7
    %v6372 = vrot.slane %v5642, 7
    %v6373 = vrot.slane %v5644, 7
    %v6374 = vrot.slane %v5648, 7
    %v6375 = vrot.slane %v5650, 7
    %v6376 = vrot.slane %v5652, 7
    %v6377 = vrot.slane %v5654, 7
    %v6378 = vrot.slane %v5658, 7
    %v6379 = vrot.slane %v5660, 7
    %v6380 = vrot.slane %v5662, 7
    %v6381 = vrot.slane %v5664, 7
    %v6382 = vrot.slane %v5668, 7
    %v6383 = vrot.slane %v5670, 7
    %v6384 = vrot.slane %v5672, 7
    %v6385 = vrot.slane %v5674, 7
    %v6386 = vsel %vm3271, %v6382, %v6384
    %v6387 = vsel %vm3271, %v6383, %v6385
    %v6388 = vsel %vm3271, %v6380, %v6382
    %v6389 = vsel %vm3271, %v6381, %v6383
    %v6390 = vsel %vm3271, %v6378, %v6380
    %v6391 = vsel %vm3271, %v6379, %v6381
    %v6392 = vsel %vm3271, %v6376, %v6378
    %v6393 = vsel %vm3271, %v6377, %v6379
    %v6394 = vsel %vm3271, %v6374, %v6376
    %v6395 = vsel %vm3271, %v6375, %v6377
    %v6396 = vsel %vm3271, %v6372, %v6374
    %v6397 = vsel %vm3271, %v6373, %v6375
    %v6398 = vsel %vm3271, %v6370, %v6372
    %v6399 = vsel %vm3271, %v6371, %v6373
    %v6400 = vsel %vm3271, %v6368, %v6370
    %v6401 = vsel %vm3271, %v6369, %v6371
    %v6402 = vsel %vm3271, %v6366, %v6368
    %v6403 = vsel %vm3271, %v6367, %v6369
    %v6404 = vsel %vm3271, %v6364, %v6366
    %v6405 = vsel %vm3271, %v6365, %v6367
    %v6406 = vsel %vm3271, %v6362, %v6364
    %v6407 = vsel %vm3271, %v6363, %v6365
    %v6408 = vsel %vm3271, %v6360, %v6362
    %v6409 = vsel %vm3271, %v6361, %v6363
    %v6410 = vsel %vm3271, %v6358, %v6360
    %v6411 = vsel %vm3271, %v6359, %v6361
    %v6412 = vsel %vm3271, %v6356, %v6358
    %v6413 = vsel %vm3271, %v6357, %v6359
    %v6414 = vsel %vm3271, %v6354, %v6356
    %v6415 = vsel %vm3271, %v6355, %v6357
    %v6416 = vsel %vm3271, %v6384, %v6354
    %v6417 = vsel %vm3271, %v6385, %v6355
    %v6418 = vsel %vm456, %v6416, 0.0
    %v6419 = vsel %vm456, %v6417, 0.0
    %v6420 = vsel %vm456, %v6414, 0.0
    %v6421 = vsel %vm456, %v6415, 0.0
    %v6422 = vsel %vm456, %v6412, 0.0
    %v6423 = vsel %vm456, %v6413, 0.0
    %v6424 = vsel %vm456, %v6410, 0.0
    %v6425 = vsel %vm456, %v6411, 0.0
    %v6426 = vsel %vm456, %v6408, 0.0
    %v6427 = vsel %vm456, %v6409, 0.0
    %v6428 = vsel %vm456, %v6406, 0.0
    %v6429 = vsel %vm456, %v6407, 0.0
    %v6430 = vsel %vm456, %v6404, 0.0
    %v6431 = vsel %vm456, %v6405, 0.0
    %v6432 = vsel %vm456, %v6402, 0.0
    %v6433 = vsel %vm456, %v6403, 0.0
    %v6434 = vsel %vm456, %v6400, 0.0
    %v6435 = vsel %vm456, %v6401, 0.0
    %v6436 = vsel %vm456, %v6398, 0.0
    %v6437 = vsel %vm456, %v6399, 0.0
    %v6438 = vsel %vm456, %v6396, 0.0
    %v6439 = vsel %vm456, %v6397, 0.0
    %v6440 = vsel %vm456, %v6394, 0.0
    %v6441 = vsel %vm456, %v6395, 0.0
    %v6442 = vsel %vm456, %v6392, 0.0
    %v6443 = vsel %vm456, %v6393, 0.0
    %v6444 = vsel %vm456, %v6390, 0.0
    %v6445 = vsel %vm456, %v6391, 0.0
    %v6446 = vsel %vm456, %v6388, 0.0
    %v6447 = vsel %vm456, %v6389, 0.0
    %v6448 = vsel %vm456, %v6386, 0.0
    %v6449 = vsel %vm456, %v6387, 0.0
    %v6450 = vadd.f32 %v5937, %v6418
    %v6451 = vadd.f32 %v5939, %v6419
    %v6452 = vadd.f32 %v5941, %v6420
    %v6453 = vadd.f32 %v5943, %v6421
    %v6454 = vadd.f32 %v5947, %v6422
    %v6455 = vadd.f32 %v5949, %v6423
    %v6456 = vadd.f32 %v5951, %v6424
    %v6457 = vadd.f32 %v5953, %v6425
    %v6458 = vadd.f32 %v5957, %v6426
    %v6459 = vadd.f32 %v5959, %v6427
    %v6460 = vadd.f32 %v5961, %v6428
    %v6461 = vadd.f32 %v5963, %v6429
    %v6462 = vadd.f32 %v5967, %v6430
    %v6463 = vadd.f32 %v5969, %v6431
    %v6464 = vadd.f32 %v5971, %v6432
    %v6465 = vadd.f32 %v5973, %v6433
    %v6466 = vadd.f32 %v5977, %v6434
    %v6467 = vadd.f32 %v5979, %v6435
    %v6468 = vadd.f32 %v5981, %v6436
    %v6469 = vadd.f32 %v5983, %v6437
    %v6470 = vadd.f32 %v5987, %v6438
    %v6471 = vadd.f32 %v5989, %v6439
    %v6472 = vadd.f32 %v5991, %v6440
    %v6473 = vadd.f32 %v5993, %v6441
    %v6474 = vadd.f32 %v5997, %v6442
    %v6475 = vadd.f32 %v5999, %v6443
    %v6476 = vadd.f32 %v6001, %v6444
    %v6477 = vadd.f32 %v6003, %v6445
    %v6478 = vadd.f32 %v6007, %v6446
    %v6479 = vadd.f32 %v6009, %v6447
    %v6480 = vadd.f32 %v6011, %v6448
    %v6481 = vadd.f32 %v6013, %v6449
    %v6482 = vrot.slane %v6276, 1
    %v6483 = vrot.slane %v6278, 1
    %v6484 = vrot.slane %v6280, 1
    %v6485 = vrot.slane %v6282, 1
    %v6486 = vrot.slane %v6286, 1
    %v6487 = vrot.slane %v6288, 1
    %v6488 = vrot.slane %v6290, 1
    %v6489 = vrot.slane %v6292, 1
    %v6490 = vrot.slane %v6296, 1
    %v6491 = vrot.slane %v6298, 1
    %v6492 = vrot.slane %v6300, 1
    %v6493 = vrot.slane %v6302, 1
    %v6494 = vrot.slane %v6306, 1
    %v6495 = vrot.slane %v6308, 1
    %v6496 = vrot.slane %v6310, 1
    %v6497 = vrot.slane %v6312, 1
    %v6498 = vrot.slane %v6316, 1
    %v6499 = vrot.slane %v6318, 1
    %v6500 = vrot.slane %v6320, 1
    %v6501 = vrot.slane %v6322, 1
    %v6502 = vrot.slane %v6326, 1
    %v6503 = vrot.slane %v6328, 1
    %v6504 = vrot.slane %v6330, 1
    %v6505 = vrot.slane %v6332, 1
    %v6506 = vrot.slane %v6336, 1
    %v6507 = vrot.slane %v6338, 1
    %v6508 = vrot.slane %v6340, 1
    %v6509 = vrot.slane %v6342, 1
    %v6510 = vrot.slane %v6346, 1
    %v6511 = vrot.slane %v6348, 1
    %v6512 = vrot.slane %v6350, 1
    %v6513 = vrot.slane %v6352, 1
    %v6514 = vsel %vm3400, %v6510, %v6512
    %v6515 = vsel %vm3400, %v6511, %v6513
    %v6516 = vsel %vm3400, %v6508, %v6510
    %v6517 = vsel %vm3400, %v6509, %v6511
    %v6518 = vsel %vm3400, %v6506, %v6508
    %v6519 = vsel %vm3400, %v6507, %v6509
    %v6520 = vsel %vm3400, %v6504, %v6506
    %v6521 = vsel %vm3400, %v6505, %v6507
    %v6522 = vsel %vm3400, %v6502, %v6504
    %v6523 = vsel %vm3400, %v6503, %v6505
    %v6524 = vsel %vm3400, %v6500, %v6502
    %v6525 = vsel %vm3400, %v6501, %v6503
    %v6526 = vsel %vm3400, %v6498, %v6500
    %v6527 = vsel %vm3400, %v6499, %v6501
    %v6528 = vsel %vm3400, %v6496, %v6498
    %v6529 = vsel %vm3400, %v6497, %v6499
    %v6530 = vsel %vm3400, %v6494, %v6496
    %v6531 = vsel %vm3400, %v6495, %v6497
    %v6532 = vsel %vm3400, %v6492, %v6494
    %v6533 = vsel %vm3400, %v6493, %v6495
    %v6534 = vsel %vm3400, %v6490, %v6492
    %v6535 = vsel %vm3400, %v6491, %v6493
    %v6536 = vsel %vm3400, %v6488, %v6490
    %v6537 = vsel %vm3400, %v6489, %v6491
    %v6538 = vsel %vm3400, %v6486, %v6488
    %v6539 = vsel %vm3400, %v6487, %v6489
    %v6540 = vsel %vm3400, %v6484, %v6486
    %v6541 = vsel %vm3400, %v6485, %v6487
    %v6542 = vsel %vm3400, %v6482, %v6484
    %v6543 = vsel %vm3400, %v6483, %v6485
    %v6544 = vsel %vm3400, %v6512, %v6482
    %v6545 = vsel %vm3400, %v6513, %v6483
    %v6546 = vsel %vm457, %v6542, 0.0
    %v6547 = vsel %vm457, %v6543, 0.0
    %v6548 = vsel %vm457, %v6540, 0.0
    %v6549 = vsel %vm457, %v6541, 0.0
    %v6550 = vsel %vm457, %v6538, 0.0
    %v6551 = vsel %vm457, %v6539, 0.0
    %v6552 = vsel %vm457, %v6536, 0.0
    %v6553 = vsel %vm457, %v6537, 0.0
    %v6554 = vsel %vm457, %v6534, 0.0
    %v6555 = vsel %vm457, %v6535, 0.0
    %v6556 = vsel %vm457, %v6532, 0.0
    %v6557 = vsel %vm457, %v6533, 0.0
    %v6558 = vsel %vm457, %v6530, 0.0
    %v6559 = vsel %vm457, %v6531, 0.0
    %v6560 = vsel %vm457, %v6528, 0.0
    %v6561 = vsel %vm457, %v6529, 0.0
    %v6562 = vsel %vm457, %v6526, 0.0
    %v6563 = vsel %vm457, %v6527, 0.0
    %v6564 = vsel %vm457, %v6524, 0.0
    %v6565 = vsel %vm457, %v6525, 0.0
    %v6566 = vsel %vm457, %v6522, 0.0
    %v6567 = vsel %vm457, %v6523, 0.0
    %v6568 = vsel %vm457, %v6520, 0.0
    %v6569 = vsel %vm457, %v6521, 0.0
    %v6570 = vsel %vm457, %v6518, 0.0
    %v6571 = vsel %vm457, %v6519, 0.0
    %v6572 = vsel %vm457, %v6516, 0.0
    %v6573 = vsel %vm457, %v6517, 0.0
    %v6574 = vsel %vm457, %v6514, 0.0
    %v6575 = vsel %vm457, %v6515, 0.0
    %v6576 = vsel %vm457, %v6544, 0.0
    %v6577 = vsel %vm457, %v6545, 0.0
    %v6578 = vadd.f32 %v6450, %v6546
    %v6579 = vadd.f32 %v6451, %v6547
    %v6580 = vadd.f32 %v6452, %v6548
    %v6581 = vadd.f32 %v6453, %v6549
    %v6582 = vadd.f32 %v6454, %v6550
    %v6583 = vadd.f32 %v6455, %v6551
    %v6584 = vadd.f32 %v6456, %v6552
    %v6585 = vadd.f32 %v6457, %v6553
    %v6586 = vadd.f32 %v6458, %v6554
    %v6587 = vadd.f32 %v6459, %v6555
    %v6588 = vadd.f32 %v6460, %v6556
    %v6589 = vadd.f32 %v6461, %v6557
    %v6590 = vadd.f32 %v6462, %v6558
    %v6591 = vadd.f32 %v6463, %v6559
    %v6592 = vadd.f32 %v6464, %v6560
    %v6593 = vadd.f32 %v6465, %v6561
    %v6594 = vadd.f32 %v6466, %v6562
    %v6595 = vadd.f32 %v6467, %v6563
    %v6596 = vadd.f32 %v6468, %v6564
    %v6597 = vadd.f32 %v6469, %v6565
    %v6598 = vadd.f32 %v6470, %v6566
    %v6599 = vadd.f32 %v6471, %v6567
    %v6600 = vadd.f32 %v6472, %v6568
    %v6601 = vadd.f32 %v6473, %v6569
    %v6602 = vadd.f32 %v6474, %v6570
    %v6603 = vadd.f32 %v6475, %v6571
    %v6604 = vadd.f32 %v6476, %v6572
    %v6605 = vadd.f32 %v6477, %v6573
    %v6606 = vadd.f32 %v6478, %v6574
    %v6607 = vadd.f32 %v6479, %v6575
    %v6608 = vadd.f32 %v6480, %v6576
    %v6609 = vadd.f32 %v6481, %v6577
    %v6610 = vld [vmem:[#allocation11] sm:$0x3]
    %v6612 = vlaneseq
    %v6613 = vshrl.u32 %v6612, 7
    %v6614 = vsub.s32 0, %v6613
    %v6615 = vrot.slane %v6610, %v6614
    %v6616 = vlaneseq
    %v6617 = vshrl.u32 %v6616, 7
    %v6618 = vsub.s32 1, %v6617
    %v6619 = vrot.slane %v6610, %v6618
    %v6622 = vadd.f32 %v6578, %v6615
    %v6623 = vadd.f32 %v6579, %v6619
    %v6624 = vadd.f32 %v6580, %v6615
    %v6625 = vadd.f32 %v6581, %v6619
    %v6626 = vadd.f32 %v6582, %v6615
    %v6627 = vadd.f32 %v6583, %v6619
    %v6628 = vadd.f32 %v6584, %v6615
    %v6629 = vadd.f32 %v6585, %v6619
    %v6630 = vadd.f32 %v6586, %v6615
    %v6631 = vadd.f32 %v6587, %v6619
    %v6632 = vadd.f32 %v6588, %v6615
    %v6633 = vadd.f32 %v6589, %v6619
    %v6634 = vadd.f32 %v6590, %v6615
    %v6635 = vadd.f32 %v6591, %v6619
    %v6636 = vadd.f32 %v6592, %v6615
    %v6637 = vadd.f32 %v6593, %v6619
    %v6638 = vadd.f32 %v6594, %v6615
    %v6639 = vadd.f32 %v6595, %v6619
    %v6640 = vadd.f32 %v6596, %v6615
    %v6641 = vadd.f32 %v6597, %v6619
    %v6642 = vadd.f32 %v6598, %v6615
    %v6643 = vadd.f32 %v6599, %v6619
    %v6644 = vadd.f32 %v6600, %v6615
    %v6645 = vadd.f32 %v6601, %v6619
    %v6646 = vadd.f32 %v6602, %v6615
    %v6647 = vadd.f32 %v6603, %v6619
    %v6648 = vadd.f32 %v6604, %v6615
    %v6649 = vadd.f32 %v6605, %v6619
    %v6650 = vadd.f32 %v6606, %v6615
    %v6651 = vadd.f32 %v6607, %v6619
    %v6652 = vadd.f32 %v6608, %v6615
    %v6653 = vadd.f32 %v6609, %v6619
    %v6654 = vmax.f32 %v6622, 0.0
    %v6655 = vmax.f32 %v6623, 0.0
    %v6656 = vmax.f32 %v6624, 0.0
    %v6657 = vmax.f32 %v6625, 0.0
    %v6658 = vmax.f32 %v6626, 0.0
    %v6659 = vmax.f32 %v6627, 0.0
    %v6660 = vmax.f32 %v6628, 0.0
    %v6661 = vmax.f32 %v6629, 0.0
    %v6662 = vmax.f32 %v6630, 0.0
    %v6663 = vmax.f32 %v6631, 0.0
    %v6664 = vmax.f32 %v6632, 0.0
    %v6665 = vmax.f32 %v6633, 0.0
    %v6666 = vmax.f32 %v6634, 0.0
    %v6667 = vmax.f32 %v6635, 0.0
    %v6668 = vmax.f32 %v6636, 0.0
    %v6669 = vmax.f32 %v6637, 0.0
    %v6670 = vmax.f32 %v6638, 0.0
    %v6671 = vmax.f32 %v6639, 0.0
    %v6672 = vmax.f32 %v6640, 0.0
    %v6673 = vmax.f32 %v6641, 0.0
    %v6674 = vmax.f32 %v6642, 0.0
    %v6675 = vmax.f32 %v6643, 0.0
    %v6676 = vmax.f32 %v6644, 0.0
    %v6677 = vmax.f32 %v6645, 0.0
    %v6678 = vmax.f32 %v6646, 0.0
    %v6679 = vmax.f32 %v6647, 0.0
    %v6680 = vmax.f32 %v6648, 0.0
    %v6681 = vmax.f32 %v6649, 0.0
    %v6682 = vmax.f32 %v6650, 0.0
    %v6683 = vmax.f32 %v6651, 0.0
    %v6684 = vmax.f32 %v6652, 0.0
    %v6685 = vmax.f32 %v6653, 0.0
    %v6686 = vadd.f32 %v6654, %v6656
    %v6687 = vadd.f32 %v6686, %v6658
    %v6688 = vadd.f32 %v6687, %v6660
    %v6689 = vadd.f32 %v6688, %v6662
    %v6690 = vadd.f32 %v6689, %v6664
    %v6691 = vadd.f32 %v6690, %v6666
    %v6692 = vadd.f32 %v6691, %v6668
    %v6693 = vrot.slane %v6692, 4
    %v6694 = vadd.f32 %v6692, %v6693
    %v6695 = vrot.slane %v6694, 2
    %v6696 = vadd.f32 %v6694, %v6695
    %v6697 = vrot.slane %v6696, 1
    %v6698 = vadd.f32 %v6696, %v6697
    %v6699 = vadd.f32 %v6655, %v6657
    %v6700 = vadd.f32 %v6699, %v6659
    %v6701 = vadd.f32 %v6700, %v6661
    %v6702 = vadd.f32 %v6701, %v6663
    %v6703 = vadd.f32 %v6702, %v6665
    %v6704 = vadd.f32 %v6703, %v6667
    %v6705 = vadd.f32 %v6704, %v6669
    %v6706 = vrot.slane %v6705, 4
    %v6707 = vadd.f32 %v6705, %v6706
    %v6708 = vrot.slane %v6707, 2
    %v6709 = vadd.f32 %v6707, %v6708
    %v6710 = vrot.slane %v6709, 1
    %v6711 = vadd.f32 %v6709, %v6710
    %v6712 = vadd.f32 %v6670, %v6672
    %v6713 = vadd.f32 %v6712, %v6674
    %v6714 = vadd.f32 %v6713, %v6676
    %v6715 = vadd.f32 %v6714, %v6678
    %v6716 = vadd.f32 %v6715, %v6680
    %v6717 = vadd.f32 %v6716, %v6682
    %v6718 = vadd.f32 %v6717, %v6684
    %v6719 = vrot.slane %v6718, 4
    %v6720 = vadd.f32 %v6718, %v6719
    %v6721 = vrot.slane %v6720, 2
    %v6722 = vadd.f32 %v6720, %v6721
    %v6723 = vrot.slane %v6722, 1
    %v6724 = vadd.f32 %v6722, %v6723
    %v6725 = vadd.f32 %v6671, %v6673
    %v6726 = vadd.f32 %v6725, %v6675
    %v6727 = vadd.f32 %v6726, %v6677
    %v6728 = vadd.f32 %v6727, %v6679
    %v6729 = vadd.f32 %v6728, %v6681
    %v6730 = vadd.f32 %v6729, %v6683
    %v6731 = vadd.f32 %v6730, %v6685
    %v6732 = vrot.slane %v6731, 4
    %v6733 = vadd.f32 %v6731, %v6732
    %v6734 = vrot.slane %v6733, 2
    %v6735 = vadd.f32 %v6733, %v6734
    %v6736 = vrot.slane %v6735, 1
    %v6737 = vadd.f32 %v6735, %v6736
    %v6738 = vpack.c.bf16 %v6698, %v6698
    %v6739 = vpack.c.bf16 %v6711, %v6711
    %v6740 = vpack.c.bf16 %v6724, %v6724
    %v6741 = vpack.c.bf16 %v6737, %v6737
    %v6742 = vld [vmem:[#allocation13] sm:$0xf]
    %v6743 = vld [vmem:[#allocation13 + $0x4] sm:$0xf]
    %v6744 = vld [vmem:[#allocation13 + $0x8] sm:$0xf]
    %v6745 = vld [vmem:[#allocation13 + $0xc] sm:$0xf]
    %v6746 = vld [vmem:[#allocation13 + $0x10] sm:$0xf]
    %v6747 = vld [vmem:[#allocation13 + $0x14] sm:$0xf]
    %v6748 = vld [vmem:[#allocation13 + $0x18] sm:$0xf]
    %v6749 = vld [vmem:[#allocation13 + $0x1c] sm:$0xf]
    %v6750 = vld [vmem:[#allocation13 + $0x20] sm:$0xf]
    %v6751 = vld [vmem:[#allocation13 + $0x24] sm:$0xf]
    %v6752 = vld [vmem:[#allocation13 + $0x28] sm:$0xf]
    %v6753 = vld [vmem:[#allocation13 + $0x2c] sm:$0xf]
    %v6754 = vld [vmem:[#allocation13 + $0x30] sm:$0xf]
    %v6755 = vld [vmem:[#allocation13 + $0x34] sm:$0xf]
    %v6756 = vld [vmem:[#allocation13 + $0x38] sm:$0xf]
    %v6757 = vld [vmem:[#allocation13 + $0x3c] sm:$0xf]
    %v6758 = vld [vmem:[#allocation13 + $0x40] sm:$0xf]
    %v6759 = vld [vmem:[#allocation13 + $0x44] sm:$0xf]
    %v6760 = vld [vmem:[#allocation13 + $0x48] sm:$0xf]
    %v6761 = vld [vmem:[#allocation13 + $0x4c] sm:$0xf]
    %v6762 = vld [vmem:[#allocation13 + $0x50] sm:$0xf]
    %v6763 = vld [vmem:[#allocation13 + $0x54] sm:$0xf]
    %v6764 = vld [vmem:[#allocation13 + $0x58] sm:$0xf]
    %v6765 = vld [vmem:[#allocation13 + $0x5c] sm:$0xf]
    %v6766 = vld [vmem:[#allocation13 + $0x60] sm:$0xf]
    %v6767 = vld [vmem:[#allocation13 + $0x64] sm:$0xf]
    %v6768 = vld [vmem:[#allocation13 + $0x68] sm:$0xf]
    %v6769 = vld [vmem:[#allocation13 + $0x6c] sm:$0xf]
    %v6770 = vld [vmem:[#allocation13 + $0x70] sm:$0xf]
    %v6771 = vld [vmem:[#allocation13 + $0x74] sm:$0xf]
    %v6772 = vld [vmem:[#allocation13 + $0x78] sm:$0xf]
    %v6773 = vld [vmem:[#allocation13 + $0x7c] sm:$0xf]
    %v6778 = vunpack.c.l.b16 %v6738
    %v6779 = vunpack.c.l.b16 %v6739
    %v6780 = vunpack.c.l.b16 %v6740
    %v6781 = vunpack.c.l.b16 %v6741
    %vm6782 = vcmask 1041409
    %v6783 = vsel %vm6782, %v6780, %v6778
    %v6784 = vsel %vm6782, %v6781, %v6779
    %v6785 = vpack.c.b16 %v6783, %v6783
    %v6786 = vpack.c.b16 %v6784, %v6784
    %v6821 = vunpack.c.l.b16 %v6742
    %v6822 = vunpack.c.l.b16 %v6743
    %v6823 = vunpack.c.l.b16 %v6744
    %v6824 = vunpack.c.l.b16 %v6745
    %v6825 = vunpack.c.l.b16 %v6746
    %v6826 = vunpack.c.l.b16 %v6747
    %v6827 = vunpack.c.l.b16 %v6748
    %v6828 = vunpack.c.l.b16 %v6749
    %v6829 = vunpack.c.l.b16 %v6750
    %v6830 = vunpack.c.l.b16 %v6751
    %v6831 = vunpack.c.l.b16 %v6752
    %v6832 = vunpack.c.l.b16 %v6753
    %v6833 = vunpack.c.l.b16 %v6754
    %v6834 = vunpack.c.l.b16 %v6755
    %v6835 = vunpack.c.l.b16 %v6756
    %v6836 = vunpack.c.l.b16 %v6757
    %v6837 = vunpack.c.l.b16 %v6758
    %v6838 = vunpack.c.l.b16 %v6759
    %v6839 = vunpack.c.l.b16 %v6760
    %v6840 = vunpack.c.l.b16 %v6761
    %v6841 = vunpack.c.l.b16 %v6762
    %v6842 = vunpack.c.l.b16 %v6763
    %v6843 = vunpack.c.l.b16 %v6764
    %v6844 = vunpack.c.l.b16 %v6765
    %v6845 = vunpack.c.l.b16 %v6766
    %v6846 = vunpack.c.l.b16 %v6767
    %v6847 = vunpack.c.l.b16 %v6768
    %v6848 = vunpack.c.l.b16 %v6769
    %v6849 = vunpack.c.l.b16 %v6770
    %v6850 = vunpack.c.l.b16 %v6771
    %v6851 = vunpack.c.l.b16 %v6772
    %v6852 = vunpack.c.l.b16 %v6773
    %v6853 = vpack.c.b16 %v6822, %v6821
    %v6854 = vpack.c.b16 %v6824, %v6823
    %v6855 = vpack.c.b16 %v6826, %v6825
    %v6856 = vpack.c.b16 %v6828, %v6827
    %v6857 = vpack.c.b16 %v6830, %v6829
    %v6858 = vpack.c.b16 %v6832, %v6831
    %v6859 = vpack.c.b16 %v6834, %v6833
    %v6860 = vpack.c.b16 %v6836, %v6835
    %v6861 = vpack.c.b16 %v6838, %v6837
    %v6862 = vpack.c.b16 %v6840, %v6839
    %v6863 = vpack.c.b16 %v6842, %v6841
    %v6864 = vpack.c.b16 %v6844, %v6843
    %v6865 = vpack.c.b16 %v6846, %v6845
    %v6866 = vpack.c.b16 %v6848, %v6847
    %v6867 = vpack.c.b16 %v6850, %v6849
    %v6868 = vpack.c.b16 %v6852, %v6851
    %6885 = vmatprep.subr.bf16.mxu0 0
    %6886 = vmatpush1.bf16.msra.mxu0 %v6853
    %6887 = vmatprep.subr.bf16.mxu0 0
    %6888 = vmatpush1.bf16.msra.mxu0 %v6854
    %6889 = vmatprep.subr.bf16.mxu0 0
    %6890 = vmatpush1.bf16.msra.mxu0 %v6855
    %6891 = vmatprep.subr.bf16.mxu0 0
    %6892 = vmatpush1.bf16.msra.mxu0 %v6856
    %6893 = vmatprep.subr.bf16.mxu0 0
    %6894 = vmatpush1.bf16.msra.mxu0 %v6857
    %6895 = vmatprep.subr.bf16.mxu0 0
    %6896 = vmatpush1.bf16.msra.mxu0 %v6858
    %6897 = vmatprep.subr.bf16.mxu0 0
    %6898 = vmatpush1.bf16.msra.mxu0 %v6859
    %6899 = vmatprep.subr.bf16.mxu0 0
    %6900 = vmatpush1.bf16.msra.mxu0 %v6860
    %6901 = vmatprep.subr.bf16.mxu0 0
    %6902 = vmatpush1.bf16.msra.mxu0 %v6861
    %6903 = vmatprep.subr.bf16.mxu0 0
    %6904 = vmatpush1.bf16.msra.mxu0 %v6862
    %6905 = vmatprep.subr.bf16.mxu0 0
    %6906 = vmatpush1.bf16.msra.mxu0 %v6863
    %6907 = vmatprep.subr.bf16.mxu0 0
    %6908 = vmatpush1.bf16.msra.mxu0 %v6864
    %6909 = vmatprep.subr.bf16.mxu0 0
    %6910 = vmatpush1.bf16.msra.mxu0 %v6865
    %6911 = vmatprep.subr.bf16.mxu0 0
    %6912 = vmatpush1.bf16.msra.mxu0 %v6866
    %6913 = vmatprep.subr.bf16.mxu0 0
    %6914 = vmatpush1.bf16.msra.mxu0 %v6867
    %6915 = vmatprep.subr.bf16.mxu0 0
    %6916 = vmatpush1.bf16.msra.mxu0 %v6868
    %6917 = vmatprep.mubr.bf16.mxu0 %v6786
    %6918 = vmatmul.mubr.bf16.gmra.mrb[0].mxu0 %v6785
    %v6919 = vpop.f32.mrb[0].mxu0
    %v6920 = vadd.f32 0.0, %v6919
    %v6921 = vpop.f32.mrb[0].mxu0
    %v6922 = vpop.f32.mrb[0].mxu0
    %v6923 = vpop.f32.mrb[0].mxu0
    %6924 = vdwg.mxu0
    %v6925 = vmul.f32 %v6920, 0.015625
    %v6926 = vld [vmem:[#allocation14] sm:$0x1]
    %v6928 = vlaneseq
    %v6929 = vshrl.u32 %v6928, 7
    %v6930 = vsub.s32 0, %v6929
    %v6931 = vrot.slane %v6926, %v6930
    %v6933 = vadd.f32 %v6925, %v6931
    %6934 = vst [vmem:[#allocation16] sm:$0x3] %v6933
    // Predicated region
    $region70: #{_pose_decoder_forward.1} parent=1 // pred_check
      _
    $region71: #{_pose_decoder_forward.1} parent=1 // pred_check_branch
      %6936 = sbr.rel (0) target = $region73
    $region72: #{_pose_decoder_forward.1} parent=1 // pred_region
      %s6938 = ssub.s32 32, 32
      %6939 = vsyncadd [#allocation4], %s6938
      %s6941 = sshll.u32 [#allocation16], 4
      %s6942 = int_to_ptr.vmem [resolvable:$true] %s6941
      %6944 = dma.vmem_to_hbm [thread:$0]  %s6942, 32, %s9, [#allocation4]
    $region73: #{_pose_decoder_forward.1} parent=1 // pred_fallthru
      _
    // Predicated region
    $region74: #{_pose_decoder_forward.1} parent=1 // pred_check
      _
    $region75: #{_pose_decoder_forward.1} parent=1 // pred_check_branch
      %6946 = sbr.rel (0) target = $region77
    $region76: #{_pose_decoder_forward.1} parent=1 // pred_region
      %6947 = dma.done [#allocation4], 32
    $region77: #{_pose_decoder_forward.1} parent=1 // pred_fallthru
      _
    %6948 = vsyncpa [#allocation3], 1
    %6949 = vsyncpa [#allocation6], 1
    %6950 = vsyncpa [#allocation9], 1
    %6951 = vsyncpa [#allocation12], 1
    %6952 = vsyncpa [#allocation15], 1
    %6953 = vsyncpa [#allocation4], 1

</llo_original>
